<compile_context>
chip_gen: v7x
topology: tpu7x:2x2x1
jax: 0.10.0
libtpu: 0.0.40
codegen_flags: <defaults>
</compile_context>

<pallas_src>
import functools

import numpy as np

import jax
import jax.numpy as jnp
from jax.experimental import pallas as pl
from jax.experimental.pallas import tpu as pltpu


# ----------------------------------------------------------------------------
# Fused Pallas kernel: conv1 -> relu1 -> conv2 -> (relu2), bn images per step
# ----------------------------------------------------------------------------
def _fused_cnn_kernel(x_ref, masks_ref, w1_ref, b1_ref, w2_ref, b2_ref,
                      out1_ref, out2_ref, *, width, relu_out2):
    """Shapes seen by the kernel (L = batch_block * H*W):

      x_ref     : (Cin, L)     input, channel-major, (batch, spatial) in lanes
      masks_ref : (9, L)       0/1 zero-padding validity mask per 3x3 tap
      w1_ref    : (9, C1, Cin) conv1 weight taps, tap index k = kh*3 + kw
      b1_ref    : (C1, 1)
      w2_ref    : (9, C2, C1)
      b2_ref    : (C2, 1)
      out1_ref  : (C1, L)      conv1 pre-ReLU  (hooked layer "conv1")
      out2_ref  : (C2, L)      relu2 (or conv2 pre-ReLU when relu_out2=False)
    """
    L = x_ref.shape[-1]

    def shift_lanes(v, d):
        # y[:, p] = v[:, (p + d) % L].  Any position whose shifted source is
        # out of the image (wraparound or a neighbouring image in the lane
        # axis) is zeroed by the tap mask, so the bleed never contributes.
        d = d % L
        if d == 0:
            return v
        return jnp.concatenate([v[:, d:], v[:, :d]], axis=1)

    def conv3x3(v, w_ref, b_ref):
        cout = w_ref.shape[1]
        acc = jnp.zeros((cout, L), dtype=jnp.float32)
        for kh in range(3):
            for kw in range(3):
                k = kh * 3 + kw
                if k == 4:
                    tap = v                       # centre tap: no shift/mask
                else:
                    d = (kh - 1) * width + (kw - 1)
                    tap = shift_lanes(v, d) * masks_ref[k:k + 1, :]
                acc = acc + jnp.dot(w_ref[k], tap,
                                    preferred_element_type=jnp.float32)
        return acc + b_ref[...]

    x = x_ref[...]

    conv1 = conv3x3(x, w1_ref, b1_ref)
    out1_ref[...] = conv1.astype(out1_ref.dtype)      # hook("conv1"): pre-ReLU

    relu1 = jnp.maximum(conv1, 0.0)                    # stays in VMEM/vregs
    conv2 = conv3x3(relu1, w2_ref, b2_ref)
    if relu_out2:
        conv2 = jnp.maximum(conv2, 0.0)                # fused relu2
    out2_ref[...] = conv2.astype(out2_ref.dtype)


def _tap_masks(h, w):
    """(9, h*w) float32 validity masks for a 3x3 conv with zero padding 1."""
    row = np.repeat(np.arange(h), w)
    col = np.tile(np.arange(w), h)
    masks = []
    for kh in range(3):
        for kw in range(3):
            dh, dw = kh - 1, kw - 1
            valid = ((row + dh >= 0) & (row + dh < h) &
                     (col + dw >= 0) & (col + dw < w))
            masks.append(valid.astype(np.float32))
    return np.stack(masks, axis=0)


def _pick_batch_block(n, hw, max_lanes=2048):
    """Largest divisor of n whose lane extent (bn*hw) is 128-aligned (or full)."""
    best = n  # fallback: whole batch in one block (block == full array is legal)
    for bn in range(min(n, max(1, max_lanes // hw)), 0, -1):
        if n % bn == 0 and ((bn * hw) % 128 == 0 or bn == n):
            best = bn
            break
    return best


def fused_cnn_forward(params, x, *, relu_out2=True):
    """Runs conv1->relu1->conv2->(relu2) in one pallas_call.

    Returns (conv1_pre_relu, second_out) with shapes (N, C1, H*W), (N, C2, H*W).
    second_out is relu2 if relu_out2 else conv2 pre-ReLU.
    """
    n, cin, h, w = x.shape
    hw = h * w
    c1 = params["conv1_w"].shape[0]
    c2 = params["conv2_w"].shape[0]

    bn = _pick_batch_block(n, hw)      # images per grid step (2 for the demo)
    L = bn * hw
    grid = (n // bn,)

    # channel-major with the batch folded into the lane axis: (Cin, N*H*W)
    x2d = jnp.transpose(x, (1, 0, 2, 3)).reshape(cin, n * hw)
    # tap-major weight layout: taps[k, o, c] = weight[o, c, kh, kw], k=kh*3+kw
    w1 = jnp.transpose(params["conv1_w"], (2, 3, 0, 1)).reshape(9, c1, cin)
    w2 = jnp.transpose(params["conv2_w"], (2, 3, 0, 1)).reshape(9, c2, c1)
    b1 = params["conv1_b"].reshape(c1, 1)
    b2 = params["conv2_b"].reshape(c2, 1)
    # per-tap validity mask, tiled across the images of one batch block
    masks = jnp.asarray(np.tile(_tap_masks(h, w), (1, bn)))          # (9, L)

    kernel = functools.partial(_fused_cnn_kernel, width=w, relu_out2=relu_out2)
    out1, out2 = pl.pallas_call(
        kernel,
        out_shape=(jax.ShapeDtypeStruct((c1, n * hw), jnp.float32),
                   jax.ShapeDtypeStruct((c2, n * hw), jnp.float32)),
        grid_spec=pltpu.PrefetchScalarGridSpec(
            num_scalar_prefetch=0,
            grid=grid,
            in_specs=[
                pl.BlockSpec((cin, L), lambda i: (0, i)),
                pl.BlockSpec((9, L), lambda i: (0, 0)),
                pl.BlockSpec((9, c1, cin), lambda i: (0, 0, 0)),
                pl.BlockSpec((c1, 1), lambda i: (0, 0)),
                pl.BlockSpec((9, c2, c1), lambda i: (0, 0, 0)),
                pl.BlockSpec((c2, 1), lambda i: (0, 0)),
            ],
            out_specs=(
                pl.BlockSpec((c1, L), lambda i: (0, i)),
                pl.BlockSpec((c2, L), lambda i: (0, i)),
            ),
        ),
        # batch blocks are fully independent -> megacore-shardable
        compiler_params=pltpu.CompilerParams(
            dimension_semantics=("parallel",),
        ),
    )(x2d, masks, w1, b1, w2, b2)

    # back to per-image channel-major so the NCHW flatten is a free reshape
    out1 = jnp.transpose(out1.reshape(c1, n, hw), (1, 0, 2))
    out2 = jnp.transpose(out2.reshape(c2, n, hw), (1, 0, 2))
    return out1, out2


# ----------------------------------------------------------------------------
# A small deterministic CNN + the feature-extractor forward pass
# ----------------------------------------------------------------------------
def make_params(key, cin=4, c1=8, c2=8):
    k1, k2, k3, k4 = jax.random.split(key, 4)
    return {
        "conv1_w": jax.random.normal(k1, (c1, cin, 3, 3), jnp.float32) * 0.1,
        "conv1_b": jax.random.normal(k2, (c1,), jnp.float32) * 0.1,
        "conv2_w": jax.random.normal(k3, (c2, c1, 3, 3), jnp.float32) * 0.1,
        "conv2_b": jax.random.normal(k4, (c2,), jnp.float32) * 0.1,
    }


def layers_feature_extractor_forward(params, x, layers=("conv1", "relu2")):
    """Mirrors LayersFeatureExtractor.forward: run the model once, capture the
    hooked layer outputs, return {layer: flattened feature} (NCHW flatten)."""
    # TODO(synk): register_forward_hook / named_modules introspection has no
    # Pallas equivalent; the wrapped model is a fixed small CNN, and "hooks"
    # are realized by having the kernel emit the requested intermediates.
    layers = tuple(layers)
    hook_conv2_raw = "conv2" in layers   # a hook on the Conv2d sees pre-ReLU

    out1, out2 = fused_cnn_forward(params, x, relu_out2=not hook_conv2_raw)

    feats = {}
    if "conv1" in layers:
        feats["conv1"] = out1
    if "relu1" in layers:
        feats["relu1"] = jnp.maximum(out1, 0.0)
    if hook_conv2_raw:
        feats["conv2"] = out2
        if "relu2" in layers:
            feats["relu2"] = jnp.maximum(out2, 0.0)
    elif "relu2" in layers:
        feats["relu2"] = out2

    # _flat_features(): (N, C, H*W) row-major flatten == torch NCHW flatten.
    return {k: v.reshape(-1) for k, v in feats.items()}


# ----------------------------------------------------------------------------
# Reference conv (pure lax) for a numerical sanity check
# ----------------------------------------------------------------------------
def _ref_conv(x, w, b):
    out = jax.lax.conv_general_dilated(
        x, w, window_strides=(1, 1), padding="SAME",
        dimension_numbers=("NCHW", "OIHW", "NCHW"))
    return out + b.reshape(1, -1, 1, 1)


if __name__ == "__main__":
    key = jax.random.PRNGKey(0)
    kx, kp = jax.random.split(key)

    # small shapes consistent with the module: batch=2, channels=4, spatial=16
    x = jax.random.normal(kx, (2, 4, 16, 16), jnp.float32)
    params = make_params(kp, cin=4, c1=8, c2=8)

    fwd = jax.jit(layers_feature_extractor_forward, static_argnames=("layers",))
    feats = fwd(params, x, layers=("conv1", "relu2"))
    feats = jax.tree_util.tree_map(jax.block_until_ready, feats)

    # sanity check against a pure-JAX reference model
    ref_c1 = _ref_conv(x, params["conv1_w"], params["conv1_b"])
    ref_r2 = jnp.maximum(
        _ref_conv(jnp.maximum(ref_c1, 0.0), params["conv2_w"], params["conv2_b"]),
        0.0)
    assert feats["conv1"].shape == (2 * 8 * 16 * 16,)
    assert feats["relu2"].shape == (2 * 8 * 16 * 16,)
    assert jnp.allclose(feats["conv1"], ref_c1.reshape(-1), atol=1e-3, rtol=1e-3)
    assert jnp.allclose(feats["relu2"], ref_r2.reshape(-1), atol=1e-3, rtol=1e-3)

    print("KERNEL_OK")
</pallas_src>

<mosaic_0001>
module attributes {stable_mosaic.version = 11 : i64} {
  func.func @_fused_cnn_kernel(%arg0: i32, %arg1: memref<4x512xf32, #tpu.memory_space<vmem>>, %arg2: memref<9x512xf32, #tpu.memory_space<vmem>>, %arg3: memref<9x8x4xf32, #tpu.memory_space<vmem>>, %arg4: memref<8x1xf32, #tpu.memory_space<vmem>>, %arg5: memref<9x8x8xf32, #tpu.memory_space<vmem>>, %arg6: memref<8x1xf32, #tpu.memory_space<vmem>>, %arg7: memref<8x512xf32, #tpu.memory_space<vmem>>, %arg8: memref<8x512xf32, #tpu.memory_space<vmem>>) attributes {dimension_semantics = [#tpu.dimension_semantics<parallel>], iteration_bounds = array<i64: 1>, scalar_prefetch = 0 : i64, scratch_operands = 0 : i64, tpu.core_type = #tpu.core_type<tc>, window_params = [{transform_indices = @transform_0, window_bounds = array<i64: 4, 512>}, {pipeline_mode = #tpu.pipeline_mode<synchronous>, transform_indices = @transform_1, window_bounds = array<i64: 9, 512>}, {pipeline_mode = #tpu.pipeline_mode<synchronous>, transform_indices = @transform_2, window_bounds = array<i64: 9, 8, 4>}, {pipeline_mode = #tpu.pipeline_mode<synchronous>, transform_indices = @transform_3, window_bounds = array<i64: 8, 1>}, {pipeline_mode = #tpu.pipeline_mode<synchronous>, transform_indices = @transform_4, window_bounds = array<i64: 9, 8, 8>}, {pipeline_mode = #tpu.pipeline_mode<synchronous>, transform_indices = @transform_5, window_bounds = array<i64: 8, 1>}, {transform_indices = @transform_6, window_bounds = array<i64: 8, 512>}, {transform_indices = @transform_7, window_bounds = array<i64: 8, 512>}]} {
    %c0 = arith.constant 0 : index
    %c0_0 = arith.constant 0 : index
    %0 = vector.load %arg1[%c0, %c0_0] : memref<4x512xf32, #tpu.memory_space<vmem>>, vector<4x512xf32>
    %cst = arith.constant 0.000000e+00 : f32
    %1 = vector.broadcast %cst : f32 to vector<8x512xf32>
    %2 = vector.extract_strided_slice %0 {offsets = [0, 495], sizes = [4, 17], strides = [1, 1]} : vector<4x512xf32> to vector<4x17xf32>
    %3 = vector.extract_strided_slice %0 {offsets = [0, 0], sizes = [4, 495], strides = [1, 1]} : vector<4x512xf32> to vector<4x495xf32>
    %4 = tpu.concatenate %2, %3 in 1 : vector<4x17xf32>, vector<4x495xf32> -> vector<4x512xf32>
    %c0_1 = arith.constant 0 : index
    %c0_2 = arith.constant 0 : index
    %5 = vector.load %arg2[%c0_1, %c0_2] : memref<9x512xf32, #tpu.memory_space<vmem>>, vector<1x512xf32>
    %6 = vector.broadcast %5 : vector<1x512xf32> to vector<4x512xf32>
    %7 = arith.mulf %4, %6 : vector<4x512xf32>
    %c0_3 = arith.constant 0 : index
    %c0_4 = arith.constant 0 : index
    %c0_5 = arith.constant 0 : index
    %8 = vector.load %arg3[%c0_3, %c0_4, %c0_5] : memref<9x8x4xf32, #tpu.memory_space<vmem>>, vector<1x8x4xf32>
    %9 = vector.shape_cast %8 : vector<1x8x4xf32> to vector<8x4xf32>
    %cst_6 = arith.constant dense<0.000000e+00> : vector<8x512xf32>
    %10 = tpu.matmul %9, %7, %cst_6 {dimension_numbers = #tpu.dot_dimension_numbers<[1], [0], [0], [1], [0, 0, 1, 1], [], []>} : vector<8x4xf32>, vector<4x512xf32>, vector<8x512xf32> -> vector<8x512xf32>
    %11 = arith.addf %1, %10 : vector<8x512xf32>
    %12 = vector.extract_strided_slice %0 {offsets = [0, 496], sizes = [4, 16], strides = [1, 1]} : vector<4x512xf32> to vector<4x16xf32>
    %13 = vector.extract_strided_slice %0 {offsets = [0, 0], sizes = [4, 496], strides = [1, 1]} : vector<4x512xf32> to vector<4x496xf32>
    %14 = tpu.concatenate %12, %13 in 1 : vector<4x16xf32>, vector<4x496xf32> -> vector<4x512xf32>
    %c1 = arith.constant 1 : index
    %c0_7 = arith.constant 0 : index
    %15 = vector.load %arg2[%c1, %c0_7] : memref<9x512xf32, #tpu.memory_space<vmem>>, vector<1x512xf32>
    %16 = vector.broadcast %15 : vector<1x512xf32> to vector<4x512xf32>
    %17 = arith.mulf %14, %16 : vector<4x512xf32>
    %c1_8 = arith.constant 1 : index
    %c0_9 = arith.constant 0 : index
    %c0_10 = arith.constant 0 : index
    %18 = vector.load %arg3[%c1_8, %c0_9, %c0_10] : memref<9x8x4xf32, #tpu.memory_space<vmem>>, vector<1x8x4xf32>
    %19 = vector.shape_cast %18 : vector<1x8x4xf32> to vector<8x4xf32>
    %cst_11 = arith.constant dense<0.000000e+00> : vector<8x512xf32>
    %20 = tpu.matmul %19, %17, %cst_11 {dimension_numbers = #tpu.dot_dimension_numbers<[1], [0], [0], [1], [0, 0, 1, 1], [], []>} : vector<8x4xf32>, vector<4x512xf32>, vector<8x512xf32> -> vector<8x512xf32>
    %21 = arith.addf %11, %20 : vector<8x512xf32>
    %22 = vector.extract_strided_slice %0 {offsets = [0, 497], sizes = [4, 15], strides = [1, 1]} : vector<4x512xf32> to vector<4x15xf32>
    %23 = vector.extract_strided_slice %0 {offsets = [0, 0], sizes = [4, 497], strides = [1, 1]} : vector<4x512xf32> to vector<4x497xf32>
    %24 = tpu.concatenate %22, %23 in 1 : vector<4x15xf32>, vector<4x497xf32> -> vector<4x512xf32>
    %c2 = arith.constant 2 : index
    %c0_12 = arith.constant 0 : index
    %25 = vector.load %arg2[%c2, %c0_12] : memref<9x512xf32, #tpu.memory_space<vmem>>, vector<1x512xf32>
    %26 = vector.broadcast %25 : vector<1x512xf32> to vector<4x512xf32>
    %27 = arith.mulf %24, %26 : vector<4x512xf32>
    %c2_13 = arith.constant 2 : index
    %c0_14 = arith.constant 0 : index
    %c0_15 = arith.constant 0 : index
    %28 = vector.load %arg3[%c2_13, %c0_14, %c0_15] : memref<9x8x4xf32, #tpu.memory_space<vmem>>, vector<1x8x4xf32>
    %29 = vector.shape_cast %28 : vector<1x8x4xf32> to vector<8x4xf32>
    %cst_16 = arith.constant dense<0.000000e+00> : vector<8x512xf32>
    %30 = tpu.matmul %29, %27, %cst_16 {dimension_numbers = #tpu.dot_dimension_numbers<[1], [0], [0], [1], [0, 0, 1, 1], [], []>} : vector<8x4xf32>, vector<4x512xf32>, vector<8x512xf32> -> vector<8x512xf32>
    %31 = arith.addf %21, %30 : vector<8x512xf32>
    %32 = vector.extract_strided_slice %0 {offsets = [0, 511], sizes = [4, 1], strides = [1, 1]} : vector<4x512xf32> to vector<4x1xf32>
    %33 = vector.extract_strided_slice %0 {offsets = [0, 0], sizes = [4, 511], strides = [1, 1]} : vector<4x512xf32> to vector<4x511xf32>
    %34 = tpu.concatenate %32, %33 in 1 : vector<4x1xf32>, vector<4x511xf32> -> vector<4x512xf32>
    %c3 = arith.constant 3 : index
    %c0_17 = arith.constant 0 : index
    %35 = vector.load %arg2[%c3, %c0_17] : memref<9x512xf32, #tpu.memory_space<vmem>>, vector<1x512xf32>
    %36 = vector.broadcast %35 : vector<1x512xf32> to vector<4x512xf32>
    %37 = arith.mulf %34, %36 : vector<4x512xf32>
    %c3_18 = arith.constant 3 : index
    %c0_19 = arith.constant 0 : index
    %c0_20 = arith.constant 0 : index
    %38 = vector.load %arg3[%c3_18, %c0_19, %c0_20] : memref<9x8x4xf32, #tpu.memory_space<vmem>>, vector<1x8x4xf32>
    %39 = vector.shape_cast %38 : vector<1x8x4xf32> to vector<8x4xf32>
    %cst_21 = arith.constant dense<0.000000e+00> : vector<8x512xf32>
    %40 = tpu.matmul %39, %37, %cst_21 {dimension_numbers = #tpu.dot_dimension_numbers<[1], [0], [0], [1], [0, 0, 1, 1], [], []>} : vector<8x4xf32>, vector<4x512xf32>, vector<8x512xf32> -> vector<8x512xf32>
    %41 = arith.addf %31, %40 : vector<8x512xf32>
    %c4 = arith.constant 4 : index
    %c0_22 = arith.constant 0 : index
    %c0_23 = arith.constant 0 : index
    %42 = vector.load %arg3[%c4, %c0_22, %c0_23] : memref<9x8x4xf32, #tpu.memory_space<vmem>>, vector<1x8x4xf32>
    %43 = vector.shape_cast %42 : vector<1x8x4xf32> to vector<8x4xf32>
    %cst_24 = arith.constant dense<0.000000e+00> : vector<8x512xf32>
    %44 = tpu.matmul %43, %0, %cst_24 {dimension_numbers = #tpu.dot_dimension_numbers<[1], [0], [0], [1], [0, 0, 1, 1], [], []>} : vector<8x4xf32>, vector<4x512xf32>, vector<8x512xf32> -> vector<8x512xf32>
    %45 = arith.addf %41, %44 : vector<8x512xf32>
    %46 = vector.extract_strided_slice %0 {offsets = [0, 1], sizes = [4, 511], strides = [1, 1]} : vector<4x512xf32> to vector<4x511xf32>
    %47 = vector.extract_strided_slice %0 {offsets = [0, 0], sizes = [4, 1], strides = [1, 1]} : vector<4x512xf32> to vector<4x1xf32>
    %48 = tpu.concatenate %46, %47 in 1 : vector<4x511xf32>, vector<4x1xf32> -> vector<4x512xf32>
    %c5 = arith.constant 5 : index
    %c0_25 = arith.constant 0 : index
    %49 = vector.load %arg2[%c5, %c0_25] : memref<9x512xf32, #tpu.memory_space<vmem>>, vector<1x512xf32>
    %50 = vector.broadcast %49 : vector<1x512xf32> to vector<4x512xf32>
    %51 = arith.mulf %48, %50 : vector<4x512xf32>
    %c5_26 = arith.constant 5 : index
    %c0_27 = arith.constant 0 : index
    %c0_28 = arith.constant 0 : index
    %52 = vector.load %arg3[%c5_26, %c0_27, %c0_28] : memref<9x8x4xf32, #tpu.memory_space<vmem>>, vector<1x8x4xf32>
    %53 = vector.shape_cast %52 : vector<1x8x4xf32> to vector<8x4xf32>
    %cst_29 = arith.constant dense<0.000000e+00> : vector<8x512xf32>
    %54 = tpu.matmul %53, %51, %cst_29 {dimension_numbers = #tpu.dot_dimension_numbers<[1], [0], [0], [1], [0, 0, 1, 1], [], []>} : vector<8x4xf32>, vector<4x512xf32>, vector<8x512xf32> -> vector<8x512xf32>
    %55 = arith.addf %45, %54 : vector<8x512xf32>
    %56 = vector.extract_strided_slice %0 {offsets = [0, 15], sizes = [4, 497], strides = [1, 1]} : vector<4x512xf32> to vector<4x497xf32>
    %57 = vector.extract_strided_slice %0 {offsets = [0, 0], sizes = [4, 15], strides = [1, 1]} : vector<4x512xf32> to vector<4x15xf32>
    %58 = tpu.concatenate %56, %57 in 1 : vector<4x497xf32>, vector<4x15xf32> -> vector<4x512xf32>
    %c6 = arith.constant 6 : index
    %c0_30 = arith.constant 0 : index
    %59 = vector.load %arg2[%c6, %c0_30] : memref<9x512xf32, #tpu.memory_space<vmem>>, vector<1x512xf32>
    %60 = vector.broadcast %59 : vector<1x512xf32> to vector<4x512xf32>
    %61 = arith.mulf %58, %60 : vector<4x512xf32>
    %c6_31 = arith.constant 6 : index
    %c0_32 = arith.constant 0 : index
    %c0_33 = arith.constant 0 : index
    %62 = vector.load %arg3[%c6_31, %c0_32, %c0_33] : memref<9x8x4xf32, #tpu.memory_space<vmem>>, vector<1x8x4xf32>
    %63 = vector.shape_cast %62 : vector<1x8x4xf32> to vector<8x4xf32>
    %cst_34 = arith.constant dense<0.000000e+00> : vector<8x512xf32>
    %64 = tpu.matmul %63, %61, %cst_34 {dimension_numbers = #tpu.dot_dimension_numbers<[1], [0], [0], [1], [0, 0, 1, 1], [], []>} : vector<8x4xf32>, vector<4x512xf32>, vector<8x512xf32> -> vector<8x512xf32>
    %65 = arith.addf %55, %64 : vector<8x512xf32>
    %66 = vector.extract_strided_slice %0 {offsets = [0, 16], sizes = [4, 496], strides = [1, 1]} : vector<4x512xf32> to vector<4x496xf32>
    %67 = vector.extract_strided_slice %0 {offsets = [0, 0], sizes = [4, 16], strides = [1, 1]} : vector<4x512xf32> to vector<4x16xf32>
    %68 = tpu.concatenate %66, %67 in 1 : vector<4x496xf32>, vector<4x16xf32> -> vector<4x512xf32>
    %c7 = arith.constant 7 : index
    %c0_35 = arith.constant 0 : index
    %69 = vector.load %arg2[%c7, %c0_35] : memref<9x512xf32, #tpu.memory_space<vmem>>, vector<1x512xf32>
    %70 = vector.broadcast %69 : vector<1x512xf32> to vector<4x512xf32>
    %71 = arith.mulf %68, %70 : vector<4x512xf32>
    %c7_36 = arith.constant 7 : index
    %c0_37 = arith.constant 0 : index
    %c0_38 = arith.constant 0 : index
    %72 = vector.load %arg3[%c7_36, %c0_37, %c0_38] : memref<9x8x4xf32, #tpu.memory_space<vmem>>, vector<1x8x4xf32>
    %73 = vector.shape_cast %72 : vector<1x8x4xf32> to vector<8x4xf32>
    %cst_39 = arith.constant dense<0.000000e+00> : vector<8x512xf32>
    %74 = tpu.matmul %73, %71, %cst_39 {dimension_numbers = #tpu.dot_dimension_numbers<[1], [0], [0], [1], [0, 0, 1, 1], [], []>} : vector<8x4xf32>, vector<4x512xf32>, vector<8x512xf32> -> vector<8x512xf32>
    %75 = arith.addf %65, %74 : vector<8x512xf32>
    %76 = vector.extract_strided_slice %0 {offsets = [0, 17], sizes = [4, 495], strides = [1, 1]} : vector<4x512xf32> to vector<4x495xf32>
    %77 = vector.extract_strided_slice %0 {offsets = [0, 0], sizes = [4, 17], strides = [1, 1]} : vector<4x512xf32> to vector<4x17xf32>
    %78 = tpu.concatenate %76, %77 in 1 : vector<4x495xf32>, vector<4x17xf32> -> vector<4x512xf32>
    %c8 = arith.constant 8 : index
    %c0_40 = arith.constant 0 : index
    %79 = vector.load %arg2[%c8, %c0_40] : memref<9x512xf32, #tpu.memory_space<vmem>>, vector<1x512xf32>
    %80 = vector.broadcast %79 : vector<1x512xf32> to vector<4x512xf32>
    %81 = arith.mulf %78, %80 : vector<4x512xf32>
    %c8_41 = arith.constant 8 : index
    %c0_42 = arith.constant 0 : index
    %c0_43 = arith.constant 0 : index
    %82 = vector.load %arg3[%c8_41, %c0_42, %c0_43] : memref<9x8x4xf32, #tpu.memory_space<vmem>>, vector<1x8x4xf32>
    %83 = vector.shape_cast %82 : vector<1x8x4xf32> to vector<8x4xf32>
    %cst_44 = arith.constant dense<0.000000e+00> : vector<8x512xf32>
    %84 = tpu.matmul %83, %81, %cst_44 {dimension_numbers = #tpu.dot_dimension_numbers<[1], [0], [0], [1], [0, 0, 1, 1], [], []>} : vector<8x4xf32>, vector<4x512xf32>, vector<8x512xf32> -> vector<8x512xf32>
    %85 = arith.addf %75, %84 : vector<8x512xf32>
    %c0_45 = arith.constant 0 : index
    %c0_46 = arith.constant 0 : index
    %86 = vector.load %arg4[%c0_45, %c0_46] : memref<8x1xf32, #tpu.memory_space<vmem>>, vector<8x1xf32>
    %87 = vector.broadcast %86 : vector<8x1xf32> to vector<8x512xf32>
    %88 = arith.addf %85, %87 : vector<8x512xf32>
    %c0_47 = arith.constant 0 : index
    %c0_48 = arith.constant 0 : index
    %89 = vector.load %arg7[%c0_47, %c0_48] : memref<8x512xf32, #tpu.memory_space<vmem>>, vector<8x512xf32>
    tpu.vector_store %arg7[%c0_47, %c0_48], %88 {strides = array<i32>} : memref<8x512xf32, #tpu.memory_space<vmem>>, vector<8x512xf32>,
    %cst_49 = arith.constant 0.000000e+00 : f32
    %90 = vector.broadcast %cst_49 : f32 to vector<8x512xf32>
    %91 = arith.maximumf %88, %90 : vector<8x512xf32>
    %cst_50 = arith.constant 0.000000e+00 : f32
    %92 = vector.broadcast %cst_50 : f32 to vector<8x512xf32>
    %93 = vector.extract_strided_slice %91 {offsets = [0, 495], sizes = [8, 17], strides = [1, 1]} : vector<8x512xf32> to vector<8x17xf32>
    %94 = vector.extract_strided_slice %91 {offsets = [0, 0], sizes = [8, 495], strides = [1, 1]} : vector<8x512xf32> to vector<8x495xf32>
    %95 = tpu.concatenate %93, %94 in 1 : vector<8x17xf32>, vector<8x495xf32> -> vector<8x512xf32>
    %c0_51 = arith.constant 0 : index
    %c0_52 = arith.constant 0 : index
    %96 = vector.load %arg2[%c0_51, %c0_52] : memref<9x512xf32, #tpu.memory_space<vmem>>, vector<1x512xf32>
    %97 = vector.broadcast %96 : vector<1x512xf32> to vector<8x512xf32>
    %98 = arith.mulf %95, %97 : vector<8x512xf32>
    %c0_53 = arith.constant 0 : index
    %c0_54 = arith.constant 0 : index
    %c0_55 = arith.constant 0 : index
    %99 = vector.load %arg5[%c0_53, %c0_54, %c0_55] : memref<9x8x8xf32, #tpu.memory_space<vmem>>, vector<1x8x8xf32>
    %100 = vector.shape_cast %99 : vector<1x8x8xf32> to vector<8x8xf32>
    %cst_56 = arith.constant dense<0.000000e+00> : vector<8x512xf32>
    %101 = tpu.matmul %100, %98, %cst_56 {dimension_numbers = #tpu.dot_dimension_numbers<[1], [0], [0], [1], [0, 0, 1, 1], [], []>} : vector<8x8xf32>, vector<8x512xf32>, vector<8x512xf32> -> vector<8x512xf32>
    %102 = arith.addf %92, %101 : vector<8x512xf32>
    %103 = vector.extract_strided_slice %91 {offsets = [0, 496], sizes = [8, 16], strides = [1, 1]} : vector<8x512xf32> to vector<8x16xf32>
    %104 = vector.extract_strided_slice %91 {offsets = [0, 0], sizes = [8, 496], strides = [1, 1]} : vector<8x512xf32> to vector<8x496xf32>
    %105 = tpu.concatenate %103, %104 in 1 : vector<8x16xf32>, vector<8x496xf32> -> vector<8x512xf32>
    %c1_57 = arith.constant 1 : index
    %c0_58 = arith.constant 0 : index
    %106 = vector.load %arg2[%c1_57, %c0_58] : memref<9x512xf32, #tpu.memory_space<vmem>>, vector<1x512xf32>
    %107 = vector.broadcast %106 : vector<1x512xf32> to vector<8x512xf32>
    %108 = arith.mulf %105, %107 : vector<8x512xf32>
    %c1_59 = arith.constant 1 : index
    %c0_60 = arith.constant 0 : index
    %c0_61 = arith.constant 0 : index
    %109 = vector.load %arg5[%c1_59, %c0_60, %c0_61] : memref<9x8x8xf32, #tpu.memory_space<vmem>>, vector<1x8x8xf32>
    %110 = vector.shape_cast %109 : vector<1x8x8xf32> to vector<8x8xf32>
    %cst_62 = arith.constant dense<0.000000e+00> : vector<8x512xf32>
    %111 = tpu.matmul %110, %108, %cst_62 {dimension_numbers = #tpu.dot_dimension_numbers<[1], [0], [0], [1], [0, 0, 1, 1], [], []>} : vector<8x8xf32>, vector<8x512xf32>, vector<8x512xf32> -> vector<8x512xf32>
    %112 = arith.addf %102, %111 : vector<8x512xf32>
    %113 = vector.extract_strided_slice %91 {offsets = [0, 497], sizes = [8, 15], strides = [1, 1]} : vector<8x512xf32> to vector<8x15xf32>
    %114 = vector.extract_strided_slice %91 {offsets = [0, 0], sizes = [8, 497], strides = [1, 1]} : vector<8x512xf32> to vector<8x497xf32>
    %115 = tpu.concatenate %113, %114 in 1 : vector<8x15xf32>, vector<8x497xf32> -> vector<8x512xf32>
    %c2_63 = arith.constant 2 : index
    %c0_64 = arith.constant 0 : index
    %116 = vector.load %arg2[%c2_63, %c0_64] : memref<9x512xf32, #tpu.memory_space<vmem>>, vector<1x512xf32>
    %117 = vector.broadcast %116 : vector<1x512xf32> to vector<8x512xf32>
    %118 = arith.mulf %115, %117 : vector<8x512xf32>
    %c2_65 = arith.constant 2 : index
    %c0_66 = arith.constant 0 : index
    %c0_67 = arith.constant 0 : index
    %119 = vector.load %arg5[%c2_65, %c0_66, %c0_67] : memref<9x8x8xf32, #tpu.memory_space<vmem>>, vector<1x8x8xf32>
    %120 = vector.shape_cast %119 : vector<1x8x8xf32> to vector<8x8xf32>
    %cst_68 = arith.constant dense<0.000000e+00> : vector<8x512xf32>
    %121 = tpu.matmul %120, %118, %cst_68 {dimension_numbers = #tpu.dot_dimension_numbers<[1], [0], [0], [1], [0, 0, 1, 1], [], []>} : vector<8x8xf32>, vector<8x512xf32>, vector<8x512xf32> -> vector<8x512xf32>
    %122 = arith.addf %112, %121 : vector<8x512xf32>
    %123 = vector.extract_strided_slice %91 {offsets = [0, 511], sizes = [8, 1], strides = [1, 1]} : vector<8x512xf32> to vector<8x1xf32>
    %124 = vector.extract_strided_slice %91 {offsets = [0, 0], sizes = [8, 511], strides = [1, 1]} : vector<8x512xf32> to vector<8x511xf32>
    %125 = tpu.concatenate %123, %124 in 1 : vector<8x1xf32>, vector<8x511xf32> -> vector<8x512xf32>
    %c3_69 = arith.constant 3 : index
    %c0_70 = arith.constant 0 : index
    %126 = vector.load %arg2[%c3_69, %c0_70] : memref<9x512xf32, #tpu.memory_space<vmem>>, vector<1x512xf32>
    %127 = vector.broadcast %126 : vector<1x512xf32> to vector<8x512xf32>
    %128 = arith.mulf %125, %127 : vector<8x512xf32>
    %c3_71 = arith.constant 3 : index
    %c0_72 = arith.constant 0 : index
    %c0_73 = arith.constant 0 : index
    %129 = vector.load %arg5[%c3_71, %c0_72, %c0_73] : memref<9x8x8xf32, #tpu.memory_space<vmem>>, vector<1x8x8xf32>
    %130 = vector.shape_cast %129 : vector<1x8x8xf32> to vector<8x8xf32>
    %cst_74 = arith.constant dense<0.000000e+00> : vector<8x512xf32>
    %131 = tpu.matmul %130, %128, %cst_74 {dimension_numbers = #tpu.dot_dimension_numbers<[1], [0], [0], [1], [0, 0, 1, 1], [], []>} : vector<8x8xf32>, vector<8x512xf32>, vector<8x512xf32> -> vector<8x512xf32>
    %132 = arith.addf %122, %131 : vector<8x512xf32>
    %c4_75 = arith.constant 4 : index
    %c0_76 = arith.constant 0 : index
    %c0_77 = arith.constant 0 : index
    %133 = vector.load %arg5[%c4_75, %c0_76, %c0_77] : memref<9x8x8xf32, #tpu.memory_space<vmem>>, vector<1x8x8xf32>
    %134 = vector.shape_cast %133 : vector<1x8x8xf32> to vector<8x8xf32>
    %cst_78 = arith.constant dense<0.000000e+00> : vector<8x512xf32>
    %135 = tpu.matmul %134, %91, %cst_78 {dimension_numbers = #tpu.dot_dimension_numbers<[1], [0], [0], [1], [0, 0, 1, 1], [], []>} : vector<8x8xf32>, vector<8x512xf32>, vector<8x512xf32> -> vector<8x512xf32>
    %136 = arith.addf %132, %135 : vector<8x512xf32>
    %137 = vector.extract_strided_slice %91 {offsets = [0, 1], sizes = [8, 511], strides = [1, 1]} : vector<8x512xf32> to vector<8x511xf32>
    %138 = vector.extract_strided_slice %91 {offsets = [0, 0], sizes = [8, 1], strides = [1, 1]} : vector<8x512xf32> to vector<8x1xf32>
    %139 = tpu.concatenate %137, %138 in 1 : vector<8x511xf32>, vector<8x1xf32> -> vector<8x512xf32>
    %c5_79 = arith.constant 5 : index
    %c0_80 = arith.constant 0 : index
    %140 = vector.load %arg2[%c5_79, %c0_80] : memref<9x512xf32, #tpu.memory_space<vmem>>, vector<1x512xf32>
    %141 = vector.broadcast %140 : vector<1x512xf32> to vector<8x512xf32>
    %142 = arith.mulf %139, %141 : vector<8x512xf32>
    %c5_81 = arith.constant 5 : index
    %c0_82 = arith.constant 0 : index
    %c0_83 = arith.constant 0 : index
    %143 = vector.load %arg5[%c5_81, %c0_82, %c0_83] : memref<9x8x8xf32, #tpu.memory_space<vmem>>, vector<1x8x8xf32>
    %144 = vector.shape_cast %143 : vector<1x8x8xf32> to vector<8x8xf32>
    %cst_84 = arith.constant dense<0.000000e+00> : vector<8x512xf32>
    %145 = tpu.matmul %144, %142, %cst_84 {dimension_numbers = #tpu.dot_dimension_numbers<[1], [0], [0], [1], [0, 0, 1, 1], [], []>} : vector<8x8xf32>, vector<8x512xf32>, vector<8x512xf32> -> vector<8x512xf32>
    %146 = arith.addf %136, %145 : vector<8x512xf32>
    %147 = vector.extract_strided_slice %91 {offsets = [0, 15], sizes = [8, 497], strides = [1, 1]} : vector<8x512xf32> to vector<8x497xf32>
    %148 = vector.extract_strided_slice %91 {offsets = [0, 0], sizes = [8, 15], strides = [1, 1]} : vector<8x512xf32> to vector<8x15xf32>
    %149 = tpu.concatenate %147, %148 in 1 : vector<8x497xf32>, vector<8x15xf32> -> vector<8x512xf32>
    %c6_85 = arith.constant 6 : index
    %c0_86 = arith.constant 0 : index
    %150 = vector.load %arg2[%c6_85, %c0_86] : memref<9x512xf32, #tpu.memory_space<vmem>>, vector<1x512xf32>
    %151 = vector.broadcast %150 : vector<1x512xf32> to vector<8x512xf32>
    %152 = arith.mulf %149, %151 : vector<8x512xf32>
    %c6_87 = arith.constant 6 : index
    %c0_88 = arith.constant 0 : index
    %c0_89 = arith.constant 0 : index
    %153 = vector.load %arg5[%c6_87, %c0_88, %c0_89] : memref<9x8x8xf32, #tpu.memory_space<vmem>>, vector<1x8x8xf32>
    %154 = vector.shape_cast %153 : vector<1x8x8xf32> to vector<8x8xf32>
    %cst_90 = arith.constant dense<0.000000e+00> : vector<8x512xf32>
    %155 = tpu.matmul %154, %152, %cst_90 {dimension_numbers = #tpu.dot_dimension_numbers<[1], [0], [0], [1], [0, 0, 1, 1], [], []>} : vector<8x8xf32>, vector<8x512xf32>, vector<8x512xf32> -> vector<8x512xf32>
    %156 = arith.addf %146, %155 : vector<8x512xf32>
    %157 = vector.extract_strided_slice %91 {offsets = [0, 16], sizes = [8, 496], strides = [1, 1]} : vector<8x512xf32> to vector<8x496xf32>
    %158 = vector.extract_strided_slice %91 {offsets = [0, 0], sizes = [8, 16], strides = [1, 1]} : vector<8x512xf32> to vector<8x16xf32>
    %159 = tpu.concatenate %157, %158 in 1 : vector<8x496xf32>, vector<8x16xf32> -> vector<8x512xf32>
    %c7_91 = arith.constant 7 : index
    %c0_92 = arith.constant 0 : index
    %160 = vector.load %arg2[%c7_91, %c0_92] : memref<9x512xf32, #tpu.memory_space<vmem>>, vector<1x512xf32>
    %161 = vector.broadcast %160 : vector<1x512xf32> to vector<8x512xf32>
    %162 = arith.mulf %159, %161 : vector<8x512xf32>
    %c7_93 = arith.constant 7 : index
    %c0_94 = arith.constant 0 : index
    %c0_95 = arith.constant 0 : index
    %163 = vector.load %arg5[%c7_93, %c0_94, %c0_95] : memref<9x8x8xf32, #tpu.memory_space<vmem>>, vector<1x8x8xf32>
    %164 = vector.shape_cast %163 : vector<1x8x8xf32> to vector<8x8xf32>
    %cst_96 = arith.constant dense<0.000000e+00> : vector<8x512xf32>
    %165 = tpu.matmul %164, %162, %cst_96 {dimension_numbers = #tpu.dot_dimension_numbers<[1], [0], [0], [1], [0, 0, 1, 1], [], []>} : vector<8x8xf32>, vector<8x512xf32>, vector<8x512xf32> -> vector<8x512xf32>
    %166 = arith.addf %156, %165 : vector<8x512xf32>
    %167 = vector.extract_strided_slice %91 {offsets = [0, 17], sizes = [8, 495], strides = [1, 1]} : vector<8x512xf32> to vector<8x495xf32>
    %168 = vector.extract_strided_slice %91 {offsets = [0, 0], sizes = [8, 17], strides = [1, 1]} : vector<8x512xf32> to vector<8x17xf32>
    %169 = tpu.concatenate %167, %168 in 1 : vector<8x495xf32>, vector<8x17xf32> -> vector<8x512xf32>
    %c8_97 = arith.constant 8 : index
    %c0_98 = arith.constant 0 : index
    %170 = vector.load %arg2[%c8_97, %c0_98] : memref<9x512xf32, #tpu.memory_space<vmem>>, vector<1x512xf32>
    %171 = vector.broadcast %170 : vector<1x512xf32> to vector<8x512xf32>
    %172 = arith.mulf %169, %171 : vector<8x512xf32>
    %c8_99 = arith.constant 8 : index
    %c0_100 = arith.constant 0 : index
    %c0_101 = arith.constant 0 : index
    %173 = vector.load %arg5[%c8_99, %c0_100, %c0_101] : memref<9x8x8xf32, #tpu.memory_space<vmem>>, vector<1x8x8xf32>
    %174 = vector.shape_cast %173 : vector<1x8x8xf32> to vector<8x8xf32>
    %cst_102 = arith.constant dense<0.000000e+00> : vector<8x512xf32>
    %175 = tpu.matmul %174, %172, %cst_102 {dimension_numbers = #tpu.dot_dimension_numbers<[1], [0], [0], [1], [0, 0, 1, 1], [], []>} : vector<8x8xf32>, vector<8x512xf32>, vector<8x512xf32> -> vector<8x512xf32>
    %176 = arith.addf %166, %175 : vector<8x512xf32>
    %c0_103 = arith.constant 0 : index
    %c0_104 = arith.constant 0 : index
    %177 = vector.load %arg6[%c0_103, %c0_104] : memref<8x1xf32, #tpu.memory_space<vmem>>, vector<8x1xf32>
    %178 = vector.broadcast %177 : vector<8x1xf32> to vector<8x512xf32>
    %179 = arith.addf %176, %178 : vector<8x512xf32>
    %cst_105 = arith.constant 0.000000e+00 : f32
    %180 = vector.broadcast %cst_105 : f32 to vector<8x512xf32>
    %181 = arith.maximumf %179, %180 : vector<8x512xf32>
    %c0_106 = arith.constant 0 : index
    %c0_107 = arith.constant 0 : index
    %182 = vector.load %arg8[%c0_106, %c0_107] : memref<8x512xf32, #tpu.memory_space<vmem>>, vector<8x512xf32>
    tpu.vector_store %arg8[%c0_106, %c0_107], %181 {strides = array<i32>} : memref<8x512xf32, #tpu.memory_space<vmem>>, vector<8x512xf32>,
    return
  }
  func.func @transform_0(%arg0: i32) -> (i32, i32) {
    %c0_i32 = arith.constant 0 : i32
    %c0_i32_0 = arith.constant 0 : i32
    return %c0_i32, %arg0 : i32, i32
  }
  func.func @transform_1(%arg0: i32) -> (i32, i32) {
    %c0_i32 = arith.constant 0 : i32
    %c0_i32_0 = arith.constant 0 : i32
    %c0_i32_1 = arith.constant 0 : i32
    return %c0_i32, %c0_i32_0 : i32, i32
  }
  func.func @transform_2(%arg0: i32) -> (i32, i32, i32) {
    %c0_i32 = arith.constant 0 : i32
    %c0_i32_0 = arith.constant 0 : i32
    %c0_i32_1 = arith.constant 0 : i32
    %c0_i32_2 = arith.constant 0 : i32
    return %c0_i32, %c0_i32_0, %c0_i32_1 : i32, i32, i32
  }
  func.func @transform_3(%arg0: i32) -> (i32, i32) {
    %c0_i32 = arith.constant 0 : i32
    %c0_i32_0 = arith.constant 0 : i32
    %c0_i32_1 = arith.constant 0 : i32
    return %c0_i32, %c0_i32_0 : i32, i32
  }
  func.func @transform_4(%arg0: i32) -> (i32, i32, i32) {
    %c0_i32 = arith.constant 0 : i32
    %c0_i32_0 = arith.constant 0 : i32
    %c0_i32_1 = arith.constant 0 : i32
    %c0_i32_2 = arith.constant 0 : i32
    return %c0_i32, %c0_i32_0, %c0_i32_1 : i32, i32, i32
  }
  func.func @transform_5(%arg0: i32) -> (i32, i32) {
    %c0_i32 = arith.constant 0 : i32
    %c0_i32_0 = arith.constant 0 : i32
    %c0_i32_1 = arith.constant 0 : i32
    return %c0_i32, %c0_i32_0 : i32, i32
  }
  func.func @transform_6(%arg0: i32) -> (i32, i32) {
    %c0_i32 = arith.constant 0 : i32
    %c0_i32_0 = arith.constant 0 : i32
    return %c0_i32, %arg0 : i32, i32
  }
  func.func @transform_7(%arg0: i32) -> (i32, i32) {
    %c0_i32 = arith.constant 0 : i32
    %c0_i32_0 = arith.constant 0 : i32
    return %c0_i32, %arg0 : i32, i32
  }
}

</mosaic_0001>

<llo_original>
// kernel: layers_feature_extractor_forward.1
$region0: #{layers_feature_extractor_forward.1}
  #allocation0 [shape = 'u32[]', space=smem, size = 0x4, offset = 0x4, fixed_abs, tag = 'smem constant byte address 0x4 - core index']
  #allocation1 [shape = 'u32[144,128]{1,0:T(1,128)}', space=vmem, size = 0x12000, scoped, tag = 'internal scratch']
  %s0 = inlined_call_operand.vmem [shape: f32[4,512], index: 0, kind: input, shape index: {}]
  %s1 = inlined_call_operand.vmem [shape: f32[9,512], index: 1, kind: input, shape index: {}]
  %s2 = inlined_call_operand.vmem [shape: f32[9,8,4], index: 2, kind: input, shape index: {}]
  %s3 = inlined_call_operand.vmem [shape: f32[8,1], index: 3, kind: input, shape index: {}]
  %s4 = inlined_call_operand.vmem [shape: f32[9,8,8], index: 4, kind: input, shape index: {}]
  %s5 = inlined_call_operand.vmem [shape: f32[8,1], index: 5, kind: input, shape index: {}]
  %s6 = inlined_call_operand.vmem [shape: f32[8,512], index: 6, kind: output, shape index: {0}]
  %s7 = inlined_call_operand.vmem [shape: f32[8,512], index: 7, kind: output, shape index: {1}]
  %8 = xla_tuple %s6, %s7
  %s9 = sld [smem:[#allocation0]]
  $region42: #{layers_feature_extractor_forward.1} parent=0
    _
  %s11 = ssub.s32 1, %s9
  %s12 = scalar_select 0, %s11, %s9
  // Predicated region
  $region2: #{layers_feature_extractor_forward.1} parent=0 // pred_check
    _
  $region3: #{layers_feature_extractor_forward.1} parent=0 // pred_check_branch
    %14 = sbr.rel (0) target = $region5
  $region4: #{layers_feature_extractor_forward.1} parent=0 // pred_region
    _
  $region5: #{layers_feature_extractor_forward.1} parent=0 // pred_fallthru
    _
  // Predicated region
  $region6: #{layers_feature_extractor_forward.1} parent=0 // pred_check
    _
  $region7: #{layers_feature_extractor_forward.1} parent=0 // pred_check_branch
    %16 = sbr.rel (0) target = $region9
  $region8: #{layers_feature_extractor_forward.1} parent=0 // pred_region
    _
  $region9: #{layers_feature_extractor_forward.1} parent=0 // pred_fallthru
    _
  // Predicated region
  $region10: #{layers_feature_extractor_forward.1} parent=0 // pred_check
    _
  $region11: #{layers_feature_extractor_forward.1} parent=0 // pred_check_branch
    %18 = sbr.rel (0) target = $region13
  $region12: #{layers_feature_extractor_forward.1} parent=0 // pred_region
    _
  $region13: #{layers_feature_extractor_forward.1} parent=0 // pred_fallthru
    _
  // Predicated region
  $region14: #{layers_feature_extractor_forward.1} parent=0 // pred_check
    _
  $region15: #{layers_feature_extractor_forward.1} parent=0 // pred_check_branch
    %20 = sbr.rel (0) target = $region17
  $region16: #{layers_feature_extractor_forward.1} parent=0 // pred_region
    _
  $region17: #{layers_feature_extractor_forward.1} parent=0 // pred_fallthru
    _
  // Predicated region
  $region18: #{layers_feature_extractor_forward.1} parent=0 // pred_check
    _
  $region19: #{layers_feature_extractor_forward.1} parent=0 // pred_check_branch
    %22 = sbr.rel (0) target = $region21
  $region20: #{layers_feature_extractor_forward.1} parent=0 // pred_region
    _
  $region21: #{layers_feature_extractor_forward.1} parent=0 // pred_fallthru
    _
  // Predicated region
  $region22: #{layers_feature_extractor_forward.1} parent=0 // pred_check
    _
  $region23: #{layers_feature_extractor_forward.1} parent=0 // pred_check_branch
    %24 = sbr.rel (0) target = $region25
  $region24: #{layers_feature_extractor_forward.1} parent=0 // pred_region
    _
  $region25: #{layers_feature_extractor_forward.1} parent=0 // pred_fallthru
    _
  %v25 = vld [vmem:[%s0] sm:$0xff]
  %v26 = vld [vmem:[%s0 + $0x8] sm:$0xff]
  %v28 = vcombine.high %v26, %v26
  %29 = vrot.lane.b32.xlu0 %v28, 17
  %v30 = vpop.permute.xlu0 %29
  %v33 = vcombine.high %v25, %v25
  %34 = vrot.lane.b32.xlu0 %v25, 17
  %v35 = vpop.permute.xlu0 %34
  %36 = vrot.lane.b32.xlu0 %v33, 17
  %v37 = vpop.permute.xlu0 %36
  %38 = vrot.lane.b32.xlu0 %v26, 17
  %v39 = vpop.permute.xlu0 %38
  %vm40 = vcmask 138240
  %v41 = vsel %vm40, %v35, %v37
  %v42 = vsel %vm40, %v37, %v39
  %v43 = vsel %vm40, %v39, %v30
  %v48 = vsel %vm40, %v30, %v35
  %v49 = vld [vmem:[%s1] ss:$8 sm:$0xf]
  %v51 = vlaneseq
  %v52 = vshrl.u32 %v51, 7
  %v53 = vsub.s32 0, %v52
  %v54 = vrot.slane %v49, %v53
  %v55 = vlaneseq
  %v56 = vshrl.u32 %v55, 7
  %v57 = vsub.s32 1, %v56
  %v58 = vrot.slane %v49, %v57
  %v59 = vlaneseq
  %v60 = vshrl.u32 %v59, 7
  %v61 = vsub.s32 2, %v60
  %v62 = vrot.slane %v49, %v61
  %v63 = vlaneseq
  %v64 = vshrl.u32 %v63, 7
  %v65 = vsub.s32 3, %v64
  %v66 = vrot.slane %v49, %v65
  %v71 = vmul.f32 %v48, %v54
  %v72 = vmul.f32 %v41, %v58
  %v73 = vmul.f32 %v42, %v62
  %v74 = vmul.f32 %v43, %v66
  %v75 = vld [vmem:[%s2] sm:$0xff]
  %76 = vrot.lane.b32.xlu0 %v28, 16
  %v77 = vpop.permute.xlu0 %76
  %79 = vrot.lane.b32.xlu0 %v25, 16
  %v80 = vpop.permute.xlu0 %79
  %81 = vrot.lane.b32.xlu0 %v33, 16
  %v82 = vpop.permute.xlu0 %81
  %83 = vrot.lane.b32.xlu0 %v26, 16
  %v84 = vpop.permute.xlu0 %83
  %vm85 = vcmask 130048
  %v86 = vsel %vm85, %v80, %v82
  %v87 = vsel %vm85, %v82, %v84
  %v88 = vsel %vm85, %v84, %v77
  %v93 = vsel %vm85, %v77, %v80
  %s94 = scalar_lea.vmem %s1, 1
  %v95 = vld [vmem:[%s94] ss:$8 sm:$0xf]
  %v97 = vlaneseq
  %v98 = vshrl.u32 %v97, 7
  %v99 = vsub.s32 0, %v98
  %v100 = vrot.slane %v95, %v99
  %v101 = vlaneseq
  %v102 = vshrl.u32 %v101, 7
  %v103 = vsub.s32 1, %v102
  %v104 = vrot.slane %v95, %v103
  %v105 = vlaneseq
  %v106 = vshrl.u32 %v105, 7
  %v107 = vsub.s32 2, %v106
  %v108 = vrot.slane %v95, %v107
  %v109 = vlaneseq
  %v110 = vshrl.u32 %v109, 7
  %v111 = vsub.s32 3, %v110
  %v112 = vrot.slane %v95, %v111
  %v117 = vmul.f32 %v93, %v100
  %v118 = vmul.f32 %v86, %v104
  %v119 = vmul.f32 %v87, %v108
  %v120 = vmul.f32 %v88, %v112
  %s121 = scalar_lea.vmem %s2, 8
  %v122 = vld [vmem:[%s121] sm:$0xff]
  %vm123 = vcmask 31744
  %v125 = vsel %vm123, %v122, 0
  %vm127 = vcmask 1043456
  %v129 = vsel %vm127, %v117, 0
  %v132 = vsel %vm127, %v118, 0
  %v135 = vsel %vm127, %v119, 0
  %v138 = vsel %vm127, %v120, 0
  %140 = vmatprep.subr.mxu0 %v132
  %141 = vmatpush1.msra.mxu0 %v129
  %142 = vmatprep.subr.mxu0 0.0
  %143 = vmatpush1.msra.mxu0 0.0
  %144 = vmatprep.subr.mxu0 0.0
  %145 = vmatpush1.msra.mxu0 0.0
  %146 = vmatprep.subr.mxu0 0.0
  %147 = vmatpush1.msra.mxu0 0.0
  %148 = vmatprep.subr.mxu0 0.0
  %149 = vmatpush1.msra.mxu0 0.0
  %150 = vmatprep.subr.mxu0 0.0
  %151 = vmatpush1.msra.mxu0 0.0
  %152 = vmatprep.subr.mxu0 0.0
  %153 = vmatpush1.msra.mxu0 0.0
  %154 = vmatprep.subr.mxu0 0.0
  %155 = vmatpush1.msra.mxu0 0.0
  %156 = vmatprep.subr.mxu0 0.0
  %157 = vmatpush1.msra.mxu0 0.0
  %158 = vmatprep.subr.mxu0 0.0
  %159 = vmatpush1.msra.mxu0 0.0
  %160 = vmatprep.subr.mxu0 0.0
  %161 = vmatpush1.msra.mxu0 0.0
  %162 = vmatprep.subr.mxu0 0.0
  %163 = vmatpush1.msra.mxu0 0.0
  %164 = vmatprep.subr.mxu0 0.0
  %165 = vmatpush1.msra.mxu0 0.0
  %166 = vmatprep.subr.mxu0 0.0
  %167 = vmatpush1.msra.mxu0 0.0
  %168 = vmatprep.subr.mxu0 0.0
  %169 = vmatpush1.msra.mxu0 0.0
  %170 = vmatprep.subr.mxu0 0.0
  %171 = vmatpush1.msra.mxu0 0.0
  %172 = vmatprep.subr.mxu0 0.0
  %173 = vmatpush1.msra.mxu0 0.0
  %174 = vmatprep.subr.mxu0 0.0
  %175 = vmatpush1.msra.mxu0 0.0
  %176 = vmatprep.subr.mxu0 0.0
  %177 = vmatpush1.msra.mxu0 0.0
  %178 = vmatprep.subr.mxu0 0.0
  %179 = vmatpush1.msra.mxu0 0.0
  %180 = vmatprep.subr.mxu0 0.0
  %181 = vmatpush1.msra.mxu0 0.0
  %182 = vmatprep.subr.mxu0 0.0
  %183 = vmatpush1.msra.mxu0 0.0
  %184 = vmatprep.subr.mxu0 0.0
  %185 = vmatpush1.msra.mxu0 0.0
  %186 = vmatprep.subr.mxu0 0.0
  %187 = vmatpush1.msra.mxu0 0.0
  %188 = vmatprep.subr.mxu0 0.0
  %189 = vmatpush1.msra.mxu0 0.0
  %190 = vmatprep.subr.mxu0 0.0
  %191 = vmatpush1.msra.mxu0 0.0
  %192 = vmatprep.subr.mxu0 0.0
  %193 = vmatpush1.msra.mxu0 0.0
  %194 = vmatprep.subr.mxu0 0.0
  %195 = vmatpush1.msra.mxu0 0.0
  %196 = vmatprep.subr.mxu0 0.0
  %197 = vmatpush1.msra.mxu0 0.0
  %198 = vmatprep.subr.mxu0 0.0
  %199 = vmatpush1.msra.mxu0 0.0
  %200 = vmatprep.subr.mxu0 0.0
  %201 = vmatpush1.msra.mxu0 0.0
  %202 = vmatprep.subr.mxu0 0.0
  %203 = vmatpush1.msra.mxu0 0.0
  %204 = vmatprep.mubr.f32.mxu0 0.0
  %205 = vmatmul.mubr.f32.gmra.mrb[0].mxu0 %v125
  %v206 = vpop.f32.mrb[0].mxu0
  %v207 = vadd.f32 0.0, %v206
  %v208 = vpop.f32.mrb[0].mxu0
  %v209 = vadd.f32 0.0, %v208
  %210 = vdwg.mxu0
  %211 = vmatprep.subr.mxu0 %v138
  %212 = vmatpush1.msra.mxu0 %v135
  %213 = vmatprep.subr.mxu0 0.0
  %214 = vmatpush1.msra.mxu0 0.0
  %215 = vmatprep.subr.mxu0 0.0
  %216 = vmatpush1.msra.mxu0 0.0
  %217 = vmatprep.subr.mxu0 0.0
  %218 = vmatpush1.msra.mxu0 0.0
  %219 = vmatprep.subr.mxu0 0.0
  %220 = vmatpush1.msra.mxu0 0.0
  %221 = vmatprep.subr.mxu0 0.0
  %222 = vmatpush1.msra.mxu0 0.0
  %223 = vmatprep.subr.mxu0 0.0
  %224 = vmatpush1.msra.mxu0 0.0
  %225 = vmatprep.subr.mxu0 0.0
  %226 = vmatpush1.msra.mxu0 0.0
  %227 = vmatprep.subr.mxu0 0.0
  %228 = vmatpush1.msra.mxu0 0.0
  %229 = vmatprep.subr.mxu0 0.0
  %230 = vmatpush1.msra.mxu0 0.0
  %231 = vmatprep.subr.mxu0 0.0
  %232 = vmatpush1.msra.mxu0 0.0
  %233 = vmatprep.subr.mxu0 0.0
  %234 = vmatpush1.msra.mxu0 0.0
  %235 = vmatprep.subr.mxu0 0.0
  %236 = vmatpush1.msra.mxu0 0.0
  %237 = vmatprep.subr.mxu0 0.0
  %238 = vmatpush1.msra.mxu0 0.0
  %239 = vmatprep.subr.mxu0 0.0
  %240 = vmatpush1.msra.mxu0 0.0
  %241 = vmatprep.subr.mxu0 0.0
  %242 = vmatpush1.msra.mxu0 0.0
  %243 = vmatprep.subr.mxu0 0.0
  %244 = vmatpush1.msra.mxu0 0.0
  %245 = vmatprep.subr.mxu0 0.0
  %246 = vmatpush1.msra.mxu0 0.0
  %247 = vmatprep.subr.mxu0 0.0
  %248 = vmatpush1.msra.mxu0 0.0
  %249 = vmatprep.subr.mxu0 0.0
  %250 = vmatpush1.msra.mxu0 0.0
  %251 = vmatprep.subr.mxu0 0.0
  %252 = vmatpush1.msra.mxu0 0.0
  %253 = vmatprep.subr.mxu0 0.0
  %254 = vmatpush1.msra.mxu0 0.0
  %255 = vmatprep.subr.mxu0 0.0
  %256 = vmatpush1.msra.mxu0 0.0
  %257 = vmatprep.subr.mxu0 0.0
  %258 = vmatpush1.msra.mxu0 0.0
  %259 = vmatprep.subr.mxu0 0.0
  %260 = vmatpush1.msra.mxu0 0.0
  %261 = vmatprep.subr.mxu0 0.0
  %262 = vmatpush1.msra.mxu0 0.0
  %263 = vmatprep.subr.mxu0 0.0
  %264 = vmatpush1.msra.mxu0 0.0
  %265 = vmatprep.subr.mxu0 0.0
  %266 = vmatpush1.msra.mxu0 0.0
  %267 = vmatprep.subr.mxu0 0.0
  %268 = vmatpush1.msra.mxu0 0.0
  %269 = vmatprep.subr.mxu0 0.0
  %270 = vmatpush1.msra.mxu0 0.0
  %271 = vmatprep.subr.mxu0 0.0
  %272 = vmatpush1.msra.mxu0 0.0
  %273 = vmatprep.subr.mxu0 0.0
  %274 = vmatpush1.msra.mxu0 0.0
  %275 = vmatprep.mubr.f32.mxu0 0.0
  %276 = vmatmul.mubr.f32.gmra.mrb[0].mxu0 %v125
  %v277 = vpop.f32.mrb[0].mxu0
  %v278 = vadd.f32 0.0, %v277
  %v279 = vpop.f32.mrb[0].mxu0
  %v280 = vadd.f32 0.0, %v279
  %281 = vdwg.mxu0
  %v283 = vsel %vm123, %v75, 0
  %v286 = vsel %vm127, %v71, 0
  %v289 = vsel %vm127, %v72, 0
  %v292 = vsel %vm127, %v73, 0
  %v295 = vsel %vm127, %v74, 0
  %297 = vmatprep.subr.mxu0 %v289
  %298 = vmatpush1.msra.mxu0 %v286
  %299 = vmatprep.subr.mxu0 0.0
  %300 = vmatpush1.msra.mxu0 0.0
  %301 = vmatprep.subr.mxu0 0.0
  %302 = vmatpush1.msra.mxu0 0.0
  %303 = vmatprep.subr.mxu0 0.0
  %304 = vmatpush1.msra.mxu0 0.0
  %305 = vmatprep.subr.mxu0 0.0
  %306 = vmatpush1.msra.mxu0 0.0
  %307 = vmatprep.subr.mxu0 0.0
  %308 = vmatpush1.msra.mxu0 0.0
  %309 = vmatprep.subr.mxu0 0.0
  %310 = vmatpush1.msra.mxu0 0.0
  %311 = vmatprep.subr.mxu0 0.0
  %312 = vmatpush1.msra.mxu0 0.0
  %313 = vmatprep.subr.mxu0 0.0
  %314 = vmatpush1.msra.mxu0 0.0
  %315 = vmatprep.subr.mxu0 0.0
  %316 = vmatpush1.msra.mxu0 0.0
  %317 = vmatprep.subr.mxu0 0.0
  %318 = vmatpush1.msra.mxu0 0.0
  %319 = vmatprep.subr.mxu0 0.0
  %320 = vmatpush1.msra.mxu0 0.0
  %321 = vmatprep.subr.mxu0 0.0
  %322 = vmatpush1.msra.mxu0 0.0
  %323 = vmatprep.subr.mxu0 0.0
  %324 = vmatpush1.msra.mxu0 0.0
  %325 = vmatprep.subr.mxu0 0.0
  %326 = vmatpush1.msra.mxu0 0.0
  %327 = vmatprep.subr.mxu0 0.0
  %328 = vmatpush1.msra.mxu0 0.0
  %329 = vmatprep.subr.mxu0 0.0
  %330 = vmatpush1.msra.mxu0 0.0
  %331 = vmatprep.subr.mxu0 0.0
  %332 = vmatpush1.msra.mxu0 0.0
  %333 = vmatprep.subr.mxu0 0.0
  %334 = vmatpush1.msra.mxu0 0.0
  %335 = vmatprep.subr.mxu0 0.0
  %336 = vmatpush1.msra.mxu0 0.0
  %337 = vmatprep.subr.mxu0 0.0
  %338 = vmatpush1.msra.mxu0 0.0
  %339 = vmatprep.subr.mxu0 0.0
  %340 = vmatpush1.msra.mxu0 0.0
  %341 = vmatprep.subr.mxu0 0.0
  %342 = vmatpush1.msra.mxu0 0.0
  %343 = vmatprep.subr.mxu0 0.0
  %344 = vmatpush1.msra.mxu0 0.0
  %345 = vmatprep.subr.mxu0 0.0
  %346 = vmatpush1.msra.mxu0 0.0
  %347 = vmatprep.subr.mxu0 0.0
  %348 = vmatpush1.msra.mxu0 0.0
  %349 = vmatprep.subr.mxu0 0.0
  %350 = vmatpush1.msra.mxu0 0.0
  %351 = vmatprep.subr.mxu0 0.0
  %352 = vmatpush1.msra.mxu0 0.0
  %353 = vmatprep.subr.mxu0 0.0
  %354 = vmatpush1.msra.mxu0 0.0
  %355 = vmatprep.subr.mxu0 0.0
  %356 = vmatpush1.msra.mxu0 0.0
  %357 = vmatprep.subr.mxu0 0.0
  %358 = vmatpush1.msra.mxu0 0.0
  %359 = vmatprep.subr.mxu0 0.0
  %360 = vmatpush1.msra.mxu0 0.0
  %361 = vmatprep.mubr.f32.mxu0 0.0
  %362 = vmatmul.mubr.f32.gmra.mrb[0].mxu0 %v283
  %v363 = vpop.f32.mrb[0].mxu0
  %v364 = vadd.f32 %v207, %v363
  %v365 = vpop.f32.mrb[0].mxu0
  %v366 = vadd.f32 %v209, %v365
  %367 = vdwg.mxu0
  %368 = vmatprep.subr.mxu0 %v295
  %369 = vmatpush1.msra.mxu0 %v292
  %370 = vmatprep.subr.mxu0 0.0
  %371 = vmatpush1.msra.mxu0 0.0
  %372 = vmatprep.subr.mxu0 0.0
  %373 = vmatpush1.msra.mxu0 0.0
  %374 = vmatprep.subr.mxu0 0.0
  %375 = vmatpush1.msra.mxu0 0.0
  %376 = vmatprep.subr.mxu0 0.0
  %377 = vmatpush1.msra.mxu0 0.0
  %378 = vmatprep.subr.mxu0 0.0
  %379 = vmatpush1.msra.mxu0 0.0
  %380 = vmatprep.subr.mxu0 0.0
  %381 = vmatpush1.msra.mxu0 0.0
  %382 = vmatprep.subr.mxu0 0.0
  %383 = vmatpush1.msra.mxu0 0.0
  %384 = vmatprep.subr.mxu0 0.0
  %385 = vmatpush1.msra.mxu0 0.0
  %386 = vmatprep.subr.mxu0 0.0
  %387 = vmatpush1.msra.mxu0 0.0
  %388 = vmatprep.subr.mxu0 0.0
  %389 = vmatpush1.msra.mxu0 0.0
  %390 = vmatprep.subr.mxu0 0.0
  %391 = vmatpush1.msra.mxu0 0.0
  %392 = vmatprep.subr.mxu0 0.0
  %393 = vmatpush1.msra.mxu0 0.0
  %394 = vmatprep.subr.mxu0 0.0
  %395 = vmatpush1.msra.mxu0 0.0
  %396 = vmatprep.subr.mxu0 0.0
  %397 = vmatpush1.msra.mxu0 0.0
  %398 = vmatprep.subr.mxu0 0.0
  %399 = vmatpush1.msra.mxu0 0.0
  %400 = vmatprep.subr.mxu0 0.0
  %401 = vmatpush1.msra.mxu0 0.0
  %402 = vmatprep.subr.mxu0 0.0
  %403 = vmatpush1.msra.mxu0 0.0
  %404 = vmatprep.subr.mxu0 0.0
  %405 = vmatpush1.msra.mxu0 0.0
  %406 = vmatprep.subr.mxu0 0.0
  %407 = vmatpush1.msra.mxu0 0.0
  %408 = vmatprep.subr.mxu0 0.0
  %409 = vmatpush1.msra.mxu0 0.0
  %410 = vmatprep.subr.mxu0 0.0
  %411 = vmatpush1.msra.mxu0 0.0
  %412 = vmatprep.subr.mxu0 0.0
  %413 = vmatpush1.msra.mxu0 0.0
  %414 = vmatprep.subr.mxu0 0.0
  %415 = vmatpush1.msra.mxu0 0.0
  %416 = vmatprep.subr.mxu0 0.0
  %417 = vmatpush1.msra.mxu0 0.0
  %418 = vmatprep.subr.mxu0 0.0
  %419 = vmatpush1.msra.mxu0 0.0
  %420 = vmatprep.subr.mxu0 0.0
  %421 = vmatpush1.msra.mxu0 0.0
  %422 = vmatprep.subr.mxu0 0.0
  %423 = vmatpush1.msra.mxu0 0.0
  %424 = vmatprep.subr.mxu0 0.0
  %425 = vmatpush1.msra.mxu0 0.0
  %426 = vmatprep.subr.mxu0 0.0
  %427 = vmatpush1.msra.mxu0 0.0
  %428 = vmatprep.subr.mxu0 0.0
  %429 = vmatpush1.msra.mxu0 0.0
  %430 = vmatprep.subr.mxu0 0.0
  %431 = vmatpush1.msra.mxu0 0.0
  %432 = vmatprep.mubr.f32.mxu0 0.0
  %433 = vmatmul.mubr.f32.gmra.mrb[0].mxu0 %v283
  %v434 = vpop.f32.mrb[0].mxu0
  %v435 = vadd.f32 %v278, %v434
  %v436 = vpop.f32.mrb[0].mxu0
  %v437 = vadd.f32 %v280, %v436
  %438 = vdwg.mxu0
  %439 = vrot.lane.b32.xlu0 %v28, 15
  %v440 = vpop.permute.xlu0 %439
  %442 = vrot.lane.b32.xlu0 %v25, 15
  %v443 = vpop.permute.xlu0 %442
  %444 = vrot.lane.b32.xlu0 %v33, 15
  %v445 = vpop.permute.xlu0 %444
  %446 = vrot.lane.b32.xlu0 %v26, 15
  %v447 = vpop.permute.xlu0 %446
  %vm448 = vcmask 121856
  %v449 = vsel %vm448, %v443, %v445
  %v450 = vsel %vm448, %v445, %v447
  %v451 = vsel %vm448, %v447, %v440
  %v456 = vsel %vm448, %v440, %v443
  %s457 = scalar_lea.vmem %s1, 2
  %v458 = vld [vmem:[%s457] ss:$8 sm:$0xf]
  %v460 = vlaneseq
  %v461 = vshrl.u32 %v460, 7
  %v462 = vsub.s32 0, %v461
  %v463 = vrot.slane %v458, %v462
  %v464 = vlaneseq
  %v465 = vshrl.u32 %v464, 7
  %v466 = vsub.s32 1, %v465
  %v467 = vrot.slane %v458, %v466
  %v468 = vlaneseq
  %v469 = vshrl.u32 %v468, 7
  %v470 = vsub.s32 2, %v469
  %v471 = vrot.slane %v458, %v470
  %v472 = vlaneseq
  %v473 = vshrl.u32 %v472, 7
  %v474 = vsub.s32 3, %v473
  %v475 = vrot.slane %v458, %v474
  %v480 = vmul.f32 %v456, %v463
  %v481 = vmul.f32 %v449, %v467
  %v482 = vmul.f32 %v450, %v471
  %v483 = vmul.f32 %v451, %v475
  %s484 = scalar_lea.vmem %s2, 16
  %v485 = vld [vmem:[%s484] sm:$0xff]
  %v487 = vsel %vm123, %v485, 0
  %v490 = vsel %vm127, %v480, 0
  %v493 = vsel %vm127, %v481, 0
  %v496 = vsel %vm127, %v482, 0
  %v499 = vsel %vm127, %v483, 0
  %501 = vmatprep.subr.mxu0 %v493
  %502 = vmatpush1.msra.mxu0 %v490
  %503 = vmatprep.subr.mxu0 0.0
  %504 = vmatpush1.msra.mxu0 0.0
  %505 = vmatprep.subr.mxu0 0.0
  %506 = vmatpush1.msra.mxu0 0.0
  %507 = vmatprep.subr.mxu0 0.0
  %508 = vmatpush1.msra.mxu0 0.0
  %509 = vmatprep.subr.mxu0 0.0
  %510 = vmatpush1.msra.mxu0 0.0
  %511 = vmatprep.subr.mxu0 0.0
  %512 = vmatpush1.msra.mxu0 0.0
  %513 = vmatprep.subr.mxu0 0.0
  %514 = vmatpush1.msra.mxu0 0.0
  %515 = vmatprep.subr.mxu0 0.0
  %516 = vmatpush1.msra.mxu0 0.0
  %517 = vmatprep.subr.mxu0 0.0
  %518 = vmatpush1.msra.mxu0 0.0
  %519 = vmatprep.subr.mxu0 0.0
  %520 = vmatpush1.msra.mxu0 0.0
  %521 = vmatprep.subr.mxu0 0.0
  %522 = vmatpush1.msra.mxu0 0.0
  %523 = vmatprep.subr.mxu0 0.0
  %524 = vmatpush1.msra.mxu0 0.0
  %525 = vmatprep.subr.mxu0 0.0
  %526 = vmatpush1.msra.mxu0 0.0
  %527 = vmatprep.subr.mxu0 0.0
  %528 = vmatpush1.msra.mxu0 0.0
  %529 = vmatprep.subr.mxu0 0.0
  %530 = vmatpush1.msra.mxu0 0.0
  %531 = vmatprep.subr.mxu0 0.0
  %532 = vmatpush1.msra.mxu0 0.0
  %533 = vmatprep.subr.mxu0 0.0
  %534 = vmatpush1.msra.mxu0 0.0
  %535 = vmatprep.subr.mxu0 0.0
  %536 = vmatpush1.msra.mxu0 0.0
  %537 = vmatprep.subr.mxu0 0.0
  %538 = vmatpush1.msra.mxu0 0.0
  %539 = vmatprep.subr.mxu0 0.0
  %540 = vmatpush1.msra.mxu0 0.0
  %541 = vmatprep.subr.mxu0 0.0
  %542 = vmatpush1.msra.mxu0 0.0
  %543 = vmatprep.subr.mxu0 0.0
  %544 = vmatpush1.msra.mxu0 0.0
  %545 = vmatprep.subr.mxu0 0.0
  %546 = vmatpush1.msra.mxu0 0.0
  %547 = vmatprep.subr.mxu0 0.0
  %548 = vmatpush1.msra.mxu0 0.0
  %549 = vmatprep.subr.mxu0 0.0
  %550 = vmatpush1.msra.mxu0 0.0
  %551 = vmatprep.subr.mxu0 0.0
  %552 = vmatpush1.msra.mxu0 0.0
  %553 = vmatprep.subr.mxu0 0.0
  %554 = vmatpush1.msra.mxu0 0.0
  %555 = vmatprep.subr.mxu0 0.0
  %556 = vmatpush1.msra.mxu0 0.0
  %557 = vmatprep.subr.mxu0 0.0
  %558 = vmatpush1.msra.mxu0 0.0
  %559 = vmatprep.subr.mxu0 0.0
  %560 = vmatpush1.msra.mxu0 0.0
  %561 = vmatprep.subr.mxu0 0.0
  %562 = vmatpush1.msra.mxu0 0.0
  %563 = vmatprep.subr.mxu0 0.0
  %564 = vmatpush1.msra.mxu0 0.0
  %565 = vmatprep.mubr.f32.mxu0 0.0
  %566 = vmatmul.mubr.f32.gmra.mrb[0].mxu0 %v487
  %v567 = vpop.f32.mrb[0].mxu0
  %v568 = vadd.f32 0.0, %v567
  %v569 = vpop.f32.mrb[0].mxu0
  %v570 = vadd.f32 0.0, %v569
  %571 = vdwg.mxu0
  %572 = vmatprep.subr.mxu0 %v499
  %573 = vmatpush1.msra.mxu0 %v496
  %574 = vmatprep.subr.mxu0 0.0
  %575 = vmatpush1.msra.mxu0 0.0
  %576 = vmatprep.subr.mxu0 0.0
  %577 = vmatpush1.msra.mxu0 0.0
  %578 = vmatprep.subr.mxu0 0.0
  %579 = vmatpush1.msra.mxu0 0.0
  %580 = vmatprep.subr.mxu0 0.0
  %581 = vmatpush1.msra.mxu0 0.0
  %582 = vmatprep.subr.mxu0 0.0
  %583 = vmatpush1.msra.mxu0 0.0
  %584 = vmatprep.subr.mxu0 0.0
  %585 = vmatpush1.msra.mxu0 0.0
  %586 = vmatprep.subr.mxu0 0.0
  %587 = vmatpush1.msra.mxu0 0.0
  %588 = vmatprep.subr.mxu0 0.0
  %589 = vmatpush1.msra.mxu0 0.0
  %590 = vmatprep.subr.mxu0 0.0
  %591 = vmatpush1.msra.mxu0 0.0
  %592 = vmatprep.subr.mxu0 0.0
  %593 = vmatpush1.msra.mxu0 0.0
  %594 = vmatprep.subr.mxu0 0.0
  %595 = vmatpush1.msra.mxu0 0.0
  %596 = vmatprep.subr.mxu0 0.0
  %597 = vmatpush1.msra.mxu0 0.0
  %598 = vmatprep.subr.mxu0 0.0
  %599 = vmatpush1.msra.mxu0 0.0
  %600 = vmatprep.subr.mxu0 0.0
  %601 = vmatpush1.msra.mxu0 0.0
  %602 = vmatprep.subr.mxu0 0.0
  %603 = vmatpush1.msra.mxu0 0.0
  %604 = vmatprep.subr.mxu0 0.0
  %605 = vmatpush1.msra.mxu0 0.0
  %606 = vmatprep.subr.mxu0 0.0
  %607 = vmatpush1.msra.mxu0 0.0
  %608 = vmatprep.subr.mxu0 0.0
  %609 = vmatpush1.msra.mxu0 0.0
  %610 = vmatprep.subr.mxu0 0.0
  %611 = vmatpush1.msra.mxu0 0.0
  %612 = vmatprep.subr.mxu0 0.0
  %613 = vmatpush1.msra.mxu0 0.0
  %614 = vmatprep.subr.mxu0 0.0
  %615 = vmatpush1.msra.mxu0 0.0
  %616 = vmatprep.subr.mxu0 0.0
  %617 = vmatpush1.msra.mxu0 0.0
  %618 = vmatprep.subr.mxu0 0.0
  %619 = vmatpush1.msra.mxu0 0.0
  %620 = vmatprep.subr.mxu0 0.0
  %621 = vmatpush1.msra.mxu0 0.0
  %622 = vmatprep.subr.mxu0 0.0
  %623 = vmatpush1.msra.mxu0 0.0
  %624 = vmatprep.subr.mxu0 0.0
  %625 = vmatpush1.msra.mxu0 0.0
  %626 = vmatprep.subr.mxu0 0.0
  %627 = vmatpush1.msra.mxu0 0.0
  %628 = vmatprep.subr.mxu0 0.0
  %629 = vmatpush1.msra.mxu0 0.0
  %630 = vmatprep.subr.mxu0 0.0
  %631 = vmatpush1.msra.mxu0 0.0
  %632 = vmatprep.subr.mxu0 0.0
  %633 = vmatpush1.msra.mxu0 0.0
  %634 = vmatprep.subr.mxu0 0.0
  %635 = vmatpush1.msra.mxu0 0.0
  %636 = vmatprep.mubr.f32.mxu0 0.0
  %637 = vmatmul.mubr.f32.gmra.mrb[0].mxu0 %v487
  %v638 = vpop.f32.mrb[0].mxu0
  %v639 = vadd.f32 0.0, %v638
  %v640 = vpop.f32.mrb[0].mxu0
  %v641 = vadd.f32 0.0, %v640
  %642 = vdwg.mxu0
  %v643 = vadd.f32 %v364, %v568
  %v644 = vadd.f32 %v366, %v570
  %v645 = vadd.f32 %v435, %v639
  %v646 = vadd.f32 %v437, %v641
  %647 = vrot.lane.b32.xlu0 %v28, 1
  %v648 = vpop.permute.xlu0 %647
  %650 = vrot.lane.b32.xlu0 %v25, 1
  %v651 = vpop.permute.xlu0 %650
  %652 = vrot.lane.b32.xlu0 %v33, 1
  %v653 = vpop.permute.xlu0 %652
  %654 = vrot.lane.b32.xlu0 %v26, 1
  %v655 = vpop.permute.xlu0 %654
  %vm656 = vcmask 7168
  %v657 = vsel %vm656, %v651, %v653
  %v658 = vsel %vm656, %v653, %v655
  %v659 = vsel %vm656, %v655, %v648
  %v664 = vsel %vm656, %v648, %v651
  %s665 = scalar_lea.vmem %s1, 3
  %v666 = vld [vmem:[%s665] ss:$8 sm:$0xf]
  %v668 = vlaneseq
  %v669 = vshrl.u32 %v668, 7
  %v670 = vsub.s32 0, %v669
  %v671 = vrot.slane %v666, %v670
  %v672 = vlaneseq
  %v673 = vshrl.u32 %v672, 7
  %v674 = vsub.s32 1, %v673
  %v675 = vrot.slane %v666, %v674
  %v676 = vlaneseq
  %v677 = vshrl.u32 %v676, 7
  %v678 = vsub.s32 2, %v677
  %v679 = vrot.slane %v666, %v678
  %v680 = vlaneseq
  %v681 = vshrl.u32 %v680, 7
  %v682 = vsub.s32 3, %v681
  %v683 = vrot.slane %v666, %v682
  %v688 = vmul.f32 %v664, %v671
  %v689 = vmul.f32 %v657, %v675
  %v690 = vmul.f32 %v658, %v679
  %v691 = vmul.f32 %v659, %v683
  %s692 = scalar_lea.vmem %s2, 24
  %v693 = vld [vmem:[%s692] sm:$0xff]
  %v695 = vsel %vm123, %v693, 0
  %v698 = vsel %vm127, %v688, 0
  %v701 = vsel %vm127, %v689, 0
  %v704 = vsel %vm127, %v690, 0
  %v707 = vsel %vm127, %v691, 0
  %709 = vmatprep.subr.mxu0 %v701
  %710 = vmatpush1.msra.mxu0 %v698
  %711 = vmatprep.subr.mxu0 0.0
  %712 = vmatpush1.msra.mxu0 0.0
  %713 = vmatprep.subr.mxu0 0.0
  %714 = vmatpush1.msra.mxu0 0.0
  %715 = vmatprep.subr.mxu0 0.0
  %716 = vmatpush1.msra.mxu0 0.0
  %717 = vmatprep.subr.mxu0 0.0
  %718 = vmatpush1.msra.mxu0 0.0
  %719 = vmatprep.subr.mxu0 0.0
  %720 = vmatpush1.msra.mxu0 0.0
  %721 = vmatprep.subr.mxu0 0.0
  %722 = vmatpush1.msra.mxu0 0.0
  %723 = vmatprep.subr.mxu0 0.0
  %724 = vmatpush1.msra.mxu0 0.0
  %725 = vmatprep.subr.mxu0 0.0
  %726 = vmatpush1.msra.mxu0 0.0
  %727 = vmatprep.subr.mxu0 0.0
  %728 = vmatpush1.msra.mxu0 0.0
  %729 = vmatprep.subr.mxu0 0.0
  %730 = vmatpush1.msra.mxu0 0.0
  %731 = vmatprep.subr.mxu0 0.0
  %732 = vmatpush1.msra.mxu0 0.0
  %733 = vmatprep.subr.mxu0 0.0
  %734 = vmatpush1.msra.mxu0 0.0
  %735 = vmatprep.subr.mxu0 0.0
  %736 = vmatpush1.msra.mxu0 0.0
  %737 = vmatprep.subr.mxu0 0.0
  %738 = vmatpush1.msra.mxu0 0.0
  %739 = vmatprep.subr.mxu0 0.0
  %740 = vmatpush1.msra.mxu0 0.0
  %741 = vmatprep.subr.mxu0 0.0
  %742 = vmatpush1.msra.mxu0 0.0
  %743 = vmatprep.subr.mxu0 0.0
  %744 = vmatpush1.msra.mxu0 0.0
  %745 = vmatprep.subr.mxu0 0.0
  %746 = vmatpush1.msra.mxu0 0.0
  %747 = vmatprep.subr.mxu0 0.0
  %748 = vmatpush1.msra.mxu0 0.0
  %749 = vmatprep.subr.mxu0 0.0
  %750 = vmatpush1.msra.mxu0 0.0
  %751 = vmatprep.subr.mxu0 0.0
  %752 = vmatpush1.msra.mxu0 0.0
  %753 = vmatprep.subr.mxu0 0.0
  %754 = vmatpush1.msra.mxu0 0.0
  %755 = vmatprep.subr.mxu0 0.0
  %756 = vmatpush1.msra.mxu0 0.0
  %757 = vmatprep.subr.mxu0 0.0
  %758 = vmatpush1.msra.mxu0 0.0
  %759 = vmatprep.subr.mxu0 0.0
  %760 = vmatpush1.msra.mxu0 0.0
  %761 = vmatprep.subr.mxu0 0.0
  %762 = vmatpush1.msra.mxu0 0.0
  %763 = vmatprep.subr.mxu0 0.0
  %764 = vmatpush1.msra.mxu0 0.0
  %765 = vmatprep.subr.mxu0 0.0
  %766 = vmatpush1.msra.mxu0 0.0
  %767 = vmatprep.subr.mxu0 0.0
  %768 = vmatpush1.msra.mxu0 0.0
  %769 = vmatprep.subr.mxu0 0.0
  %770 = vmatpush1.msra.mxu0 0.0
  %771 = vmatprep.subr.mxu0 0.0
  %772 = vmatpush1.msra.mxu0 0.0
  %773 = vmatprep.mubr.f32.mxu0 0.0
  %774 = vmatmul.mubr.f32.gmra.mrb[0].mxu0 %v695
  %v775 = vpop.f32.mrb[0].mxu0
  %v776 = vadd.f32 0.0, %v775
  %v777 = vpop.f32.mrb[0].mxu0
  %v778 = vadd.f32 0.0, %v777
  %779 = vdwg.mxu0
  %780 = vmatprep.subr.mxu0 %v707
  %781 = vmatpush1.msra.mxu0 %v704
  %782 = vmatprep.subr.mxu0 0.0
  %783 = vmatpush1.msra.mxu0 0.0
  %784 = vmatprep.subr.mxu0 0.0
  %785 = vmatpush1.msra.mxu0 0.0
  %786 = vmatprep.subr.mxu0 0.0
  %787 = vmatpush1.msra.mxu0 0.0
  %788 = vmatprep.subr.mxu0 0.0
  %789 = vmatpush1.msra.mxu0 0.0
  %790 = vmatprep.subr.mxu0 0.0
  %791 = vmatpush1.msra.mxu0 0.0
  %792 = vmatprep.subr.mxu0 0.0
  %793 = vmatpush1.msra.mxu0 0.0
  %794 = vmatprep.subr.mxu0 0.0
  %795 = vmatpush1.msra.mxu0 0.0
  %796 = vmatprep.subr.mxu0 0.0
  %797 = vmatpush1.msra.mxu0 0.0
  %798 = vmatprep.subr.mxu0 0.0
  %799 = vmatpush1.msra.mxu0 0.0
  %800 = vmatprep.subr.mxu0 0.0
  %801 = vmatpush1.msra.mxu0 0.0
  %802 = vmatprep.subr.mxu0 0.0
  %803 = vmatpush1.msra.mxu0 0.0
  %804 = vmatprep.subr.mxu0 0.0
  %805 = vmatpush1.msra.mxu0 0.0
  %806 = vmatprep.subr.mxu0 0.0
  %807 = vmatpush1.msra.mxu0 0.0
  %808 = vmatprep.subr.mxu0 0.0
  %809 = vmatpush1.msra.mxu0 0.0
  %810 = vmatprep.subr.mxu0 0.0
  %811 = vmatpush1.msra.mxu0 0.0
  %812 = vmatprep.subr.mxu0 0.0
  %813 = vmatpush1.msra.mxu0 0.0
  %814 = vmatprep.subr.mxu0 0.0
  %815 = vmatpush1.msra.mxu0 0.0
  %816 = vmatprep.subr.mxu0 0.0
  %817 = vmatpush1.msra.mxu0 0.0
  %818 = vmatprep.subr.mxu0 0.0
  %819 = vmatpush1.msra.mxu0 0.0
  %820 = vmatprep.subr.mxu0 0.0
  %821 = vmatpush1.msra.mxu0 0.0
  %822 = vmatprep.subr.mxu0 0.0
  %823 = vmatpush1.msra.mxu0 0.0
  %824 = vmatprep.subr.mxu0 0.0
  %825 = vmatpush1.msra.mxu0 0.0
  %826 = vmatprep.subr.mxu0 0.0
  %827 = vmatpush1.msra.mxu0 0.0
  %828 = vmatprep.subr.mxu0 0.0
  %829 = vmatpush1.msra.mxu0 0.0
  %830 = vmatprep.subr.mxu0 0.0
  %831 = vmatpush1.msra.mxu0 0.0
  %832 = vmatprep.subr.mxu0 0.0
  %833 = vmatpush1.msra.mxu0 0.0
  %834 = vmatprep.subr.mxu0 0.0
  %835 = vmatpush1.msra.mxu0 0.0
  %836 = vmatprep.subr.mxu0 0.0
  %837 = vmatpush1.msra.mxu0 0.0
  %838 = vmatprep.subr.mxu0 0.0
  %839 = vmatpush1.msra.mxu0 0.0
  %840 = vmatprep.subr.mxu0 0.0
  %841 = vmatpush1.msra.mxu0 0.0
  %842 = vmatprep.subr.mxu0 0.0
  %843 = vmatpush1.msra.mxu0 0.0
  %844 = vmatprep.mubr.f32.mxu0 0.0
  %845 = vmatmul.mubr.f32.gmra.mrb[0].mxu0 %v695
  %v846 = vpop.f32.mrb[0].mxu0
  %v847 = vadd.f32 0.0, %v846
  %v848 = vpop.f32.mrb[0].mxu0
  %v849 = vadd.f32 0.0, %v848
  %850 = vdwg.mxu0
  %v851 = vadd.f32 %v643, %v776
  %v852 = vadd.f32 %v644, %v778
  %v853 = vadd.f32 %v645, %v847
  %v854 = vadd.f32 %v646, %v849
  %s855 = scalar_lea.vmem %s2, 32
  %v856 = vld [vmem:[%s855] sm:$0xff]
  %v858 = vsel %vm123, %v856, 0
  %v860 = vsel %vm127, %v25, 0
  %v862 = vsel %vm127, %v33, 0
  %v864 = vsel %vm127, %v26, 0
  %v866 = vsel %vm127, %v28, 0
  %868 = vmatprep.subr.mxu0 %v862
  %869 = vmatpush1.msra.mxu0 %v860
  %870 = vmatprep.subr.mxu0 0.0
  %871 = vmatpush1.msra.mxu0 0.0
  %872 = vmatprep.subr.mxu0 0.0
  %873 = vmatpush1.msra.mxu0 0.0
  %874 = vmatprep.subr.mxu0 0.0
  %875 = vmatpush1.msra.mxu0 0.0
  %876 = vmatprep.subr.mxu0 0.0
  %877 = vmatpush1.msra.mxu0 0.0
  %878 = vmatprep.subr.mxu0 0.0
  %879 = vmatpush1.msra.mxu0 0.0
  %880 = vmatprep.subr.mxu0 0.0
  %881 = vmatpush1.msra.mxu0 0.0
  %882 = vmatprep.subr.mxu0 0.0
  %883 = vmatpush1.msra.mxu0 0.0
  %884 = vmatprep.subr.mxu0 0.0
  %885 = vmatpush1.msra.mxu0 0.0
  %886 = vmatprep.subr.mxu0 0.0
  %887 = vmatpush1.msra.mxu0 0.0
  %888 = vmatprep.subr.mxu0 0.0
  %889 = vmatpush1.msra.mxu0 0.0
  %890 = vmatprep.subr.mxu0 0.0
  %891 = vmatpush1.msra.mxu0 0.0
  %892 = vmatprep.subr.mxu0 0.0
  %893 = vmatpush1.msra.mxu0 0.0
  %894 = vmatprep.subr.mxu0 0.0
  %895 = vmatpush1.msra.mxu0 0.0
  %896 = vmatprep.subr.mxu0 0.0
  %897 = vmatpush1.msra.mxu0 0.0
  %898 = vmatprep.subr.mxu0 0.0
  %899 = vmatpush1.msra.mxu0 0.0
  %900 = vmatprep.subr.mxu0 0.0
  %901 = vmatpush1.msra.mxu0 0.0
  %902 = vmatprep.subr.mxu0 0.0
  %903 = vmatpush1.msra.mxu0 0.0
  %904 = vmatprep.subr.mxu0 0.0
  %905 = vmatpush1.msra.mxu0 0.0
  %906 = vmatprep.subr.mxu0 0.0
  %907 = vmatpush1.msra.mxu0 0.0
  %908 = vmatprep.subr.mxu0 0.0
  %909 = vmatpush1.msra.mxu0 0.0
  %910 = vmatprep.subr.mxu0 0.0
  %911 = vmatpush1.msra.mxu0 0.0
  %912 = vmatprep.subr.mxu0 0.0
  %913 = vmatpush1.msra.mxu0 0.0
  %914 = vmatprep.subr.mxu0 0.0
  %915 = vmatpush1.msra.mxu0 0.0
  %916 = vmatprep.subr.mxu0 0.0
  %917 = vmatpush1.msra.mxu0 0.0
  %918 = vmatprep.subr.mxu0 0.0
  %919 = vmatpush1.msra.mxu0 0.0
  %920 = vmatprep.subr.mxu0 0.0
  %921 = vmatpush1.msra.mxu0 0.0
  %922 = vmatprep.subr.mxu0 0.0
  %923 = vmatpush1.msra.mxu0 0.0
  %924 = vmatprep.subr.mxu0 0.0
  %925 = vmatpush1.msra.mxu0 0.0
  %926 = vmatprep.subr.mxu0 0.0
  %927 = vmatpush1.msra.mxu0 0.0
  %928 = vmatprep.subr.mxu0 0.0
  %929 = vmatpush1.msra.mxu0 0.0
  %930 = vmatprep.subr.mxu0 0.0
  %931 = vmatpush1.msra.mxu0 0.0
  %932 = vmatprep.mubr.f32.mxu0 0.0
  %933 = vmatmul.mubr.f32.gmra.mrb[0].mxu0 %v858
  %v934 = vpop.f32.mrb[0].mxu0
  %v935 = vadd.f32 0.0, %v934
  %v936 = vpop.f32.mrb[0].mxu0
  %v937 = vadd.f32 0.0, %v936
  %938 = vdwg.mxu0
  %939 = vmatprep.subr.mxu0 %v866
  %940 = vmatpush1.msra.mxu0 %v864
  %941 = vmatprep.subr.mxu0 0.0
  %942 = vmatpush1.msra.mxu0 0.0
  %943 = vmatprep.subr.mxu0 0.0
  %944 = vmatpush1.msra.mxu0 0.0
  %945 = vmatprep.subr.mxu0 0.0
  %946 = vmatpush1.msra.mxu0 0.0
  %947 = vmatprep.subr.mxu0 0.0
  %948 = vmatpush1.msra.mxu0 0.0
  %949 = vmatprep.subr.mxu0 0.0
  %950 = vmatpush1.msra.mxu0 0.0
  %951 = vmatprep.subr.mxu0 0.0
  %952 = vmatpush1.msra.mxu0 0.0
  %953 = vmatprep.subr.mxu0 0.0
  %954 = vmatpush1.msra.mxu0 0.0
  %955 = vmatprep.subr.mxu0 0.0
  %956 = vmatpush1.msra.mxu0 0.0
  %957 = vmatprep.subr.mxu0 0.0
  %958 = vmatpush1.msra.mxu0 0.0
  %959 = vmatprep.subr.mxu0 0.0
  %960 = vmatpush1.msra.mxu0 0.0
  %961 = vmatprep.subr.mxu0 0.0
  %962 = vmatpush1.msra.mxu0 0.0
  %963 = vmatprep.subr.mxu0 0.0
  %964 = vmatpush1.msra.mxu0 0.0
  %965 = vmatprep.subr.mxu0 0.0
  %966 = vmatpush1.msra.mxu0 0.0
  %967 = vmatprep.subr.mxu0 0.0
  %968 = vmatpush1.msra.mxu0 0.0
  %969 = vmatprep.subr.mxu0 0.0
  %970 = vmatpush1.msra.mxu0 0.0
  %971 = vmatprep.subr.mxu0 0.0
  %972 = vmatpush1.msra.mxu0 0.0
  %973 = vmatprep.subr.mxu0 0.0
  %974 = vmatpush1.msra.mxu0 0.0
  %975 = vmatprep.subr.mxu0 0.0
  %976 = vmatpush1.msra.mxu0 0.0
  %977 = vmatprep.subr.mxu0 0.0
  %978 = vmatpush1.msra.mxu0 0.0
  %979 = vmatprep.subr.mxu0 0.0
  %980 = vmatpush1.msra.mxu0 0.0
  %981 = vmatprep.subr.mxu0 0.0
  %982 = vmatpush1.msra.mxu0 0.0
  %983 = vmatprep.subr.mxu0 0.0
  %984 = vmatpush1.msra.mxu0 0.0
  %985 = vmatprep.subr.mxu0 0.0
  %986 = vmatpush1.msra.mxu0 0.0
  %987 = vmatprep.subr.mxu0 0.0
  %988 = vmatpush1.msra.mxu0 0.0
  %989 = vmatprep.subr.mxu0 0.0
  %990 = vmatpush1.msra.mxu0 0.0
  %991 = vmatprep.subr.mxu0 0.0
  %992 = vmatpush1.msra.mxu0 0.0
  %993 = vmatprep.subr.mxu0 0.0
  %994 = vmatpush1.msra.mxu0 0.0
  %995 = vmatprep.subr.mxu0 0.0
  %996 = vmatpush1.msra.mxu0 0.0
  %997 = vmatprep.subr.mxu0 0.0
  %998 = vmatpush1.msra.mxu0 0.0
  %999 = vmatprep.subr.mxu0 0.0
  %1000 = vmatpush1.msra.mxu0 0.0
  %1001 = vmatprep.subr.mxu0 0.0
  %1002 = vmatpush1.msra.mxu0 0.0
  %1003 = vmatprep.mubr.f32.mxu0 0.0
  %1004 = vmatmul.mubr.f32.gmra.mrb[0].mxu0 %v858
  %v1005 = vpop.f32.mrb[0].mxu0
  %v1006 = vadd.f32 0.0, %v1005
  %v1007 = vpop.f32.mrb[0].mxu0
  %v1008 = vadd.f32 0.0, %v1007
  %1009 = vdwg.mxu0
  %v1010 = vadd.f32 %v851, %v935
  %v1011 = vadd.f32 %v852, %v937
  %v1012 = vadd.f32 %v853, %v1006
  %v1013 = vadd.f32 %v854, %v1008
  %1014 = vrot.lane.b32.xlu0 %v25, 127
  %v1015 = vpop.permute.xlu0 %1014
  %1016 = vrot.lane.b32.xlu0 %v33, 127
  %v1017 = vpop.permute.xlu0 %1016
  %1018 = vrot.lane.b32.xlu0 %v26, 127
  %v1019 = vpop.permute.xlu0 %1018
  %1020 = vrot.lane.b32.xlu0 %v28, 127
  %v1021 = vpop.permute.xlu0 %1020
  %vm1022 = vcmask 1039360
  %v1023 = vsel %vm1022, %v1015, %v1017
  %v1024 = vsel %vm1022, %v1017, %v1019
  %v1025 = vsel %vm1022, %v1019, %v1021
  %v1031 = vsel %vm1022, %v1021, %v1015
  %s1032 = scalar_lea.vmem %s1, 5
  %v1033 = vld [vmem:[%s1032] ss:$8 sm:$0xf]
  %v1035 = vlaneseq
  %v1036 = vshrl.u32 %v1035, 7
  %v1037 = vsub.s32 0, %v1036
  %v1038 = vrot.slane %v1033, %v1037
  %v1039 = vlaneseq
  %v1040 = vshrl.u32 %v1039, 7
  %v1041 = vsub.s32 1, %v1040
  %v1042 = vrot.slane %v1033, %v1041
  %v1043 = vlaneseq
  %v1044 = vshrl.u32 %v1043, 7
  %v1045 = vsub.s32 2, %v1044
  %v1046 = vrot.slane %v1033, %v1045
  %v1047 = vlaneseq
  %v1048 = vshrl.u32 %v1047, 7
  %v1049 = vsub.s32 3, %v1048
  %v1050 = vrot.slane %v1033, %v1049
  %v1055 = vmul.f32 %v1023, %v1038
  %v1056 = vmul.f32 %v1024, %v1042
  %v1057 = vmul.f32 %v1025, %v1046
  %v1058 = vmul.f32 %v1031, %v1050
  %s1059 = scalar_lea.vmem %s2, 40
  %v1060 = vld [vmem:[%s1059] sm:$0xff]
  %v1062 = vsel %vm123, %v1060, 0
  %v1065 = vsel %vm127, %v1055, 0
  %v1068 = vsel %vm127, %v1056, 0
  %v1071 = vsel %vm127, %v1057, 0
  %v1074 = vsel %vm127, %v1058, 0
  %1076 = vmatprep.subr.mxu0 %v1068
  %1077 = vmatpush1.msra.mxu0 %v1065
  %1078 = vmatprep.subr.mxu0 0.0
  %1079 = vmatpush1.msra.mxu0 0.0
  %1080 = vmatprep.subr.mxu0 0.0
  %1081 = vmatpush1.msra.mxu0 0.0
  %1082 = vmatprep.subr.mxu0 0.0
  %1083 = vmatpush1.msra.mxu0 0.0
  %1084 = vmatprep.subr.mxu0 0.0
  %1085 = vmatpush1.msra.mxu0 0.0
  %1086 = vmatprep.subr.mxu0 0.0
  %1087 = vmatpush1.msra.mxu0 0.0
  %1088 = vmatprep.subr.mxu0 0.0
  %1089 = vmatpush1.msra.mxu0 0.0
  %1090 = vmatprep.subr.mxu0 0.0
  %1091 = vmatpush1.msra.mxu0 0.0
  %1092 = vmatprep.subr.mxu0 0.0
  %1093 = vmatpush1.msra.mxu0 0.0
  %1094 = vmatprep.subr.mxu0 0.0
  %1095 = vmatpush1.msra.mxu0 0.0
  %1096 = vmatprep.subr.mxu0 0.0
  %1097 = vmatpush1.msra.mxu0 0.0
  %1098 = vmatprep.subr.mxu0 0.0
  %1099 = vmatpush1.msra.mxu0 0.0
  %1100 = vmatprep.subr.mxu0 0.0
  %1101 = vmatpush1.msra.mxu0 0.0
  %1102 = vmatprep.subr.mxu0 0.0
  %1103 = vmatpush1.msra.mxu0 0.0
  %1104 = vmatprep.subr.mxu0 0.0
  %1105 = vmatpush1.msra.mxu0 0.0
  %1106 = vmatprep.subr.mxu0 0.0
  %1107 = vmatpush1.msra.mxu0 0.0
  %1108 = vmatprep.subr.mxu0 0.0
  %1109 = vmatpush1.msra.mxu0 0.0
  %1110 = vmatprep.subr.mxu0 0.0
  %1111 = vmatpush1.msra.mxu0 0.0
  %1112 = vmatprep.subr.mxu0 0.0
  %1113 = vmatpush1.msra.mxu0 0.0
  %1114 = vmatprep.subr.mxu0 0.0
  %1115 = vmatpush1.msra.mxu0 0.0
  %1116 = vmatprep.subr.mxu0 0.0
  %1117 = vmatpush1.msra.mxu0 0.0
  %1118 = vmatprep.subr.mxu0 0.0
  %1119 = vmatpush1.msra.mxu0 0.0
  %1120 = vmatprep.subr.mxu0 0.0
  %1121 = vmatpush1.msra.mxu0 0.0
  %1122 = vmatprep.subr.mxu0 0.0
  %1123 = vmatpush1.msra.mxu0 0.0
  %1124 = vmatprep.subr.mxu0 0.0
  %1125 = vmatpush1.msra.mxu0 0.0
  %1126 = vmatprep.subr.mxu0 0.0
  %1127 = vmatpush1.msra.mxu0 0.0
  %1128 = vmatprep.subr.mxu0 0.0
  %1129 = vmatpush1.msra.mxu0 0.0
  %1130 = vmatprep.subr.mxu0 0.0
  %1131 = vmatpush1.msra.mxu0 0.0
  %1132 = vmatprep.subr.mxu0 0.0
  %1133 = vmatpush1.msra.mxu0 0.0
  %1134 = vmatprep.subr.mxu0 0.0
  %1135 = vmatpush1.msra.mxu0 0.0
  %1136 = vmatprep.subr.mxu0 0.0
  %1137 = vmatpush1.msra.mxu0 0.0
  %1138 = vmatprep.subr.mxu0 0.0
  %1139 = vmatpush1.msra.mxu0 0.0
  %1140 = vmatprep.mubr.f32.mxu0 0.0
  %1141 = vmatmul.mubr.f32.gmra.mrb[0].mxu0 %v1062
  %v1142 = vpop.f32.mrb[0].mxu0
  %v1143 = vadd.f32 0.0, %v1142
  %v1144 = vpop.f32.mrb[0].mxu0
  %v1145 = vadd.f32 0.0, %v1144
  %1146 = vdwg.mxu0
  %1147 = vmatprep.subr.mxu0 %v1074
  %1148 = vmatpush1.msra.mxu0 %v1071
  %1149 = vmatprep.subr.mxu0 0.0
  %1150 = vmatpush1.msra.mxu0 0.0
  %1151 = vmatprep.subr.mxu0 0.0
  %1152 = vmatpush1.msra.mxu0 0.0
  %1153 = vmatprep.subr.mxu0 0.0
  %1154 = vmatpush1.msra.mxu0 0.0
  %1155 = vmatprep.subr.mxu0 0.0
  %1156 = vmatpush1.msra.mxu0 0.0
  %1157 = vmatprep.subr.mxu0 0.0
  %1158 = vmatpush1.msra.mxu0 0.0
  %1159 = vmatprep.subr.mxu0 0.0
  %1160 = vmatpush1.msra.mxu0 0.0
  %1161 = vmatprep.subr.mxu0 0.0
  %1162 = vmatpush1.msra.mxu0 0.0
  %1163 = vmatprep.subr.mxu0 0.0
  %1164 = vmatpush1.msra.mxu0 0.0
  %1165 = vmatprep.subr.mxu0 0.0
  %1166 = vmatpush1.msra.mxu0 0.0
  %1167 = vmatprep.subr.mxu0 0.0
  %1168 = vmatpush1.msra.mxu0 0.0
  %1169 = vmatprep.subr.mxu0 0.0
  %1170 = vmatpush1.msra.mxu0 0.0
  %1171 = vmatprep.subr.mxu0 0.0
  %1172 = vmatpush1.msra.mxu0 0.0
  %1173 = vmatprep.subr.mxu0 0.0
  %1174 = vmatpush1.msra.mxu0 0.0
  %1175 = vmatprep.subr.mxu0 0.0
  %1176 = vmatpush1.msra.mxu0 0.0
  %1177 = vmatprep.subr.mxu0 0.0
  %1178 = vmatpush1.msra.mxu0 0.0
  %1179 = vmatprep.subr.mxu0 0.0
  %1180 = vmatpush1.msra.mxu0 0.0
  %1181 = vmatprep.subr.mxu0 0.0
  %1182 = vmatpush1.msra.mxu0 0.0
  %1183 = vmatprep.subr.mxu0 0.0
  %1184 = vmatpush1.msra.mxu0 0.0
  %1185 = vmatprep.subr.mxu0 0.0
  %1186 = vmatpush1.msra.mxu0 0.0
  %1187 = vmatprep.subr.mxu0 0.0
  %1188 = vmatpush1.msra.mxu0 0.0
  %1189 = vmatprep.subr.mxu0 0.0
  %1190 = vmatpush1.msra.mxu0 0.0
  %1191 = vmatprep.subr.mxu0 0.0
  %1192 = vmatpush1.msra.mxu0 0.0
  %1193 = vmatprep.subr.mxu0 0.0
  %1194 = vmatpush1.msra.mxu0 0.0
  %1195 = vmatprep.subr.mxu0 0.0
  %1196 = vmatpush1.msra.mxu0 0.0
  %1197 = vmatprep.subr.mxu0 0.0
  %1198 = vmatpush1.msra.mxu0 0.0
  %1199 = vmatprep.subr.mxu0 0.0
  %1200 = vmatpush1.msra.mxu0 0.0
  %1201 = vmatprep.subr.mxu0 0.0
  %1202 = vmatpush1.msra.mxu0 0.0
  %1203 = vmatprep.subr.mxu0 0.0
  %1204 = vmatpush1.msra.mxu0 0.0
  %1205 = vmatprep.subr.mxu0 0.0
  %1206 = vmatpush1.msra.mxu0 0.0
  %1207 = vmatprep.subr.mxu0 0.0
  %1208 = vmatpush1.msra.mxu0 0.0
  %1209 = vmatprep.subr.mxu0 0.0
  %1210 = vmatpush1.msra.mxu0 0.0
  %1211 = vmatprep.mubr.f32.mxu0 0.0
  %1212 = vmatmul.mubr.f32.gmra.mrb[0].mxu0 %v1062
  %v1213 = vpop.f32.mrb[0].mxu0
  %v1214 = vadd.f32 0.0, %v1213
  %v1215 = vpop.f32.mrb[0].mxu0
  %v1216 = vadd.f32 0.0, %v1215
  %1217 = vdwg.mxu0
  %v1218 = vadd.f32 %v1010, %v1143
  %v1219 = vadd.f32 %v1011, %v1145
  %v1220 = vadd.f32 %v1012, %v1214
  %v1221 = vadd.f32 %v1013, %v1216
  %1222 = vrot.lane.b32.xlu0 %v25, 113
  %v1223 = vpop.permute.xlu0 %1222
  %1224 = vrot.lane.b32.xlu0 %v33, 113
  %v1225 = vpop.permute.xlu0 %1224
  %1226 = vrot.lane.b32.xlu0 %v26, 113
  %v1227 = vpop.permute.xlu0 %1226
  %1228 = vrot.lane.b32.xlu0 %v28, 113
  %v1229 = vpop.permute.xlu0 %1228
  %vm1230 = vcmask 924672
  %v1231 = vsel %vm1230, %v1223, %v1225
  %v1232 = vsel %vm1230, %v1225, %v1227
  %v1233 = vsel %vm1230, %v1227, %v1229
  %v1239 = vsel %vm1230, %v1229, %v1223
  %s1240 = scalar_lea.vmem %s1, 6
  %v1241 = vld [vmem:[%s1240] ss:$8 sm:$0xf]
  %v1243 = vlaneseq
  %v1244 = vshrl.u32 %v1243, 7
  %v1245 = vsub.s32 0, %v1244
  %v1246 = vrot.slane %v1241, %v1245
  %v1247 = vlaneseq
  %v1248 = vshrl.u32 %v1247, 7
  %v1249 = vsub.s32 1, %v1248
  %v1250 = vrot.slane %v1241, %v1249
  %v1251 = vlaneseq
  %v1252 = vshrl.u32 %v1251, 7
  %v1253 = vsub.s32 2, %v1252
  %v1254 = vrot.slane %v1241, %v1253
  %v1255 = vlaneseq
  %v1256 = vshrl.u32 %v1255, 7
  %v1257 = vsub.s32 3, %v1256
  %v1258 = vrot.slane %v1241, %v1257
  %v1263 = vmul.f32 %v1231, %v1246
  %v1264 = vmul.f32 %v1232, %v1250
  %v1265 = vmul.f32 %v1233, %v1254
  %v1266 = vmul.f32 %v1239, %v1258
  %s1267 = scalar_lea.vmem %s2, 48
  %v1268 = vld [vmem:[%s1267] sm:$0xff]
  %v1270 = vsel %vm123, %v1268, 0
  %v1273 = vsel %vm127, %v1263, 0
  %v1276 = vsel %vm127, %v1264, 0
  %v1279 = vsel %vm127, %v1265, 0
  %v1282 = vsel %vm127, %v1266, 0
  %1284 = vmatprep.subr.mxu0 %v1276
  %1285 = vmatpush1.msra.mxu0 %v1273
  %1286 = vmatprep.subr.mxu0 0.0
  %1287 = vmatpush1.msra.mxu0 0.0
  %1288 = vmatprep.subr.mxu0 0.0
  %1289 = vmatpush1.msra.mxu0 0.0
  %1290 = vmatprep.subr.mxu0 0.0
  %1291 = vmatpush1.msra.mxu0 0.0
  %1292 = vmatprep.subr.mxu0 0.0
  %1293 = vmatpush1.msra.mxu0 0.0
  %1294 = vmatprep.subr.mxu0 0.0
  %1295 = vmatpush1.msra.mxu0 0.0
  %1296 = vmatprep.subr.mxu0 0.0
  %1297 = vmatpush1.msra.mxu0 0.0
  %1298 = vmatprep.subr.mxu0 0.0
  %1299 = vmatpush1.msra.mxu0 0.0
  %1300 = vmatprep.subr.mxu0 0.0
  %1301 = vmatpush1.msra.mxu0 0.0
  %1302 = vmatprep.subr.mxu0 0.0
  %1303 = vmatpush1.msra.mxu0 0.0
  %1304 = vmatprep.subr.mxu0 0.0
  %1305 = vmatpush1.msra.mxu0 0.0
  %1306 = vmatprep.subr.mxu0 0.0
  %1307 = vmatpush1.msra.mxu0 0.0
  %1308 = vmatprep.subr.mxu0 0.0
  %1309 = vmatpush1.msra.mxu0 0.0
  %1310 = vmatprep.subr.mxu0 0.0
  %1311 = vmatpush1.msra.mxu0 0.0
  %1312 = vmatprep.subr.mxu0 0.0
  %1313 = vmatpush1.msra.mxu0 0.0
  %1314 = vmatprep.subr.mxu0 0.0
  %1315 = vmatpush1.msra.mxu0 0.0
  %1316 = vmatprep.subr.mxu0 0.0
  %1317 = vmatpush1.msra.mxu0 0.0
  %1318 = vmatprep.subr.mxu0 0.0
  %1319 = vmatpush1.msra.mxu0 0.0
  %1320 = vmatprep.subr.mxu0 0.0
  %1321 = vmatpush1.msra.mxu0 0.0
  %1322 = vmatprep.subr.mxu0 0.0
  %1323 = vmatpush1.msra.mxu0 0.0
  %1324 = vmatprep.subr.mxu0 0.0
  %1325 = vmatpush1.msra.mxu0 0.0
  %1326 = vmatprep.subr.mxu0 0.0
  %1327 = vmatpush1.msra.mxu0 0.0
  %1328 = vmatprep.subr.mxu0 0.0
  %1329 = vmatpush1.msra.mxu0 0.0
  %1330 = vmatprep.subr.mxu0 0.0
  %1331 = vmatpush1.msra.mxu0 0.0
  %1332 = vmatprep.subr.mxu0 0.0
  %1333 = vmatpush1.msra.mxu0 0.0
  %1334 = vmatprep.subr.mxu0 0.0
  %1335 = vmatpush1.msra.mxu0 0.0
  %1336 = vmatprep.subr.mxu0 0.0
  %1337 = vmatpush1.msra.mxu0 0.0
  %1338 = vmatprep.subr.mxu0 0.0
  %1339 = vmatpush1.msra.mxu0 0.0
  %1340 = vmatprep.subr.mxu0 0.0
  %1341 = vmatpush1.msra.mxu0 0.0
  %1342 = vmatprep.subr.mxu0 0.0
  %1343 = vmatpush1.msra.mxu0 0.0
  %1344 = vmatprep.subr.mxu0 0.0
  %1345 = vmatpush1.msra.mxu0 0.0
  %1346 = vmatprep.subr.mxu0 0.0
  %1347 = vmatpush1.msra.mxu0 0.0
  %1348 = vmatprep.mubr.f32.mxu0 0.0
  %1349 = vmatmul.mubr.f32.gmra.mrb[0].mxu0 %v1270
  %v1350 = vpop.f32.mrb[0].mxu0
  %v1351 = vadd.f32 0.0, %v1350
  %v1352 = vpop.f32.mrb[0].mxu0
  %v1353 = vadd.f32 0.0, %v1352
  %1354 = vdwg.mxu0
  %1355 = vmatprep.subr.mxu0 %v1282
  %1356 = vmatpush1.msra.mxu0 %v1279
  %1357 = vmatprep.subr.mxu0 0.0
  %1358 = vmatpush1.msra.mxu0 0.0
  %1359 = vmatprep.subr.mxu0 0.0
  %1360 = vmatpush1.msra.mxu0 0.0
  %1361 = vmatprep.subr.mxu0 0.0
  %1362 = vmatpush1.msra.mxu0 0.0
  %1363 = vmatprep.subr.mxu0 0.0
  %1364 = vmatpush1.msra.mxu0 0.0
  %1365 = vmatprep.subr.mxu0 0.0
  %1366 = vmatpush1.msra.mxu0 0.0
  %1367 = vmatprep.subr.mxu0 0.0
  %1368 = vmatpush1.msra.mxu0 0.0
  %1369 = vmatprep.subr.mxu0 0.0
  %1370 = vmatpush1.msra.mxu0 0.0
  %1371 = vmatprep.subr.mxu0 0.0
  %1372 = vmatpush1.msra.mxu0 0.0
  %1373 = vmatprep.subr.mxu0 0.0
  %1374 = vmatpush1.msra.mxu0 0.0
  %1375 = vmatprep.subr.mxu0 0.0
  %1376 = vmatpush1.msra.mxu0 0.0
  %1377 = vmatprep.subr.mxu0 0.0
  %1378 = vmatpush1.msra.mxu0 0.0
  %1379 = vmatprep.subr.mxu0 0.0
  %1380 = vmatpush1.msra.mxu0 0.0
  %1381 = vmatprep.subr.mxu0 0.0
  %1382 = vmatpush1.msra.mxu0 0.0
  %1383 = vmatprep.subr.mxu0 0.0
  %1384 = vmatpush1.msra.mxu0 0.0
  %1385 = vmatprep.subr.mxu0 0.0
  %1386 = vmatpush1.msra.mxu0 0.0
  %1387 = vmatprep.subr.mxu0 0.0
  %1388 = vmatpush1.msra.mxu0 0.0
  %1389 = vmatprep.subr.mxu0 0.0
  %1390 = vmatpush1.msra.mxu0 0.0
  %1391 = vmatprep.subr.mxu0 0.0
  %1392 = vmatpush1.msra.mxu0 0.0
  %1393 = vmatprep.subr.mxu0 0.0
  %1394 = vmatpush1.msra.mxu0 0.0
  %1395 = vmatprep.subr.mxu0 0.0
  %1396 = vmatpush1.msra.mxu0 0.0
  %1397 = vmatprep.subr.mxu0 0.0
  %1398 = vmatpush1.msra.mxu0 0.0
  %1399 = vmatprep.subr.mxu0 0.0
  %1400 = vmatpush1.msra.mxu0 0.0
  %1401 = vmatprep.subr.mxu0 0.0
  %1402 = vmatpush1.msra.mxu0 0.0
  %1403 = vmatprep.subr.mxu0 0.0
  %1404 = vmatpush1.msra.mxu0 0.0
  %1405 = vmatprep.subr.mxu0 0.0
  %1406 = vmatpush1.msra.mxu0 0.0
  %1407 = vmatprep.subr.mxu0 0.0
  %1408 = vmatpush1.msra.mxu0 0.0
  %1409 = vmatprep.subr.mxu0 0.0
  %1410 = vmatpush1.msra.mxu0 0.0
  %1411 = vmatprep.subr.mxu0 0.0
  %1412 = vmatpush1.msra.mxu0 0.0
  %1413 = vmatprep.subr.mxu0 0.0
  %1414 = vmatpush1.msra.mxu0 0.0
  %1415 = vmatprep.subr.mxu0 0.0
  %1416 = vmatpush1.msra.mxu0 0.0
  %1417 = vmatprep.subr.mxu0 0.0
  %1418 = vmatpush1.msra.mxu0 0.0
  %1419 = vmatprep.mubr.f32.mxu0 0.0
  %1420 = vmatmul.mubr.f32.gmra.mrb[0].mxu0 %v1270
  %v1421 = vpop.f32.mrb[0].mxu0
  %v1422 = vadd.f32 0.0, %v1421
  %v1423 = vpop.f32.mrb[0].mxu0
  %v1424 = vadd.f32 0.0, %v1423
  %1425 = vdwg.mxu0
  %v1426 = vadd.f32 %v1218, %v1351
  %v1427 = vadd.f32 %v1219, %v1353
  %v1428 = vadd.f32 %v1220, %v1422
  %v1429 = vadd.f32 %v1221, %v1424
  %1430 = vrot.lane.b32.xlu0 %v25, 112
  %v1431 = vpop.permute.xlu0 %1430
  %1432 = vrot.lane.b32.xlu0 %v33, 112
  %v1433 = vpop.permute.xlu0 %1432
  %1434 = vrot.lane.b32.xlu0 %v26, 112
  %v1435 = vpop.permute.xlu0 %1434
  %1436 = vrot.lane.b32.xlu0 %v28, 112
  %v1437 = vpop.permute.xlu0 %1436
  %vm1438 = vcmask 916480
  %v1439 = vsel %vm1438, %v1431, %v1433
  %v1440 = vsel %vm1438, %v1433, %v1435
  %v1441 = vsel %vm1438, %v1435, %v1437
  %v1447 = vsel %vm1438, %v1437, %v1431
  %s1448 = scalar_lea.vmem %s1, 7
  %v1449 = vld [vmem:[%s1448] ss:$8 sm:$0xf]
  %v1451 = vlaneseq
  %v1452 = vshrl.u32 %v1451, 7
  %v1453 = vsub.s32 0, %v1452
  %v1454 = vrot.slane %v1449, %v1453
  %v1455 = vlaneseq
  %v1456 = vshrl.u32 %v1455, 7
  %v1457 = vsub.s32 1, %v1456
  %v1458 = vrot.slane %v1449, %v1457
  %v1459 = vlaneseq
  %v1460 = vshrl.u32 %v1459, 7
  %v1461 = vsub.s32 2, %v1460
  %v1462 = vrot.slane %v1449, %v1461
  %v1463 = vlaneseq
  %v1464 = vshrl.u32 %v1463, 7
  %v1465 = vsub.s32 3, %v1464
  %v1466 = vrot.slane %v1449, %v1465
  %v1471 = vmul.f32 %v1439, %v1454
  %v1472 = vmul.f32 %v1440, %v1458
  %v1473 = vmul.f32 %v1441, %v1462
  %v1474 = vmul.f32 %v1447, %v1466
  %s1475 = scalar_lea.vmem %s2, 56
  %v1476 = vld [vmem:[%s1475] sm:$0xff]
  %v1478 = vsel %vm123, %v1476, 0
  %v1481 = vsel %vm127, %v1471, 0
  %v1484 = vsel %vm127, %v1472, 0
  %v1487 = vsel %vm127, %v1473, 0
  %v1490 = vsel %vm127, %v1474, 0
  %1492 = vmatprep.subr.mxu0 %v1484
  %1493 = vmatpush1.msra.mxu0 %v1481
  %1494 = vmatprep.subr.mxu0 0.0
  %1495 = vmatpush1.msra.mxu0 0.0
  %1496 = vmatprep.subr.mxu0 0.0
  %1497 = vmatpush1.msra.mxu0 0.0
  %1498 = vmatprep.subr.mxu0 0.0
  %1499 = vmatpush1.msra.mxu0 0.0
  %1500 = vmatprep.subr.mxu0 0.0
  %1501 = vmatpush1.msra.mxu0 0.0
  %1502 = vmatprep.subr.mxu0 0.0
  %1503 = vmatpush1.msra.mxu0 0.0
  %1504 = vmatprep.subr.mxu0 0.0
  %1505 = vmatpush1.msra.mxu0 0.0
  %1506 = vmatprep.subr.mxu0 0.0
  %1507 = vmatpush1.msra.mxu0 0.0
  %1508 = vmatprep.subr.mxu0 0.0
  %1509 = vmatpush1.msra.mxu0 0.0
  %1510 = vmatprep.subr.mxu0 0.0
  %1511 = vmatpush1.msra.mxu0 0.0
  %1512 = vmatprep.subr.mxu0 0.0
  %1513 = vmatpush1.msra.mxu0 0.0
  %1514 = vmatprep.subr.mxu0 0.0
  %1515 = vmatpush1.msra.mxu0 0.0
  %1516 = vmatprep.subr.mxu0 0.0
  %1517 = vmatpush1.msra.mxu0 0.0
  %1518 = vmatprep.subr.mxu0 0.0
  %1519 = vmatpush1.msra.mxu0 0.0
  %1520 = vmatprep.subr.mxu0 0.0
  %1521 = vmatpush1.msra.mxu0 0.0
  %1522 = vmatprep.subr.mxu0 0.0
  %1523 = vmatpush1.msra.mxu0 0.0
  %1524 = vmatprep.subr.mxu0 0.0
  %1525 = vmatpush1.msra.mxu0 0.0
  %1526 = vmatprep.subr.mxu0 0.0
  %1527 = vmatpush1.msra.mxu0 0.0
  %1528 = vmatprep.subr.mxu0 0.0
  %1529 = vmatpush1.msra.mxu0 0.0
  %1530 = vmatprep.subr.mxu0 0.0
  %1531 = vmatpush1.msra.mxu0 0.0
  %1532 = vmatprep.subr.mxu0 0.0
  %1533 = vmatpush1.msra.mxu0 0.0
  %1534 = vmatprep.subr.mxu0 0.0
  %1535 = vmatpush1.msra.mxu0 0.0
  %1536 = vmatprep.subr.mxu0 0.0
  %1537 = vmatpush1.msra.mxu0 0.0
  %1538 = vmatprep.subr.mxu0 0.0
  %1539 = vmatpush1.msra.mxu0 0.0
  %1540 = vmatprep.subr.mxu0 0.0
  %1541 = vmatpush1.msra.mxu0 0.0
  %1542 = vmatprep.subr.mxu0 0.0
  %1543 = vmatpush1.msra.mxu0 0.0
  %1544 = vmatprep.subr.mxu0 0.0
  %1545 = vmatpush1.msra.mxu0 0.0
  %1546 = vmatprep.subr.mxu0 0.0
  %1547 = vmatpush1.msra.mxu0 0.0
  %1548 = vmatprep.subr.mxu0 0.0
  %1549 = vmatpush1.msra.mxu0 0.0
  %1550 = vmatprep.subr.mxu0 0.0
  %1551 = vmatpush1.msra.mxu0 0.0
  %1552 = vmatprep.subr.mxu0 0.0
  %1553 = vmatpush1.msra.mxu0 0.0
  %1554 = vmatprep.subr.mxu0 0.0
  %1555 = vmatpush1.msra.mxu0 0.0
  %1556 = vmatprep.mubr.f32.mxu0 0.0
  %1557 = vmatmul.mubr.f32.gmra.mrb[0].mxu0 %v1478
  %v1558 = vpop.f32.mrb[0].mxu0
  %v1559 = vadd.f32 0.0, %v1558
  %v1560 = vpop.f32.mrb[0].mxu0
  %v1561 = vadd.f32 0.0, %v1560
  %1562 = vdwg.mxu0
  %1563 = vmatprep.subr.mxu0 %v1490
  %1564 = vmatpush1.msra.mxu0 %v1487
  %1565 = vmatprep.subr.mxu0 0.0
  %1566 = vmatpush1.msra.mxu0 0.0
  %1567 = vmatprep.subr.mxu0 0.0
  %1568 = vmatpush1.msra.mxu0 0.0
  %1569 = vmatprep.subr.mxu0 0.0
  %1570 = vmatpush1.msra.mxu0 0.0
  %1571 = vmatprep.subr.mxu0 0.0
  %1572 = vmatpush1.msra.mxu0 0.0
  %1573 = vmatprep.subr.mxu0 0.0
  %1574 = vmatpush1.msra.mxu0 0.0
  %1575 = vmatprep.subr.mxu0 0.0
  %1576 = vmatpush1.msra.mxu0 0.0
  %1577 = vmatprep.subr.mxu0 0.0
  %1578 = vmatpush1.msra.mxu0 0.0
  %1579 = vmatprep.subr.mxu0 0.0
  %1580 = vmatpush1.msra.mxu0 0.0
  %1581 = vmatprep.subr.mxu0 0.0
  %1582 = vmatpush1.msra.mxu0 0.0
  %1583 = vmatprep.subr.mxu0 0.0
  %1584 = vmatpush1.msra.mxu0 0.0
  %1585 = vmatprep.subr.mxu0 0.0
  %1586 = vmatpush1.msra.mxu0 0.0
  %1587 = vmatprep.subr.mxu0 0.0
  %1588 = vmatpush1.msra.mxu0 0.0
  %1589 = vmatprep.subr.mxu0 0.0
  %1590 = vmatpush1.msra.mxu0 0.0
  %1591 = vmatprep.subr.mxu0 0.0
  %1592 = vmatpush1.msra.mxu0 0.0
  %1593 = vmatprep.subr.mxu0 0.0
  %1594 = vmatpush1.msra.mxu0 0.0
  %1595 = vmatprep.subr.mxu0 0.0
  %1596 = vmatpush1.msra.mxu0 0.0
  %1597 = vmatprep.subr.mxu0 0.0
  %1598 = vmatpush1.msra.mxu0 0.0
  %1599 = vmatprep.subr.mxu0 0.0
  %1600 = vmatpush1.msra.mxu0 0.0
  %1601 = vmatprep.subr.mxu0 0.0
  %1602 = vmatpush1.msra.mxu0 0.0
  %1603 = vmatprep.subr.mxu0 0.0
  %1604 = vmatpush1.msra.mxu0 0.0
  %1605 = vmatprep.subr.mxu0 0.0
  %1606 = vmatpush1.msra.mxu0 0.0
  %1607 = vmatprep.subr.mxu0 0.0
  %1608 = vmatpush1.msra.mxu0 0.0
  %1609 = vmatprep.subr.mxu0 0.0
  %1610 = vmatpush1.msra.mxu0 0.0
  %1611 = vmatprep.subr.mxu0 0.0
  %1612 = vmatpush1.msra.mxu0 0.0
  %1613 = vmatprep.subr.mxu0 0.0
  %1614 = vmatpush1.msra.mxu0 0.0
  %1615 = vmatprep.subr.mxu0 0.0
  %1616 = vmatpush1.msra.mxu0 0.0
  %1617 = vmatprep.subr.mxu0 0.0
  %1618 = vmatpush1.msra.mxu0 0.0
  %1619 = vmatprep.subr.mxu0 0.0
  %1620 = vmatpush1.msra.mxu0 0.0
  %1621 = vmatprep.subr.mxu0 0.0
  %1622 = vmatpush1.msra.mxu0 0.0
  %1623 = vmatprep.subr.mxu0 0.0
  %1624 = vmatpush1.msra.mxu0 0.0
  %1625 = vmatprep.subr.mxu0 0.0
  %1626 = vmatpush1.msra.mxu0 0.0
  %1627 = vmatprep.mubr.f32.mxu0 0.0
  %1628 = vmatmul.mubr.f32.gmra.mrb[0].mxu0 %v1478
  %v1629 = vpop.f32.mrb[0].mxu0
  %v1630 = vadd.f32 0.0, %v1629
  %v1631 = vpop.f32.mrb[0].mxu0
  %v1632 = vadd.f32 0.0, %v1631
  %1633 = vdwg.mxu0
  %v1634 = vadd.f32 %v1426, %v1559
  %v1635 = vadd.f32 %v1427, %v1561
  %v1636 = vadd.f32 %v1428, %v1630
  %v1637 = vadd.f32 %v1429, %v1632
  %1638 = vrot.lane.b32.xlu0 %v25, 111
  %v1639 = vpop.permute.xlu0 %1638
  %1640 = vrot.lane.b32.xlu0 %v33, 111
  %v1641 = vpop.permute.xlu0 %1640
  %1642 = vrot.lane.b32.xlu0 %v26, 111
  %v1643 = vpop.permute.xlu0 %1642
  %1644 = vrot.lane.b32.xlu0 %v28, 111
  %v1645 = vpop.permute.xlu0 %1644
  %vm1646 = vcmask 908288
  %v1647 = vsel %vm1646, %v1639, %v1641
  %v1648 = vsel %vm1646, %v1641, %v1643
  %v1649 = vsel %vm1646, %v1643, %v1645
  %v1655 = vsel %vm1646, %v1645, %v1639
  %s1656 = scalar_lea.vmem %s1, 32
  %v1657 = vld [vmem:[%s1656] ss:$8 sm:$0xf]
  %v1659 = vlaneseq
  %v1660 = vshrl.u32 %v1659, 7
  %v1661 = vsub.s32 0, %v1660
  %v1662 = vrot.slane %v1657, %v1661
  %v1663 = vlaneseq
  %v1664 = vshrl.u32 %v1663, 7
  %v1665 = vsub.s32 1, %v1664
  %v1666 = vrot.slane %v1657, %v1665
  %v1667 = vlaneseq
  %v1668 = vshrl.u32 %v1667, 7
  %v1669 = vsub.s32 2, %v1668
  %v1670 = vrot.slane %v1657, %v1669
  %v1671 = vlaneseq
  %v1672 = vshrl.u32 %v1671, 7
  %v1673 = vsub.s32 3, %v1672
  %v1674 = vrot.slane %v1657, %v1673
  %v1679 = vmul.f32 %v1647, %v1662
  %v1680 = vmul.f32 %v1648, %v1666
  %v1681 = vmul.f32 %v1649, %v1670
  %v1682 = vmul.f32 %v1655, %v1674
  %s1683 = scalar_lea.vmem %s2, 64
  %v1684 = vld [vmem:[%s1683] sm:$0xff]
  %v1686 = vsel %vm123, %v1684, 0
  %v1689 = vsel %vm127, %v1679, 0
  %v1692 = vsel %vm127, %v1680, 0
  %v1695 = vsel %vm127, %v1681, 0
  %v1698 = vsel %vm127, %v1682, 0
  %1700 = vmatprep.subr.mxu0 %v1692
  %1701 = vmatpush1.msra.mxu0 %v1689
  %1702 = vmatprep.subr.mxu0 0.0
  %1703 = vmatpush1.msra.mxu0 0.0
  %1704 = vmatprep.subr.mxu0 0.0
  %1705 = vmatpush1.msra.mxu0 0.0
  %1706 = vmatprep.subr.mxu0 0.0
  %1707 = vmatpush1.msra.mxu0 0.0
  %1708 = vmatprep.subr.mxu0 0.0
  %1709 = vmatpush1.msra.mxu0 0.0
  %1710 = vmatprep.subr.mxu0 0.0
  %1711 = vmatpush1.msra.mxu0 0.0
  %1712 = vmatprep.subr.mxu0 0.0
  %1713 = vmatpush1.msra.mxu0 0.0
  %1714 = vmatprep.subr.mxu0 0.0
  %1715 = vmatpush1.msra.mxu0 0.0
  %1716 = vmatprep.subr.mxu0 0.0
  %1717 = vmatpush1.msra.mxu0 0.0
  %1718 = vmatprep.subr.mxu0 0.0
  %1719 = vmatpush1.msra.mxu0 0.0
  %1720 = vmatprep.subr.mxu0 0.0
  %1721 = vmatpush1.msra.mxu0 0.0
  %1722 = vmatprep.subr.mxu0 0.0
  %1723 = vmatpush1.msra.mxu0 0.0
  %1724 = vmatprep.subr.mxu0 0.0
  %1725 = vmatpush1.msra.mxu0 0.0
  %1726 = vmatprep.subr.mxu0 0.0
  %1727 = vmatpush1.msra.mxu0 0.0
  %1728 = vmatprep.subr.mxu0 0.0
  %1729 = vmatpush1.msra.mxu0 0.0
  %1730 = vmatprep.subr.mxu0 0.0
  %1731 = vmatpush1.msra.mxu0 0.0
  %1732 = vmatprep.subr.mxu0 0.0
  %1733 = vmatpush1.msra.mxu0 0.0
  %1734 = vmatprep.subr.mxu0 0.0
  %1735 = vmatpush1.msra.mxu0 0.0
  %1736 = vmatprep.subr.mxu0 0.0
  %1737 = vmatpush1.msra.mxu0 0.0
  %1738 = vmatprep.subr.mxu0 0.0
  %1739 = vmatpush1.msra.mxu0 0.0
  %1740 = vmatprep.subr.mxu0 0.0
  %1741 = vmatpush1.msra.mxu0 0.0
  %1742 = vmatprep.subr.mxu0 0.0
  %1743 = vmatpush1.msra.mxu0 0.0
  %1744 = vmatprep.subr.mxu0 0.0
  %1745 = vmatpush1.msra.mxu0 0.0
  %1746 = vmatprep.subr.mxu0 0.0
  %1747 = vmatpush1.msra.mxu0 0.0
  %1748 = vmatprep.subr.mxu0 0.0
  %1749 = vmatpush1.msra.mxu0 0.0
  %1750 = vmatprep.subr.mxu0 0.0
  %1751 = vmatpush1.msra.mxu0 0.0
  %1752 = vmatprep.subr.mxu0 0.0
  %1753 = vmatpush1.msra.mxu0 0.0
  %1754 = vmatprep.subr.mxu0 0.0
  %1755 = vmatpush1.msra.mxu0 0.0
  %1756 = vmatprep.subr.mxu0 0.0
  %1757 = vmatpush1.msra.mxu0 0.0
  %1758 = vmatprep.subr.mxu0 0.0
  %1759 = vmatpush1.msra.mxu0 0.0
  %1760 = vmatprep.subr.mxu0 0.0
  %1761 = vmatpush1.msra.mxu0 0.0
  %1762 = vmatprep.subr.mxu0 0.0
  %1763 = vmatpush1.msra.mxu0 0.0
  %1764 = vmatprep.mubr.f32.mxu0 0.0
  %1765 = vmatmul.mubr.f32.gmra.mrb[0].mxu0 %v1686
  %v1766 = vpop.f32.mrb[0].mxu0
  %v1767 = vadd.f32 0.0, %v1766
  %v1768 = vpop.f32.mrb[0].mxu0
  %v1769 = vadd.f32 0.0, %v1768
  %1770 = vdwg.mxu0
  %1771 = vmatprep.subr.mxu0 %v1698
  %1772 = vmatpush1.msra.mxu0 %v1695
  %1773 = vmatprep.subr.mxu0 0.0
  %1774 = vmatpush1.msra.mxu0 0.0
  %1775 = vmatprep.subr.mxu0 0.0
  %1776 = vmatpush1.msra.mxu0 0.0
  %1777 = vmatprep.subr.mxu0 0.0
  %1778 = vmatpush1.msra.mxu0 0.0
  %1779 = vmatprep.subr.mxu0 0.0
  %1780 = vmatpush1.msra.mxu0 0.0
  %1781 = vmatprep.subr.mxu0 0.0
  %1782 = vmatpush1.msra.mxu0 0.0
  %1783 = vmatprep.subr.mxu0 0.0
  %1784 = vmatpush1.msra.mxu0 0.0
  %1785 = vmatprep.subr.mxu0 0.0
  %1786 = vmatpush1.msra.mxu0 0.0
  %1787 = vmatprep.subr.mxu0 0.0
  %1788 = vmatpush1.msra.mxu0 0.0
  %1789 = vmatprep.subr.mxu0 0.0
  %1790 = vmatpush1.msra.mxu0 0.0
  %1791 = vmatprep.subr.mxu0 0.0
  %1792 = vmatpush1.msra.mxu0 0.0
  %1793 = vmatprep.subr.mxu0 0.0
  %1794 = vmatpush1.msra.mxu0 0.0
  %1795 = vmatprep.subr.mxu0 0.0
  %1796 = vmatpush1.msra.mxu0 0.0
  %1797 = vmatprep.subr.mxu0 0.0
  %1798 = vmatpush1.msra.mxu0 0.0
  %1799 = vmatprep.subr.mxu0 0.0
  %1800 = vmatpush1.msra.mxu0 0.0
  %1801 = vmatprep.subr.mxu0 0.0
  %1802 = vmatpush1.msra.mxu0 0.0
  %1803 = vmatprep.subr.mxu0 0.0
  %1804 = vmatpush1.msra.mxu0 0.0
  %1805 = vmatprep.subr.mxu0 0.0
  %1806 = vmatpush1.msra.mxu0 0.0
  %1807 = vmatprep.subr.mxu0 0.0
  %1808 = vmatpush1.msra.mxu0 0.0
  %1809 = vmatprep.subr.mxu0 0.0
  %1810 = vmatpush1.msra.mxu0 0.0
  %1811 = vmatprep.subr.mxu0 0.0
  %1812 = vmatpush1.msra.mxu0 0.0
  %1813 = vmatprep.subr.mxu0 0.0
  %1814 = vmatpush1.msra.mxu0 0.0
  %1815 = vmatprep.subr.mxu0 0.0
  %1816 = vmatpush1.msra.mxu0 0.0
  %1817 = vmatprep.subr.mxu0 0.0
  %1818 = vmatpush1.msra.mxu0 0.0
  %1819 = vmatprep.subr.mxu0 0.0
  %1820 = vmatpush1.msra.mxu0 0.0
  %1821 = vmatprep.subr.mxu0 0.0
  %1822 = vmatpush1.msra.mxu0 0.0
  %1823 = vmatprep.subr.mxu0 0.0
  %1824 = vmatpush1.msra.mxu0 0.0
  %1825 = vmatprep.subr.mxu0 0.0
  %1826 = vmatpush1.msra.mxu0 0.0
  %1827 = vmatprep.subr.mxu0 0.0
  %1828 = vmatpush1.msra.mxu0 0.0
  %1829 = vmatprep.subr.mxu0 0.0
  %1830 = vmatpush1.msra.mxu0 0.0
  %1831 = vmatprep.subr.mxu0 0.0
  %1832 = vmatpush1.msra.mxu0 0.0
  %1833 = vmatprep.subr.mxu0 0.0
  %1834 = vmatpush1.msra.mxu0 0.0
  %1835 = vmatprep.mubr.f32.mxu0 0.0
  %1836 = vmatmul.mubr.f32.gmra.mrb[0].mxu0 %v1686
  %v1837 = vpop.f32.mrb[0].mxu0
  %v1838 = vadd.f32 0.0, %v1837
  %v1839 = vpop.f32.mrb[0].mxu0
  %v1840 = vadd.f32 0.0, %v1839
  %1841 = vdwg.mxu0
  %v1842 = vadd.f32 %v1634, %v1767
  %v1843 = vadd.f32 %v1635, %v1769
  %v1844 = vadd.f32 %v1636, %v1838
  %v1845 = vadd.f32 %v1637, %v1840
  %v1846 = vld [vmem:[%s3] sm:$0xff]
  %1848 = vset.pattern.permute.xlu0 0
  %1849 = vperm.xlu0 %1848, %v1846
  %v1850 = vpop.permute.xlu0 %1849
  %v1852 = vadd.f32 %v1842, %v1850
  %v1853 = vadd.f32 %v1843, %v1850
  %v1854 = vadd.f32 %v1844, %v1850
  %v1855 = vadd.f32 %v1845, %v1850
  %1856 = vst [vmem:[%s6] sm:$0xff] %v1852
  %1857 = vst [vmem:[%s6 + $0x8] sm:$0xff] %v1853
  %1858 = vst [vmem:[%s6 + $0x10] sm:$0xff] %v1854
  %1859 = vst [vmem:[%s6 + $0x18] sm:$0xff] %v1855
  %v1860 = vmax.f32 %v1852, 0.0
  %v1861 = vmax.f32 %v1853, 0.0
  %v1862 = vmax.f32 %v1854, 0.0
  %v1863 = vmax.f32 %v1855, 0.0
  %1865 = vrot.lane.b32.xlu0 %v1863, 17
  %v1866 = vpop.permute.xlu0 %1865
  %1871 = vrot.lane.b32.xlu0 %v1860, 17
  %v1872 = vpop.permute.xlu0 %1871
  %1873 = vrot.lane.b32.xlu0 %v1861, 17
  %v1874 = vpop.permute.xlu0 %1873
  %1875 = vrot.lane.b32.xlu0 %v1862, 17
  %v1876 = vpop.permute.xlu0 %1875
  %v1877 = vsel %vm40, %v1872, %v1874
  %v1878 = vsel %vm40, %v1874, %v1876
  %v1879 = vsel %vm40, %v1876, %v1866
  %v1884 = vsel %vm40, %v1866, %v1872
  %v1885 = vld [vmem:[%s1] ss:$8 sm:$0xf]
  %v1887 = vlaneseq
  %v1888 = vshrl.u32 %v1887, 7
  %v1889 = vsub.s32 0, %v1888
  %v1890 = vrot.slane %v1885, %v1889
  %v1891 = vlaneseq
  %v1892 = vshrl.u32 %v1891, 7
  %v1893 = vsub.s32 1, %v1892
  %v1894 = vrot.slane %v1885, %v1893
  %v1895 = vlaneseq
  %v1896 = vshrl.u32 %v1895, 7
  %v1897 = vsub.s32 2, %v1896
  %v1898 = vrot.slane %v1885, %v1897
  %v1899 = vlaneseq
  %v1900 = vshrl.u32 %v1899, 7
  %v1901 = vsub.s32 3, %v1900
  %v1902 = vrot.slane %v1885, %v1901
  %v1907 = vmul.f32 %v1884, %v1890
  %v1908 = vmul.f32 %v1877, %v1894
  %v1909 = vmul.f32 %v1878, %v1898
  %v1910 = vmul.f32 %v1879, %v1902
  %v1911 = vld [vmem:[%s4] sm:$0xff]
  %1912 = vrot.lane.b32.xlu0 %v1863, 16
  %v1913 = vpop.permute.xlu0 %1912
  %1915 = vrot.lane.b32.xlu0 %v1860, 16
  %v1916 = vpop.permute.xlu0 %1915
  %1917 = vrot.lane.b32.xlu0 %v1861, 16
  %v1918 = vpop.permute.xlu0 %1917
  %1919 = vrot.lane.b32.xlu0 %v1862, 16
  %v1920 = vpop.permute.xlu0 %1919
  %v1921 = vsel %vm85, %v1916, %v1918
  %v1922 = vsel %vm85, %v1918, %v1920
  %v1923 = vsel %vm85, %v1920, %v1913
  %v1928 = vsel %vm85, %v1913, %v1916
  %v1929 = vld [vmem:[%s94] ss:$8 sm:$0xf]
  %v1931 = vlaneseq
  %v1932 = vshrl.u32 %v1931, 7
  %v1933 = vsub.s32 0, %v1932
  %v1934 = vrot.slane %v1929, %v1933
  %v1935 = vlaneseq
  %v1936 = vshrl.u32 %v1935, 7
  %v1937 = vsub.s32 1, %v1936
  %v1938 = vrot.slane %v1929, %v1937
  %v1939 = vlaneseq
  %v1940 = vshrl.u32 %v1939, 7
  %v1941 = vsub.s32 2, %v1940
  %v1942 = vrot.slane %v1929, %v1941
  %v1943 = vlaneseq
  %v1944 = vshrl.u32 %v1943, 7
  %v1945 = vsub.s32 3, %v1944
  %v1946 = vrot.slane %v1929, %v1945
  %v1951 = vmul.f32 %v1928, %v1934
  %v1952 = vmul.f32 %v1921, %v1938
  %v1953 = vmul.f32 %v1922, %v1942
  %v1954 = vmul.f32 %v1923, %v1946
  %s1955 = scalar_lea.vmem %s4, 8
  %v1956 = vld [vmem:[%s1955] sm:$0xff]
  %vm1957 = vcmask 64512
  %v1959 = vsel %vm1957, %v1956, 0
  %1961 = vmatprep.subr.mxu0 %v1952
  %1962 = vmatpush1.msra.mxu0 %v1951
  %1963 = vmatprep.subr.mxu0 0.0
  %1964 = vmatpush1.msra.mxu0 0.0
  %1965 = vmatprep.subr.mxu0 0.0
  %1966 = vmatpush1.msra.mxu0 0.0
  %1967 = vmatprep.subr.mxu0 0.0
  %1968 = vmatpush1.msra.mxu0 0.0
  %1969 = vmatprep.subr.mxu0 0.0
  %1970 = vmatpush1.msra.mxu0 0.0
  %1971 = vmatprep.subr.mxu0 0.0
  %1972 = vmatpush1.msra.mxu0 0.0
  %1973 = vmatprep.subr.mxu0 0.0
  %1974 = vmatpush1.msra.mxu0 0.0
  %1975 = vmatprep.subr.mxu0 0.0
  %1976 = vmatpush1.msra.mxu0 0.0
  %1977 = vmatprep.subr.mxu0 0.0
  %1978 = vmatpush1.msra.mxu0 0.0
  %1979 = vmatprep.subr.mxu0 0.0
  %1980 = vmatpush1.msra.mxu0 0.0
  %1981 = vmatprep.subr.mxu0 0.0
  %1982 = vmatpush1.msra.mxu0 0.0
  %1983 = vmatprep.subr.mxu0 0.0
  %1984 = vmatpush1.msra.mxu0 0.0
  %1985 = vmatprep.subr.mxu0 0.0
  %1986 = vmatpush1.msra.mxu0 0.0
  %1987 = vmatprep.subr.mxu0 0.0
  %1988 = vmatpush1.msra.mxu0 0.0
  %1989 = vmatprep.subr.mxu0 0.0
  %1990 = vmatpush1.msra.mxu0 0.0
  %1991 = vmatprep.subr.mxu0 0.0
  %1992 = vmatpush1.msra.mxu0 0.0
  %1993 = vmatprep.subr.mxu0 0.0
  %1994 = vmatpush1.msra.mxu0 0.0
  %1995 = vmatprep.subr.mxu0 0.0
  %1996 = vmatpush1.msra.mxu0 0.0
  %1997 = vmatprep.subr.mxu0 0.0
  %1998 = vmatpush1.msra.mxu0 0.0
  %1999 = vmatprep.subr.mxu0 0.0
  %2000 = vmatpush1.msra.mxu0 0.0
  %2001 = vmatprep.subr.mxu0 0.0
  %2002 = vmatpush1.msra.mxu0 0.0
  %2003 = vmatprep.subr.mxu0 0.0
  %2004 = vmatpush1.msra.mxu0 0.0
  %2005 = vmatprep.subr.mxu0 0.0
  %2006 = vmatpush1.msra.mxu0 0.0
  %2007 = vmatprep.subr.mxu0 0.0
  %2008 = vmatpush1.msra.mxu0 0.0
  %2009 = vmatprep.subr.mxu0 0.0
  %2010 = vmatpush1.msra.mxu0 0.0
  %2011 = vmatprep.subr.mxu0 0.0
  %2012 = vmatpush1.msra.mxu0 0.0
  %2013 = vmatprep.subr.mxu0 0.0
  %2014 = vmatpush1.msra.mxu0 0.0
  %2015 = vmatprep.subr.mxu0 0.0
  %2016 = vmatpush1.msra.mxu0 0.0
  %2017 = vmatprep.subr.mxu0 0.0
  %2018 = vmatpush1.msra.mxu0 0.0
  %2019 = vmatprep.subr.mxu0 0.0
  %2020 = vmatpush1.msra.mxu0 0.0
  %2021 = vmatprep.subr.mxu0 0.0
  %2022 = vmatpush1.msra.mxu0 0.0
  %2023 = vmatprep.subr.mxu0 0.0
  %2024 = vmatpush1.msra.mxu0 0.0
  %2025 = vmatprep.mubr.f32.mxu0 0.0
  %2026 = vmatmul.mubr.f32.gmra.mrb[0].mxu0 %v1959
  %v2027 = vpop.f32.mrb[0].mxu0
  %v2028 = vadd.f32 0.0, %v2027
  %v2029 = vpop.f32.mrb[0].mxu0
  %v2030 = vadd.f32 0.0, %v2029
  %2031 = vdwg.mxu0
  %2032 = vmatprep.subr.mxu0 %v1954
  %2033 = vmatpush1.msra.mxu0 %v1953
  %2034 = vmatprep.subr.mxu0 0.0
  %2035 = vmatpush1.msra.mxu0 0.0
  %2036 = vmatprep.subr.mxu0 0.0
  %2037 = vmatpush1.msra.mxu0 0.0
  %2038 = vmatprep.subr.mxu0 0.0
  %2039 = vmatpush1.msra.mxu0 0.0
  %2040 = vmatprep.subr.mxu0 0.0
  %2041 = vmatpush1.msra.mxu0 0.0
  %2042 = vmatprep.subr.mxu0 0.0
  %2043 = vmatpush1.msra.mxu0 0.0
  %2044 = vmatprep.subr.mxu0 0.0
  %2045 = vmatpush1.msra.mxu0 0.0
  %2046 = vmatprep.subr.mxu0 0.0
  %2047 = vmatpush1.msra.mxu0 0.0
  %2048 = vmatprep.subr.mxu0 0.0
  %2049 = vmatpush1.msra.mxu0 0.0
  %2050 = vmatprep.subr.mxu0 0.0
  %2051 = vmatpush1.msra.mxu0 0.0
  %2052 = vmatprep.subr.mxu0 0.0
  %2053 = vmatpush1.msra.mxu0 0.0
  %2054 = vmatprep.subr.mxu0 0.0
  %2055 = vmatpush1.msra.mxu0 0.0
  %2056 = vmatprep.subr.mxu0 0.0
  %2057 = vmatpush1.msra.mxu0 0.0
  %2058 = vmatprep.subr.mxu0 0.0
  %2059 = vmatpush1.msra.mxu0 0.0
  %2060 = vmatprep.subr.mxu0 0.0
  %2061 = vmatpush1.msra.mxu0 0.0
  %2062 = vmatprep.subr.mxu0 0.0
  %2063 = vmatpush1.msra.mxu0 0.0
  %2064 = vmatprep.subr.mxu0 0.0
  %2065 = vmatpush1.msra.mxu0 0.0
  %2066 = vmatprep.subr.mxu0 0.0
  %2067 = vmatpush1.msra.mxu0 0.0
  %2068 = vmatprep.subr.mxu0 0.0
  %2069 = vmatpush1.msra.mxu0 0.0
  %2070 = vmatprep.subr.mxu0 0.0
  %2071 = vmatpush1.msra.mxu0 0.0
  %2072 = vmatprep.subr.mxu0 0.0
  %2073 = vmatpush1.msra.mxu0 0.0
  %2074 = vmatprep.subr.mxu0 0.0
  %2075 = vmatpush1.msra.mxu0 0.0
  %2076 = vmatprep.subr.mxu0 0.0
  %2077 = vmatpush1.msra.mxu0 0.0
  %2078 = vmatprep.subr.mxu0 0.0
  %2079 = vmatpush1.msra.mxu0 0.0
  %2080 = vmatprep.subr.mxu0 0.0
  %2081 = vmatpush1.msra.mxu0 0.0
  %2082 = vmatprep.subr.mxu0 0.0
  %2083 = vmatpush1.msra.mxu0 0.0
  %2084 = vmatprep.subr.mxu0 0.0
  %2085 = vmatpush1.msra.mxu0 0.0
  %2086 = vmatprep.subr.mxu0 0.0
  %2087 = vmatpush1.msra.mxu0 0.0
  %2088 = vmatprep.subr.mxu0 0.0
  %2089 = vmatpush1.msra.mxu0 0.0
  %2090 = vmatprep.subr.mxu0 0.0
  %2091 = vmatpush1.msra.mxu0 0.0
  %2092 = vmatprep.subr.mxu0 0.0
  %2093 = vmatpush1.msra.mxu0 0.0
  %2094 = vmatprep.subr.mxu0 0.0
  %2095 = vmatpush1.msra.mxu0 0.0
  %2096 = vmatprep.mubr.f32.mxu0 0.0
  %2097 = vmatmul.mubr.f32.gmra.mrb[0].mxu0 %v1959
  %v2098 = vpop.f32.mrb[0].mxu0
  %v2099 = vadd.f32 0.0, %v2098
  %v2100 = vpop.f32.mrb[0].mxu0
  %v2101 = vadd.f32 0.0, %v2100
  %2102 = vdwg.mxu0
  %v2104 = vsel %vm1957, %v1911, 0
  %2106 = vmatprep.subr.mxu0 %v1908
  %2107 = vmatpush1.msra.mxu0 %v1907
  %2108 = vmatprep.subr.mxu0 0.0
  %2109 = vmatpush1.msra.mxu0 0.0
  %2110 = vmatprep.subr.mxu0 0.0
  %2111 = vmatpush1.msra.mxu0 0.0
  %2112 = vmatprep.subr.mxu0 0.0
  %2113 = vmatpush1.msra.mxu0 0.0
  %2114 = vmatprep.subr.mxu0 0.0
  %2115 = vmatpush1.msra.mxu0 0.0
  %2116 = vmatprep.subr.mxu0 0.0
  %2117 = vmatpush1.msra.mxu0 0.0
  %2118 = vmatprep.subr.mxu0 0.0
  %2119 = vmatpush1.msra.mxu0 0.0
  %2120 = vmatprep.subr.mxu0 0.0
  %2121 = vmatpush1.msra.mxu0 0.0
  %2122 = vmatprep.subr.mxu0 0.0
  %2123 = vmatpush1.msra.mxu0 0.0
  %2124 = vmatprep.subr.mxu0 0.0
  %2125 = vmatpush1.msra.mxu0 0.0
  %2126 = vmatprep.subr.mxu0 0.0
  %2127 = vmatpush1.msra.mxu0 0.0
  %2128 = vmatprep.subr.mxu0 0.0
  %2129 = vmatpush1.msra.mxu0 0.0
  %2130 = vmatprep.subr.mxu0 0.0
  %2131 = vmatpush1.msra.mxu0 0.0
  %2132 = vmatprep.subr.mxu0 0.0
  %2133 = vmatpush1.msra.mxu0 0.0
  %2134 = vmatprep.subr.mxu0 0.0
  %2135 = vmatpush1.msra.mxu0 0.0
  %2136 = vmatprep.subr.mxu0 0.0
  %2137 = vmatpush1.msra.mxu0 0.0
  %2138 = vmatprep.subr.mxu0 0.0
  %2139 = vmatpush1.msra.mxu0 0.0
  %2140 = vmatprep.subr.mxu0 0.0
  %2141 = vmatpush1.msra.mxu0 0.0
  %2142 = vmatprep.subr.mxu0 0.0
  %2143 = vmatpush1.msra.mxu0 0.0
  %2144 = vmatprep.subr.mxu0 0.0
  %2145 = vmatpush1.msra.mxu0 0.0
  %2146 = vmatprep.subr.mxu0 0.0
  %2147 = vmatpush1.msra.mxu0 0.0
  %2148 = vmatprep.subr.mxu0 0.0
  %2149 = vmatpush1.msra.mxu0 0.0
  %2150 = vmatprep.subr.mxu0 0.0
  %2151 = vmatpush1.msra.mxu0 0.0
  %2152 = vmatprep.subr.mxu0 0.0
  %2153 = vmatpush1.msra.mxu0 0.0
  %2154 = vmatprep.subr.mxu0 0.0
  %2155 = vmatpush1.msra.mxu0 0.0
  %2156 = vmatprep.subr.mxu0 0.0
  %2157 = vmatpush1.msra.mxu0 0.0
  %2158 = vmatprep.subr.mxu0 0.0
  %2159 = vmatpush1.msra.mxu0 0.0
  %2160 = vmatprep.subr.mxu0 0.0
  %2161 = vmatpush1.msra.mxu0 0.0
  %2162 = vmatprep.subr.mxu0 0.0
  %2163 = vmatpush1.msra.mxu0 0.0
  %2164 = vmatprep.subr.mxu0 0.0
  %2165 = vmatpush1.msra.mxu0 0.0
  %2166 = vmatprep.subr.mxu0 0.0
  %2167 = vmatpush1.msra.mxu0 0.0
  %2168 = vmatprep.subr.mxu0 0.0
  %2169 = vmatpush1.msra.mxu0 0.0
  %2170 = vmatprep.mubr.f32.mxu0 0.0
  %2171 = vmatmul.mubr.f32.gmra.mrb[0].mxu0 %v2104
  %v2172 = vpop.f32.mrb[0].mxu0
  %v2173 = vadd.f32 %v2028, %v2172
  %v2174 = vpop.f32.mrb[0].mxu0
  %v2175 = vadd.f32 %v2030, %v2174
  %2176 = vdwg.mxu0
  %2177 = vmatprep.subr.mxu0 %v1910
  %2178 = vmatpush1.msra.mxu0 %v1909
  %2179 = vmatprep.subr.mxu0 0.0
  %2180 = vmatpush1.msra.mxu0 0.0
  %2181 = vmatprep.subr.mxu0 0.0
  %2182 = vmatpush1.msra.mxu0 0.0
  %2183 = vmatprep.subr.mxu0 0.0
  %2184 = vmatpush1.msra.mxu0 0.0
  %2185 = vmatprep.subr.mxu0 0.0
  %2186 = vmatpush1.msra.mxu0 0.0
  %2187 = vmatprep.subr.mxu0 0.0
  %2188 = vmatpush1.msra.mxu0 0.0
  %2189 = vmatprep.subr.mxu0 0.0
  %2190 = vmatpush1.msra.mxu0 0.0
  %2191 = vmatprep.subr.mxu0 0.0
  %2192 = vmatpush1.msra.mxu0 0.0
  %2193 = vmatprep.subr.mxu0 0.0
  %2194 = vmatpush1.msra.mxu0 0.0
  %2195 = vmatprep.subr.mxu0 0.0
  %2196 = vmatpush1.msra.mxu0 0.0
  %2197 = vmatprep.subr.mxu0 0.0
  %2198 = vmatpush1.msra.mxu0 0.0
  %2199 = vmatprep.subr.mxu0 0.0
  %2200 = vmatpush1.msra.mxu0 0.0
  %2201 = vmatprep.subr.mxu0 0.0
  %2202 = vmatpush1.msra.mxu0 0.0
  %2203 = vmatprep.subr.mxu0 0.0
  %2204 = vmatpush1.msra.mxu0 0.0
  %2205 = vmatprep.subr.mxu0 0.0
  %2206 = vmatpush1.msra.mxu0 0.0
  %2207 = vmatprep.subr.mxu0 0.0
  %2208 = vmatpush1.msra.mxu0 0.0
  %2209 = vmatprep.subr.mxu0 0.0
  %2210 = vmatpush1.msra.mxu0 0.0
  %2211 = vmatprep.subr.mxu0 0.0
  %2212 = vmatpush1.msra.mxu0 0.0
  %2213 = vmatprep.subr.mxu0 0.0
  %2214 = vmatpush1.msra.mxu0 0.0
  %2215 = vmatprep.subr.mxu0 0.0
  %2216 = vmatpush1.msra.mxu0 0.0
  %2217 = vmatprep.subr.mxu0 0.0
  %2218 = vmatpush1.msra.mxu0 0.0
  %2219 = vmatprep.subr.mxu0 0.0
  %2220 = vmatpush1.msra.mxu0 0.0
  %2221 = vmatprep.subr.mxu0 0.0
  %2222 = vmatpush1.msra.mxu0 0.0
  %2223 = vmatprep.subr.mxu0 0.0
  %2224 = vmatpush1.msra.mxu0 0.0
  %2225 = vmatprep.subr.mxu0 0.0
  %2226 = vmatpush1.msra.mxu0 0.0
  %2227 = vmatprep.subr.mxu0 0.0
  %2228 = vmatpush1.msra.mxu0 0.0
  %2229 = vmatprep.subr.mxu0 0.0
  %2230 = vmatpush1.msra.mxu0 0.0
  %2231 = vmatprep.subr.mxu0 0.0
  %2232 = vmatpush1.msra.mxu0 0.0
  %2233 = vmatprep.subr.mxu0 0.0
  %2234 = vmatpush1.msra.mxu0 0.0
  %2235 = vmatprep.subr.mxu0 0.0
  %2236 = vmatpush1.msra.mxu0 0.0
  %2237 = vmatprep.subr.mxu0 0.0
  %2238 = vmatpush1.msra.mxu0 0.0
  %2239 = vmatprep.subr.mxu0 0.0
  %2240 = vmatpush1.msra.mxu0 0.0
  %2241 = vmatprep.mubr.f32.mxu0 0.0
  %2242 = vmatmul.mubr.f32.gmra.mrb[0].mxu0 %v2104
  %v2243 = vpop.f32.mrb[0].mxu0
  %v2244 = vadd.f32 %v2099, %v2243
  %v2245 = vpop.f32.mrb[0].mxu0
  %v2246 = vadd.f32 %v2101, %v2245
  %2247 = vdwg.mxu0
  %2248 = vrot.lane.b32.xlu0 %v1863, 15
  %v2249 = vpop.permute.xlu0 %2248
  %2251 = vrot.lane.b32.xlu0 %v1860, 15
  %v2252 = vpop.permute.xlu0 %2251
  %2253 = vrot.lane.b32.xlu0 %v1861, 15
  %v2254 = vpop.permute.xlu0 %2253
  %2255 = vrot.lane.b32.xlu0 %v1862, 15
  %v2256 = vpop.permute.xlu0 %2255
  %v2257 = vsel %vm448, %v2252, %v2254
  %v2258 = vsel %vm448, %v2254, %v2256
  %v2259 = vsel %vm448, %v2256, %v2249
  %v2264 = vsel %vm448, %v2249, %v2252
  %v2265 = vld [vmem:[%s457] ss:$8 sm:$0xf]
  %v2267 = vlaneseq
  %v2268 = vshrl.u32 %v2267, 7
  %v2269 = vsub.s32 0, %v2268
  %v2270 = vrot.slane %v2265, %v2269
  %v2271 = vlaneseq
  %v2272 = vshrl.u32 %v2271, 7
  %v2273 = vsub.s32 1, %v2272
  %v2274 = vrot.slane %v2265, %v2273
  %v2275 = vlaneseq
  %v2276 = vshrl.u32 %v2275, 7
  %v2277 = vsub.s32 2, %v2276
  %v2278 = vrot.slane %v2265, %v2277
  %v2279 = vlaneseq
  %v2280 = vshrl.u32 %v2279, 7
  %v2281 = vsub.s32 3, %v2280
  %v2282 = vrot.slane %v2265, %v2281
  %v2287 = vmul.f32 %v2264, %v2270
  %v2288 = vmul.f32 %v2257, %v2274
  %v2289 = vmul.f32 %v2258, %v2278
  %v2290 = vmul.f32 %v2259, %v2282
  %s2291 = scalar_lea.vmem %s4, 16
  %v2292 = vld [vmem:[%s2291] sm:$0xff]
  %v2294 = vsel %vm1957, %v2292, 0
  %2296 = vmatprep.subr.mxu0 %v2288
  %2297 = vmatpush1.msra.mxu0 %v2287
  %2298 = vmatprep.subr.mxu0 0.0
  %2299 = vmatpush1.msra.mxu0 0.0
  %2300 = vmatprep.subr.mxu0 0.0
  %2301 = vmatpush1.msra.mxu0 0.0
  %2302 = vmatprep.subr.mxu0 0.0
  %2303 = vmatpush1.msra.mxu0 0.0
  %2304 = vmatprep.subr.mxu0 0.0
  %2305 = vmatpush1.msra.mxu0 0.0
  %2306 = vmatprep.subr.mxu0 0.0
  %2307 = vmatpush1.msra.mxu0 0.0
  %2308 = vmatprep.subr.mxu0 0.0
  %2309 = vmatpush1.msra.mxu0 0.0
  %2310 = vmatprep.subr.mxu0 0.0
  %2311 = vmatpush1.msra.mxu0 0.0
  %2312 = vmatprep.subr.mxu0 0.0
  %2313 = vmatpush1.msra.mxu0 0.0
  %2314 = vmatprep.subr.mxu0 0.0
  %2315 = vmatpush1.msra.mxu0 0.0
  %2316 = vmatprep.subr.mxu0 0.0
  %2317 = vmatpush1.msra.mxu0 0.0
  %2318 = vmatprep.subr.mxu0 0.0
  %2319 = vmatpush1.msra.mxu0 0.0
  %2320 = vmatprep.subr.mxu0 0.0
  %2321 = vmatpush1.msra.mxu0 0.0
  %2322 = vmatprep.subr.mxu0 0.0
  %2323 = vmatpush1.msra.mxu0 0.0
  %2324 = vmatprep.subr.mxu0 0.0
  %2325 = vmatpush1.msra.mxu0 0.0
  %2326 = vmatprep.subr.mxu0 0.0
  %2327 = vmatpush1.msra.mxu0 0.0
  %2328 = vmatprep.subr.mxu0 0.0
  %2329 = vmatpush1.msra.mxu0 0.0
  %2330 = vmatprep.subr.mxu0 0.0
  %2331 = vmatpush1.msra.mxu0 0.0
  %2332 = vmatprep.subr.mxu0 0.0
  %2333 = vmatpush1.msra.mxu0 0.0
  %2334 = vmatprep.subr.mxu0 0.0
  %2335 = vmatpush1.msra.mxu0 0.0
  %2336 = vmatprep.subr.mxu0 0.0
  %2337 = vmatpush1.msra.mxu0 0.0
  %2338 = vmatprep.subr.mxu0 0.0
  %2339 = vmatpush1.msra.mxu0 0.0
  %2340 = vmatprep.subr.mxu0 0.0
  %2341 = vmatpush1.msra.mxu0 0.0
  %2342 = vmatprep.subr.mxu0 0.0
  %2343 = vmatpush1.msra.mxu0 0.0
  %2344 = vmatprep.subr.mxu0 0.0
  %2345 = vmatpush1.msra.mxu0 0.0
  %2346 = vmatprep.subr.mxu0 0.0
  %2347 = vmatpush1.msra.mxu0 0.0
  %2348 = vmatprep.subr.mxu0 0.0
  %2349 = vmatpush1.msra.mxu0 0.0
  %2350 = vmatprep.subr.mxu0 0.0
  %2351 = vmatpush1.msra.mxu0 0.0
  %2352 = vmatprep.subr.mxu0 0.0
  %2353 = vmatpush1.msra.mxu0 0.0
  %2354 = vmatprep.subr.mxu0 0.0
  %2355 = vmatpush1.msra.mxu0 0.0
  %2356 = vmatprep.subr.mxu0 0.0
  %2357 = vmatpush1.msra.mxu0 0.0
  %2358 = vmatprep.subr.mxu0 0.0
  %2359 = vmatpush1.msra.mxu0 0.0
  %2360 = vmatprep.mubr.f32.mxu0 0.0
  %2361 = vmatmul.mubr.f32.gmra.mrb[0].mxu0 %v2294
  %v2362 = vpop.f32.mrb[0].mxu0
  %v2363 = vadd.f32 0.0, %v2362
  %v2364 = vpop.f32.mrb[0].mxu0
  %v2365 = vadd.f32 0.0, %v2364
  %2366 = vdwg.mxu0
  %2367 = vmatprep.subr.mxu0 %v2290
  %2368 = vmatpush1.msra.mxu0 %v2289
  %2369 = vmatprep.subr.mxu0 0.0
  %2370 = vmatpush1.msra.mxu0 0.0
  %2371 = vmatprep.subr.mxu0 0.0
  %2372 = vmatpush1.msra.mxu0 0.0
  %2373 = vmatprep.subr.mxu0 0.0
  %2374 = vmatpush1.msra.mxu0 0.0
  %2375 = vmatprep.subr.mxu0 0.0
  %2376 = vmatpush1.msra.mxu0 0.0
  %2377 = vmatprep.subr.mxu0 0.0
  %2378 = vmatpush1.msra.mxu0 0.0
  %2379 = vmatprep.subr.mxu0 0.0
  %2380 = vmatpush1.msra.mxu0 0.0
  %2381 = vmatprep.subr.mxu0 0.0
  %2382 = vmatpush1.msra.mxu0 0.0
  %2383 = vmatprep.subr.mxu0 0.0
  %2384 = vmatpush1.msra.mxu0 0.0
  %2385 = vmatprep.subr.mxu0 0.0
  %2386 = vmatpush1.msra.mxu0 0.0
  %2387 = vmatprep.subr.mxu0 0.0
  %2388 = vmatpush1.msra.mxu0 0.0
  %2389 = vmatprep.subr.mxu0 0.0
  %2390 = vmatpush1.msra.mxu0 0.0
  %2391 = vmatprep.subr.mxu0 0.0
  %2392 = vmatpush1.msra.mxu0 0.0
  %2393 = vmatprep.subr.mxu0 0.0
  %2394 = vmatpush1.msra.mxu0 0.0
  %2395 = vmatprep.subr.mxu0 0.0
  %2396 = vmatpush1.msra.mxu0 0.0
  %2397 = vmatprep.subr.mxu0 0.0
  %2398 = vmatpush1.msra.mxu0 0.0
  %2399 = vmatprep.subr.mxu0 0.0
  %2400 = vmatpush1.msra.mxu0 0.0
  %2401 = vmatprep.subr.mxu0 0.0
  %2402 = vmatpush1.msra.mxu0 0.0
  %2403 = vmatprep.subr.mxu0 0.0
  %2404 = vmatpush1.msra.mxu0 0.0
  %2405 = vmatprep.subr.mxu0 0.0
  %2406 = vmatpush1.msra.mxu0 0.0
  %2407 = vmatprep.subr.mxu0 0.0
  %2408 = vmatpush1.msra.mxu0 0.0
  %2409 = vmatprep.subr.mxu0 0.0
  %2410 = vmatpush1.msra.mxu0 0.0
  %2411 = vmatprep.subr.mxu0 0.0
  %2412 = vmatpush1.msra.mxu0 0.0
  %2413 = vmatprep.subr.mxu0 0.0
  %2414 = vmatpush1.msra.mxu0 0.0
  %2415 = vmatprep.subr.mxu0 0.0
  %2416 = vmatpush1.msra.mxu0 0.0
  %2417 = vmatprep.subr.mxu0 0.0
  %2418 = vmatpush1.msra.mxu0 0.0
  %2419 = vmatprep.subr.mxu0 0.0
  %2420 = vmatpush1.msra.mxu0 0.0
  %2421 = vmatprep.subr.mxu0 0.0
  %2422 = vmatpush1.msra.mxu0 0.0
  %2423 = vmatprep.subr.mxu0 0.0
  %2424 = vmatpush1.msra.mxu0 0.0
  %2425 = vmatprep.subr.mxu0 0.0
  %2426 = vmatpush1.msra.mxu0 0.0
  %2427 = vmatprep.subr.mxu0 0.0
  %2428 = vmatpush1.msra.mxu0 0.0
  %2429 = vmatprep.subr.mxu0 0.0
  %2430 = vmatpush1.msra.mxu0 0.0
  %2431 = vmatprep.mubr.f32.mxu0 0.0
  %2432 = vmatmul.mubr.f32.gmra.mrb[0].mxu0 %v2294
  %v2433 = vpop.f32.mrb[0].mxu0
  %v2434 = vadd.f32 0.0, %v2433
  %v2435 = vpop.f32.mrb[0].mxu0
  %v2436 = vadd.f32 0.0, %v2435
  %2437 = vdwg.mxu0
  %v2438 = vadd.f32 %v2173, %v2363
  %v2439 = vadd.f32 %v2175, %v2365
  %v2440 = vadd.f32 %v2244, %v2434
  %v2441 = vadd.f32 %v2246, %v2436
  %2442 = vrot.lane.b32.xlu0 %v1863, 1
  %v2443 = vpop.permute.xlu0 %2442
  %2445 = vrot.lane.b32.xlu0 %v1860, 1
  %v2446 = vpop.permute.xlu0 %2445
  %2447 = vrot.lane.b32.xlu0 %v1861, 1
  %v2448 = vpop.permute.xlu0 %2447
  %2449 = vrot.lane.b32.xlu0 %v1862, 1
  %v2450 = vpop.permute.xlu0 %2449
  %v2451 = vsel %vm656, %v2446, %v2448
  %v2452 = vsel %vm656, %v2448, %v2450
  %v2453 = vsel %vm656, %v2450, %v2443
  %v2458 = vsel %vm656, %v2443, %v2446
  %v2459 = vld [vmem:[%s665] ss:$8 sm:$0xf]
  %v2461 = vlaneseq
  %v2462 = vshrl.u32 %v2461, 7
  %v2463 = vsub.s32 0, %v2462
  %v2464 = vrot.slane %v2459, %v2463
  %v2465 = vlaneseq
  %v2466 = vshrl.u32 %v2465, 7
  %v2467 = vsub.s32 1, %v2466
  %v2468 = vrot.slane %v2459, %v2467
  %v2469 = vlaneseq
  %v2470 = vshrl.u32 %v2469, 7
  %v2471 = vsub.s32 2, %v2470
  %v2472 = vrot.slane %v2459, %v2471
  %v2473 = vlaneseq
  %v2474 = vshrl.u32 %v2473, 7
  %v2475 = vsub.s32 3, %v2474
  %v2476 = vrot.slane %v2459, %v2475
  %v2481 = vmul.f32 %v2458, %v2464
  %v2482 = vmul.f32 %v2451, %v2468
  %v2483 = vmul.f32 %v2452, %v2472
  %v2484 = vmul.f32 %v2453, %v2476
  %s2485 = scalar_lea.vmem %s4, 24
  %v2486 = vld [vmem:[%s2485] sm:$0xff]
  %v2488 = vsel %vm1957, %v2486, 0
  %2490 = vmatprep.subr.mxu0 %v2482
  %2491 = vmatpush1.msra.mxu0 %v2481
  %2492 = vmatprep.subr.mxu0 0.0
  %2493 = vmatpush1.msra.mxu0 0.0
  %2494 = vmatprep.subr.mxu0 0.0
  %2495 = vmatpush1.msra.mxu0 0.0
  %2496 = vmatprep.subr.mxu0 0.0
  %2497 = vmatpush1.msra.mxu0 0.0
  %2498 = vmatprep.subr.mxu0 0.0
  %2499 = vmatpush1.msra.mxu0 0.0
  %2500 = vmatprep.subr.mxu0 0.0
  %2501 = vmatpush1.msra.mxu0 0.0
  %2502 = vmatprep.subr.mxu0 0.0
  %2503 = vmatpush1.msra.mxu0 0.0
  %2504 = vmatprep.subr.mxu0 0.0
  %2505 = vmatpush1.msra.mxu0 0.0
  %2506 = vmatprep.subr.mxu0 0.0
  %2507 = vmatpush1.msra.mxu0 0.0
  %2508 = vmatprep.subr.mxu0 0.0
  %2509 = vmatpush1.msra.mxu0 0.0
  %2510 = vmatprep.subr.mxu0 0.0
  %2511 = vmatpush1.msra.mxu0 0.0
  %2512 = vmatprep.subr.mxu0 0.0
  %2513 = vmatpush1.msra.mxu0 0.0
  %2514 = vmatprep.subr.mxu0 0.0
  %2515 = vmatpush1.msra.mxu0 0.0
  %2516 = vmatprep.subr.mxu0 0.0
  %2517 = vmatpush1.msra.mxu0 0.0
  %2518 = vmatprep.subr.mxu0 0.0
  %2519 = vmatpush1.msra.mxu0 0.0
  %2520 = vmatprep.subr.mxu0 0.0
  %2521 = vmatpush1.msra.mxu0 0.0
  %2522 = vmatprep.subr.mxu0 0.0
  %2523 = vmatpush1.msra.mxu0 0.0
  %2524 = vmatprep.subr.mxu0 0.0
  %2525 = vmatpush1.msra.mxu0 0.0
  %2526 = vmatprep.subr.mxu0 0.0
  %2527 = vmatpush1.msra.mxu0 0.0
  %2528 = vmatprep.subr.mxu0 0.0
  %2529 = vmatpush1.msra.mxu0 0.0
  %2530 = vmatprep.subr.mxu0 0.0
  %2531 = vmatpush1.msra.mxu0 0.0
  %2532 = vmatprep.subr.mxu0 0.0
  %2533 = vmatpush1.msra.mxu0 0.0
  %2534 = vmatprep.subr.mxu0 0.0
  %2535 = vmatpush1.msra.mxu0 0.0
  %2536 = vmatprep.subr.mxu0 0.0
  %2537 = vmatpush1.msra.mxu0 0.0
  %2538 = vmatprep.subr.mxu0 0.0
  %2539 = vmatpush1.msra.mxu0 0.0
  %2540 = vmatprep.subr.mxu0 0.0
  %2541 = vmatpush1.msra.mxu0 0.0
  %2542 = vmatprep.subr.mxu0 0.0
  %2543 = vmatpush1.msra.mxu0 0.0
  %2544 = vmatprep.subr.mxu0 0.0
  %2545 = vmatpush1.msra.mxu0 0.0
  %2546 = vmatprep.subr.mxu0 0.0
  %2547 = vmatpush1.msra.mxu0 0.0
  %2548 = vmatprep.subr.mxu0 0.0
  %2549 = vmatpush1.msra.mxu0 0.0
  %2550 = vmatprep.subr.mxu0 0.0
  %2551 = vmatpush1.msra.mxu0 0.0
  %2552 = vmatprep.subr.mxu0 0.0
  %2553 = vmatpush1.msra.mxu0 0.0
  %2554 = vmatprep.mubr.f32.mxu0 0.0
  %2555 = vmatmul.mubr.f32.gmra.mrb[0].mxu0 %v2488
  %v2556 = vpop.f32.mrb[0].mxu0
  %v2557 = vadd.f32 0.0, %v2556
  %v2558 = vpop.f32.mrb[0].mxu0
  %v2559 = vadd.f32 0.0, %v2558
  %2560 = vdwg.mxu0
  %2561 = vmatprep.subr.mxu0 %v2484
  %2562 = vmatpush1.msra.mxu0 %v2483
  %2563 = vmatprep.subr.mxu0 0.0
  %2564 = vmatpush1.msra.mxu0 0.0
  %2565 = vmatprep.subr.mxu0 0.0
  %2566 = vmatpush1.msra.mxu0 0.0
  %2567 = vmatprep.subr.mxu0 0.0
  %2568 = vmatpush1.msra.mxu0 0.0
  %2569 = vmatprep.subr.mxu0 0.0
  %2570 = vmatpush1.msra.mxu0 0.0
  %2571 = vmatprep.subr.mxu0 0.0
  %2572 = vmatpush1.msra.mxu0 0.0
  %2573 = vmatprep.subr.mxu0 0.0
  %2574 = vmatpush1.msra.mxu0 0.0
  %2575 = vmatprep.subr.mxu0 0.0
  %2576 = vmatpush1.msra.mxu0 0.0
  %2577 = vmatprep.subr.mxu0 0.0
  %2578 = vmatpush1.msra.mxu0 0.0
  %2579 = vmatprep.subr.mxu0 0.0
  %2580 = vmatpush1.msra.mxu0 0.0
  %2581 = vmatprep.subr.mxu0 0.0
  %2582 = vmatpush1.msra.mxu0 0.0
  %2583 = vmatprep.subr.mxu0 0.0
  %2584 = vmatpush1.msra.mxu0 0.0
  %2585 = vmatprep.subr.mxu0 0.0
  %2586 = vmatpush1.msra.mxu0 0.0
  %2587 = vmatprep.subr.mxu0 0.0
  %2588 = vmatpush1.msra.mxu0 0.0
  %2589 = vmatprep.subr.mxu0 0.0
  %2590 = vmatpush1.msra.mxu0 0.0
  %2591 = vmatprep.subr.mxu0 0.0
  %2592 = vmatpush1.msra.mxu0 0.0
  %2593 = vmatprep.subr.mxu0 0.0
  %2594 = vmatpush1.msra.mxu0 0.0
  %2595 = vmatprep.subr.mxu0 0.0
  %2596 = vmatpush1.msra.mxu0 0.0
  %2597 = vmatprep.subr.mxu0 0.0
  %2598 = vmatpush1.msra.mxu0 0.0
  %2599 = vmatprep.subr.mxu0 0.0
  %2600 = vmatpush1.msra.mxu0 0.0
  %2601 = vmatprep.subr.mxu0 0.0
  %2602 = vmatpush1.msra.mxu0 0.0
  %2603 = vmatprep.subr.mxu0 0.0
  %2604 = vmatpush1.msra.mxu0 0.0
  %2605 = vmatprep.subr.mxu0 0.0
  %2606 = vmatpush1.msra.mxu0 0.0
  %2607 = vmatprep.subr.mxu0 0.0
  %2608 = vmatpush1.msra.mxu0 0.0
  %2609 = vmatprep.subr.mxu0 0.0
  %2610 = vmatpush1.msra.mxu0 0.0
  %2611 = vmatprep.subr.mxu0 0.0
  %2612 = vmatpush1.msra.mxu0 0.0
  %2613 = vmatprep.subr.mxu0 0.0
  %2614 = vmatpush1.msra.mxu0 0.0
  %2615 = vmatprep.subr.mxu0 0.0
  %2616 = vmatpush1.msra.mxu0 0.0
  %2617 = vmatprep.subr.mxu0 0.0
  %2618 = vmatpush1.msra.mxu0 0.0
  %2619 = vmatprep.subr.mxu0 0.0
  %2620 = vmatpush1.msra.mxu0 0.0
  %2621 = vmatprep.subr.mxu0 0.0
  %2622 = vmatpush1.msra.mxu0 0.0
  %2623 = vmatprep.subr.mxu0 0.0
  %2624 = vmatpush1.msra.mxu0 0.0
  %2625 = vmatprep.mubr.f32.mxu0 0.0
  %2626 = vmatmul.mubr.f32.gmra.mrb[0].mxu0 %v2488
  %v2627 = vpop.f32.mrb[0].mxu0
  %v2628 = vadd.f32 0.0, %v2627
  %v2629 = vpop.f32.mrb[0].mxu0
  %v2630 = vadd.f32 0.0, %v2629
  %2631 = vdwg.mxu0
  %v2632 = vadd.f32 %v2438, %v2557
  %v2633 = vadd.f32 %v2439, %v2559
  %v2634 = vadd.f32 %v2440, %v2628
  %v2635 = vadd.f32 %v2441, %v2630
  %s2636 = scalar_lea.vmem %s4, 32
  %v2637 = vld [vmem:[%s2636] sm:$0xff]
  %v2639 = vsel %vm1957, %v2637, 0
  %2641 = vmatprep.subr.mxu0 %v1861
  %2642 = vmatpush1.msra.mxu0 %v1860
  %2643 = vmatprep.subr.mxu0 0.0
  %2644 = vmatpush1.msra.mxu0 0.0
  %2645 = vmatprep.subr.mxu0 0.0
  %2646 = vmatpush1.msra.mxu0 0.0
  %2647 = vmatprep.subr.mxu0 0.0
  %2648 = vmatpush1.msra.mxu0 0.0
  %2649 = vmatprep.subr.mxu0 0.0
  %2650 = vmatpush1.msra.mxu0 0.0
  %2651 = vmatprep.subr.mxu0 0.0
  %2652 = vmatpush1.msra.mxu0 0.0
  %2653 = vmatprep.subr.mxu0 0.0
  %2654 = vmatpush1.msra.mxu0 0.0
  %2655 = vmatprep.subr.mxu0 0.0
  %2656 = vmatpush1.msra.mxu0 0.0
  %2657 = vmatprep.subr.mxu0 0.0
  %2658 = vmatpush1.msra.mxu0 0.0
  %2659 = vmatprep.subr.mxu0 0.0
  %2660 = vmatpush1.msra.mxu0 0.0
  %2661 = vmatprep.subr.mxu0 0.0
  %2662 = vmatpush1.msra.mxu0 0.0
  %2663 = vmatprep.subr.mxu0 0.0
  %2664 = vmatpush1.msra.mxu0 0.0
  %2665 = vmatprep.subr.mxu0 0.0
  %2666 = vmatpush1.msra.mxu0 0.0
  %2667 = vmatprep.subr.mxu0 0.0
  %2668 = vmatpush1.msra.mxu0 0.0
  %2669 = vmatprep.subr.mxu0 0.0
  %2670 = vmatpush1.msra.mxu0 0.0
  %2671 = vmatprep.subr.mxu0 0.0
  %2672 = vmatpush1.msra.mxu0 0.0
  %2673 = vmatprep.subr.mxu0 0.0
  %2674 = vmatpush1.msra.mxu0 0.0
  %2675 = vmatprep.subr.mxu0 0.0
  %2676 = vmatpush1.msra.mxu0 0.0
  %2677 = vmatprep.subr.mxu0 0.0
  %2678 = vmatpush1.msra.mxu0 0.0
  %2679 = vmatprep.subr.mxu0 0.0
  %2680 = vmatpush1.msra.mxu0 0.0
  %2681 = vmatprep.subr.mxu0 0.0
  %2682 = vmatpush1.msra.mxu0 0.0
  %2683 = vmatprep.subr.mxu0 0.0
  %2684 = vmatpush1.msra.mxu0 0.0
  %2685 = vmatprep.subr.mxu0 0.0
  %2686 = vmatpush1.msra.mxu0 0.0
  %2687 = vmatprep.subr.mxu0 0.0
  %2688 = vmatpush1.msra.mxu0 0.0
  %2689 = vmatprep.subr.mxu0 0.0
  %2690 = vmatpush1.msra.mxu0 0.0
  %2691 = vmatprep.subr.mxu0 0.0
  %2692 = vmatpush1.msra.mxu0 0.0
  %2693 = vmatprep.subr.mxu0 0.0
  %2694 = vmatpush1.msra.mxu0 0.0
  %2695 = vmatprep.subr.mxu0 0.0
  %2696 = vmatpush1.msra.mxu0 0.0
  %2697 = vmatprep.subr.mxu0 0.0
  %2698 = vmatpush1.msra.mxu0 0.0
  %2699 = vmatprep.subr.mxu0 0.0
  %2700 = vmatpush1.msra.mxu0 0.0
  %2701 = vmatprep.subr.mxu0 0.0
  %2702 = vmatpush1.msra.mxu0 0.0
  %2703 = vmatprep.subr.mxu0 0.0
  %2704 = vmatpush1.msra.mxu0 0.0
  %2705 = vmatprep.mubr.f32.mxu0 0.0
  %2706 = vmatmul.mubr.f32.gmra.mrb[0].mxu0 %v2639
  %v2707 = vpop.f32.mrb[0].mxu0
  %v2708 = vadd.f32 0.0, %v2707
  %v2709 = vpop.f32.mrb[0].mxu0
  %v2710 = vadd.f32 0.0, %v2709
  %2711 = vdwg.mxu0
  %2712 = vmatprep.subr.mxu0 %v1863
  %2713 = vmatpush1.msra.mxu0 %v1862
  %2714 = vmatprep.subr.mxu0 0.0
  %2715 = vmatpush1.msra.mxu0 0.0
  %2716 = vmatprep.subr.mxu0 0.0
  %2717 = vmatpush1.msra.mxu0 0.0
  %2718 = vmatprep.subr.mxu0 0.0
  %2719 = vmatpush1.msra.mxu0 0.0
  %2720 = vmatprep.subr.mxu0 0.0
  %2721 = vmatpush1.msra.mxu0 0.0
  %2722 = vmatprep.subr.mxu0 0.0
  %2723 = vmatpush1.msra.mxu0 0.0
  %2724 = vmatprep.subr.mxu0 0.0
  %2725 = vmatpush1.msra.mxu0 0.0
  %2726 = vmatprep.subr.mxu0 0.0
  %2727 = vmatpush1.msra.mxu0 0.0
  %2728 = vmatprep.subr.mxu0 0.0
  %2729 = vmatpush1.msra.mxu0 0.0
  %2730 = vmatprep.subr.mxu0 0.0
  %2731 = vmatpush1.msra.mxu0 0.0
  %2732 = vmatprep.subr.mxu0 0.0
  %2733 = vmatpush1.msra.mxu0 0.0
  %2734 = vmatprep.subr.mxu0 0.0
  %2735 = vmatpush1.msra.mxu0 0.0
  %2736 = vmatprep.subr.mxu0 0.0
  %2737 = vmatpush1.msra.mxu0 0.0
  %2738 = vmatprep.subr.mxu0 0.0
  %2739 = vmatpush1.msra.mxu0 0.0
  %2740 = vmatprep.subr.mxu0 0.0
  %2741 = vmatpush1.msra.mxu0 0.0
  %2742 = vmatprep.subr.mxu0 0.0
  %2743 = vmatpush1.msra.mxu0 0.0
  %2744 = vmatprep.subr.mxu0 0.0
  %2745 = vmatpush1.msra.mxu0 0.0
  %2746 = vmatprep.subr.mxu0 0.0
  %2747 = vmatpush1.msra.mxu0 0.0
  %2748 = vmatprep.subr.mxu0 0.0
  %2749 = vmatpush1.msra.mxu0 0.0
  %2750 = vmatprep.subr.mxu0 0.0
  %2751 = vmatpush1.msra.mxu0 0.0
  %2752 = vmatprep.subr.mxu0 0.0
  %2753 = vmatpush1.msra.mxu0 0.0
  %2754 = vmatprep.subr.mxu0 0.0
  %2755 = vmatpush1.msra.mxu0 0.0
  %2756 = vmatprep.subr.mxu0 0.0
  %2757 = vmatpush1.msra.mxu0 0.0
  %2758 = vmatprep.subr.mxu0 0.0
  %2759 = vmatpush1.msra.mxu0 0.0
  %2760 = vmatprep.subr.mxu0 0.0
  %2761 = vmatpush1.msra.mxu0 0.0
  %2762 = vmatprep.subr.mxu0 0.0
  %2763 = vmatpush1.msra.mxu0 0.0
  %2764 = vmatprep.subr.mxu0 0.0
  %2765 = vmatpush1.msra.mxu0 0.0
  %2766 = vmatprep.subr.mxu0 0.0
  %2767 = vmatpush1.msra.mxu0 0.0
  %2768 = vmatprep.subr.mxu0 0.0
  %2769 = vmatpush1.msra.mxu0 0.0
  %2770 = vmatprep.subr.mxu0 0.0
  %2771 = vmatpush1.msra.mxu0 0.0
  %2772 = vmatprep.subr.mxu0 0.0
  %2773 = vmatpush1.msra.mxu0 0.0
  %2774 = vmatprep.subr.mxu0 0.0
  %2775 = vmatpush1.msra.mxu0 0.0
  %2776 = vmatprep.mubr.f32.mxu0 0.0
  %2777 = vmatmul.mubr.f32.gmra.mrb[0].mxu0 %v2639
  %v2778 = vpop.f32.mrb[0].mxu0
  %v2779 = vadd.f32 0.0, %v2778
  %v2780 = vpop.f32.mrb[0].mxu0
  %v2781 = vadd.f32 0.0, %v2780
  %2782 = vdwg.mxu0
  %v2783 = vadd.f32 %v2632, %v2708
  %v2784 = vadd.f32 %v2633, %v2710
  %v2785 = vadd.f32 %v2634, %v2779
  %v2786 = vadd.f32 %v2635, %v2781
  %2787 = vrot.lane.b32.xlu0 %v1860, 127
  %v2788 = vpop.permute.xlu0 %2787
  %2789 = vrot.lane.b32.xlu0 %v1861, 127
  %v2790 = vpop.permute.xlu0 %2789
  %2791 = vrot.lane.b32.xlu0 %v1862, 127
  %v2792 = vpop.permute.xlu0 %2791
  %2793 = vrot.lane.b32.xlu0 %v1863, 127
  %v2794 = vpop.permute.xlu0 %2793
  %v2795 = vsel %vm1022, %v2788, %v2790
  %v2796 = vsel %vm1022, %v2790, %v2792
  %v2797 = vsel %vm1022, %v2792, %v2794
  %v2803 = vsel %vm1022, %v2794, %v2788
  %v2804 = vld [vmem:[%s1032] ss:$8 sm:$0xf]
  %v2806 = vlaneseq
  %v2807 = vshrl.u32 %v2806, 7
  %v2808 = vsub.s32 0, %v2807
  %v2809 = vrot.slane %v2804, %v2808
  %v2810 = vlaneseq
  %v2811 = vshrl.u32 %v2810, 7
  %v2812 = vsub.s32 1, %v2811
  %v2813 = vrot.slane %v2804, %v2812
  %v2814 = vlaneseq
  %v2815 = vshrl.u32 %v2814, 7
  %v2816 = vsub.s32 2, %v2815
  %v2817 = vrot.slane %v2804, %v2816
  %v2818 = vlaneseq
  %v2819 = vshrl.u32 %v2818, 7
  %v2820 = vsub.s32 3, %v2819
  %v2821 = vrot.slane %v2804, %v2820
  %v2826 = vmul.f32 %v2795, %v2809
  %v2827 = vmul.f32 %v2796, %v2813
  %v2828 = vmul.f32 %v2797, %v2817
  %v2829 = vmul.f32 %v2803, %v2821
  %s2830 = scalar_lea.vmem %s4, 40
  %v2831 = vld [vmem:[%s2830] sm:$0xff]
  %v2833 = vsel %vm1957, %v2831, 0
  %2835 = vmatprep.subr.mxu0 %v2827
  %2836 = vmatpush1.msra.mxu0 %v2826
  %2837 = vmatprep.subr.mxu0 0.0
  %2838 = vmatpush1.msra.mxu0 0.0
  %2839 = vmatprep.subr.mxu0 0.0
  %2840 = vmatpush1.msra.mxu0 0.0
  %2841 = vmatprep.subr.mxu0 0.0
  %2842 = vmatpush1.msra.mxu0 0.0
  %2843 = vmatprep.subr.mxu0 0.0
  %2844 = vmatpush1.msra.mxu0 0.0
  %2845 = vmatprep.subr.mxu0 0.0
  %2846 = vmatpush1.msra.mxu0 0.0
  %2847 = vmatprep.subr.mxu0 0.0
  %2848 = vmatpush1.msra.mxu0 0.0
  %2849 = vmatprep.subr.mxu0 0.0
  %2850 = vmatpush1.msra.mxu0 0.0
  %2851 = vmatprep.subr.mxu0 0.0
  %2852 = vmatpush1.msra.mxu0 0.0
  %2853 = vmatprep.subr.mxu0 0.0
  %2854 = vmatpush1.msra.mxu0 0.0
  %2855 = vmatprep.subr.mxu0 0.0
  %2856 = vmatpush1.msra.mxu0 0.0
  %2857 = vmatprep.subr.mxu0 0.0
  %2858 = vmatpush1.msra.mxu0 0.0
  %2859 = vmatprep.subr.mxu0 0.0
  %2860 = vmatpush1.msra.mxu0 0.0
  %2861 = vmatprep.subr.mxu0 0.0
  %2862 = vmatpush1.msra.mxu0 0.0
  %2863 = vmatprep.subr.mxu0 0.0
  %2864 = vmatpush1.msra.mxu0 0.0
  %2865 = vmatprep.subr.mxu0 0.0
  %2866 = vmatpush1.msra.mxu0 0.0
  %2867 = vmatprep.subr.mxu0 0.0
  %2868 = vmatpush1.msra.mxu0 0.0
  %2869 = vmatprep.subr.mxu0 0.0
  %2870 = vmatpush1.msra.mxu0 0.0
  %2871 = vmatprep.subr.mxu0 0.0
  %2872 = vmatpush1.msra.mxu0 0.0
  %2873 = vmatprep.subr.mxu0 0.0
  %2874 = vmatpush1.msra.mxu0 0.0
  %2875 = vmatprep.subr.mxu0 0.0
  %2876 = vmatpush1.msra.mxu0 0.0
  %2877 = vmatprep.subr.mxu0 0.0
  %2878 = vmatpush1.msra.mxu0 0.0
  %2879 = vmatprep.subr.mxu0 0.0
  %2880 = vmatpush1.msra.mxu0 0.0
  %2881 = vmatprep.subr.mxu0 0.0
  %2882 = vmatpush1.msra.mxu0 0.0
  %2883 = vmatprep.subr.mxu0 0.0
  %2884 = vmatpush1.msra.mxu0 0.0
  %2885 = vmatprep.subr.mxu0 0.0
  %2886 = vmatpush1.msra.mxu0 0.0
  %2887 = vmatprep.subr.mxu0 0.0
  %2888 = vmatpush1.msra.mxu0 0.0
  %2889 = vmatprep.subr.mxu0 0.0
  %2890 = vmatpush1.msra.mxu0 0.0
  %2891 = vmatprep.subr.mxu0 0.0
  %2892 = vmatpush1.msra.mxu0 0.0
  %2893 = vmatprep.subr.mxu0 0.0
  %2894 = vmatpush1.msra.mxu0 0.0
  %2895 = vmatprep.subr.mxu0 0.0
  %2896 = vmatpush1.msra.mxu0 0.0
  %2897 = vmatprep.subr.mxu0 0.0
  %2898 = vmatpush1.msra.mxu0 0.0
  %2899 = vmatprep.mubr.f32.mxu0 0.0
  %2900 = vmatmul.mubr.f32.gmra.mrb[0].mxu0 %v2833
  %v2901 = vpop.f32.mrb[0].mxu0
  %v2902 = vadd.f32 0.0, %v2901
  %v2903 = vpop.f32.mrb[0].mxu0
  %v2904 = vadd.f32 0.0, %v2903
  %2905 = vdwg.mxu0
  %2906 = vmatprep.subr.mxu0 %v2829
  %2907 = vmatpush1.msra.mxu0 %v2828
  %2908 = vmatprep.subr.mxu0 0.0
  %2909 = vmatpush1.msra.mxu0 0.0
  %2910 = vmatprep.subr.mxu0 0.0
  %2911 = vmatpush1.msra.mxu0 0.0
  %2912 = vmatprep.subr.mxu0 0.0
  %2913 = vmatpush1.msra.mxu0 0.0
  %2914 = vmatprep.subr.mxu0 0.0
  %2915 = vmatpush1.msra.mxu0 0.0
  %2916 = vmatprep.subr.mxu0 0.0
  %2917 = vmatpush1.msra.mxu0 0.0
  %2918 = vmatprep.subr.mxu0 0.0
  %2919 = vmatpush1.msra.mxu0 0.0
  %2920 = vmatprep.subr.mxu0 0.0
  %2921 = vmatpush1.msra.mxu0 0.0
  %2922 = vmatprep.subr.mxu0 0.0
  %2923 = vmatpush1.msra.mxu0 0.0
  %2924 = vmatprep.subr.mxu0 0.0
  %2925 = vmatpush1.msra.mxu0 0.0
  %2926 = vmatprep.subr.mxu0 0.0
  %2927 = vmatpush1.msra.mxu0 0.0
  %2928 = vmatprep.subr.mxu0 0.0
  %2929 = vmatpush1.msra.mxu0 0.0
  %2930 = vmatprep.subr.mxu0 0.0
  %2931 = vmatpush1.msra.mxu0 0.0
  %2932 = vmatprep.subr.mxu0 0.0
  %2933 = vmatpush1.msra.mxu0 0.0
  %2934 = vmatprep.subr.mxu0 0.0
  %2935 = vmatpush1.msra.mxu0 0.0
  %2936 = vmatprep.subr.mxu0 0.0
  %2937 = vmatpush1.msra.mxu0 0.0
  %2938 = vmatprep.subr.mxu0 0.0
  %2939 = vmatpush1.msra.mxu0 0.0
  %2940 = vmatprep.subr.mxu0 0.0
  %2941 = vmatpush1.msra.mxu0 0.0
  %2942 = vmatprep.subr.mxu0 0.0
  %2943 = vmatpush1.msra.mxu0 0.0
  %2944 = vmatprep.subr.mxu0 0.0
  %2945 = vmatpush1.msra.mxu0 0.0
  %2946 = vmatprep.subr.mxu0 0.0
  %2947 = vmatpush1.msra.mxu0 0.0
  %2948 = vmatprep.subr.mxu0 0.0
  %2949 = vmatpush1.msra.mxu0 0.0
  %2950 = vmatprep.subr.mxu0 0.0
  %2951 = vmatpush1.msra.mxu0 0.0
  %2952 = vmatprep.subr.mxu0 0.0
  %2953 = vmatpush1.msra.mxu0 0.0
  %2954 = vmatprep.subr.mxu0 0.0
  %2955 = vmatpush1.msra.mxu0 0.0
  %2956 = vmatprep.subr.mxu0 0.0
  %2957 = vmatpush1.msra.mxu0 0.0
  %2958 = vmatprep.subr.mxu0 0.0
  %2959 = vmatpush1.msra.mxu0 0.0
  %2960 = vmatprep.subr.mxu0 0.0
  %2961 = vmatpush1.msra.mxu0 0.0
  %2962 = vmatprep.subr.mxu0 0.0
  %2963 = vmatpush1.msra.mxu0 0.0
  %2964 = vmatprep.subr.mxu0 0.0
  %2965 = vmatpush1.msra.mxu0 0.0
  %2966 = vmatprep.subr.mxu0 0.0
  %2967 = vmatpush1.msra.mxu0 0.0
  %2968 = vmatprep.subr.mxu0 0.0
  %2969 = vmatpush1.msra.mxu0 0.0
  %2970 = vmatprep.mubr.f32.mxu0 0.0
  %2971 = vmatmul.mubr.f32.gmra.mrb[0].mxu0 %v2833
  %v2972 = vpop.f32.mrb[0].mxu0
  %v2973 = vadd.f32 0.0, %v2972
  %v2974 = vpop.f32.mrb[0].mxu0
  %v2975 = vadd.f32 0.0, %v2974
  %2976 = vdwg.mxu0
  %v2977 = vadd.f32 %v2783, %v2902
  %v2978 = vadd.f32 %v2784, %v2904
  %v2979 = vadd.f32 %v2785, %v2973
  %v2980 = vadd.f32 %v2786, %v2975
  %2981 = vrot.lane.b32.xlu0 %v1860, 113
  %v2982 = vpop.permute.xlu0 %2981
  %2983 = vrot.lane.b32.xlu0 %v1861, 113
  %v2984 = vpop.permute.xlu0 %2983
  %2985 = vrot.lane.b32.xlu0 %v1862, 113
  %v2986 = vpop.permute.xlu0 %2985
  %2987 = vrot.lane.b32.xlu0 %v1863, 113
  %v2988 = vpop.permute.xlu0 %2987
  %v2989 = vsel %vm1230, %v2982, %v2984
  %v2990 = vsel %vm1230, %v2984, %v2986
  %v2991 = vsel %vm1230, %v2986, %v2988
  %v2997 = vsel %vm1230, %v2988, %v2982
  %v2998 = vld [vmem:[%s1240] ss:$8 sm:$0xf]
  %v3000 = vlaneseq
  %v3001 = vshrl.u32 %v3000, 7
  %v3002 = vsub.s32 0, %v3001
  %v3003 = vrot.slane %v2998, %v3002
  %v3004 = vlaneseq
  %v3005 = vshrl.u32 %v3004, 7
  %v3006 = vsub.s32 1, %v3005
  %v3007 = vrot.slane %v2998, %v3006
  %v3008 = vlaneseq
  %v3009 = vshrl.u32 %v3008, 7
  %v3010 = vsub.s32 2, %v3009
  %v3011 = vrot.slane %v2998, %v3010
  %v3012 = vlaneseq
  %v3013 = vshrl.u32 %v3012, 7
  %v3014 = vsub.s32 3, %v3013
  %v3015 = vrot.slane %v2998, %v3014
  %v3020 = vmul.f32 %v2989, %v3003
  %v3021 = vmul.f32 %v2990, %v3007
  %v3022 = vmul.f32 %v2991, %v3011
  %v3023 = vmul.f32 %v2997, %v3015
  %s3024 = scalar_lea.vmem %s4, 48
  %v3025 = vld [vmem:[%s3024] sm:$0xff]
  %v3027 = vsel %vm1957, %v3025, 0
  %3029 = vmatprep.subr.mxu0 %v3021
  %3030 = vmatpush1.msra.mxu0 %v3020
  %3031 = vmatprep.subr.mxu0 0.0
  %3032 = vmatpush1.msra.mxu0 0.0
  %3033 = vmatprep.subr.mxu0 0.0
  %3034 = vmatpush1.msra.mxu0 0.0
  %3035 = vmatprep.subr.mxu0 0.0
  %3036 = vmatpush1.msra.mxu0 0.0
  %3037 = vmatprep.subr.mxu0 0.0
  %3038 = vmatpush1.msra.mxu0 0.0
  %3039 = vmatprep.subr.mxu0 0.0
  %3040 = vmatpush1.msra.mxu0 0.0
  %3041 = vmatprep.subr.mxu0 0.0
  %3042 = vmatpush1.msra.mxu0 0.0
  %3043 = vmatprep.subr.mxu0 0.0
  %3044 = vmatpush1.msra.mxu0 0.0
  %3045 = vmatprep.subr.mxu0 0.0
  %3046 = vmatpush1.msra.mxu0 0.0
  %3047 = vmatprep.subr.mxu0 0.0
  %3048 = vmatpush1.msra.mxu0 0.0
  %3049 = vmatprep.subr.mxu0 0.0
  %3050 = vmatpush1.msra.mxu0 0.0
  %3051 = vmatprep.subr.mxu0 0.0
  %3052 = vmatpush1.msra.mxu0 0.0
  %3053 = vmatprep.subr.mxu0 0.0
  %3054 = vmatpush1.msra.mxu0 0.0
  %3055 = vmatprep.subr.mxu0 0.0
  %3056 = vmatpush1.msra.mxu0 0.0
  %3057 = vmatprep.subr.mxu0 0.0
  %3058 = vmatpush1.msra.mxu0 0.0
  %3059 = vmatprep.subr.mxu0 0.0
  %3060 = vmatpush1.msra.mxu0 0.0
  %3061 = vmatprep.subr.mxu0 0.0
  %3062 = vmatpush1.msra.mxu0 0.0
  %3063 = vmatprep.subr.mxu0 0.0
  %3064 = vmatpush1.msra.mxu0 0.0
  %3065 = vmatprep.subr.mxu0 0.0
  %3066 = vmatpush1.msra.mxu0 0.0
  %3067 = vmatprep.subr.mxu0 0.0
  %3068 = vmatpush1.msra.mxu0 0.0
  %3069 = vmatprep.subr.mxu0 0.0
  %3070 = vmatpush1.msra.mxu0 0.0
  %3071 = vmatprep.subr.mxu0 0.0
  %3072 = vmatpush1.msra.mxu0 0.0
  %3073 = vmatprep.subr.mxu0 0.0
  %3074 = vmatpush1.msra.mxu0 0.0
  %3075 = vmatprep.subr.mxu0 0.0
  %3076 = vmatpush1.msra.mxu0 0.0
  %3077 = vmatprep.subr.mxu0 0.0
  %3078 = vmatpush1.msra.mxu0 0.0
  %3079 = vmatprep.subr.mxu0 0.0
  %3080 = vmatpush1.msra.mxu0 0.0
  %3081 = vmatprep.subr.mxu0 0.0
  %3082 = vmatpush1.msra.mxu0 0.0
  %3083 = vmatprep.subr.mxu0 0.0
  %3084 = vmatpush1.msra.mxu0 0.0
  %3085 = vmatprep.subr.mxu0 0.0
  %3086 = vmatpush1.msra.mxu0 0.0
  %3087 = vmatprep.subr.mxu0 0.0
  %3088 = vmatpush1.msra.mxu0 0.0
  %3089 = vmatprep.subr.mxu0 0.0
  %3090 = vmatpush1.msra.mxu0 0.0
  %3091 = vmatprep.subr.mxu0 0.0
  %3092 = vmatpush1.msra.mxu0 0.0
  %3093 = vmatprep.mubr.f32.mxu0 0.0
  %3094 = vmatmul.mubr.f32.gmra.mrb[0].mxu0 %v3027
  %v3095 = vpop.f32.mrb[0].mxu0
  %v3096 = vadd.f32 0.0, %v3095
  %v3097 = vpop.f32.mrb[0].mxu0
  %v3098 = vadd.f32 0.0, %v3097
  %3099 = vdwg.mxu0
  %3100 = vmatprep.subr.mxu0 %v3023
  %3101 = vmatpush1.msra.mxu0 %v3022
  %3102 = vmatprep.subr.mxu0 0.0
  %3103 = vmatpush1.msra.mxu0 0.0
  %3104 = vmatprep.subr.mxu0 0.0
  %3105 = vmatpush1.msra.mxu0 0.0
  %3106 = vmatprep.subr.mxu0 0.0
  %3107 = vmatpush1.msra.mxu0 0.0
  %3108 = vmatprep.subr.mxu0 0.0
  %3109 = vmatpush1.msra.mxu0 0.0
  %3110 = vmatprep.subr.mxu0 0.0
  %3111 = vmatpush1.msra.mxu0 0.0
  %3112 = vmatprep.subr.mxu0 0.0
  %3113 = vmatpush1.msra.mxu0 0.0
  %3114 = vmatprep.subr.mxu0 0.0
  %3115 = vmatpush1.msra.mxu0 0.0
  %3116 = vmatprep.subr.mxu0 0.0
  %3117 = vmatpush1.msra.mxu0 0.0
  %3118 = vmatprep.subr.mxu0 0.0
  %3119 = vmatpush1.msra.mxu0 0.0
  %3120 = vmatprep.subr.mxu0 0.0
  %3121 = vmatpush1.msra.mxu0 0.0
  %3122 = vmatprep.subr.mxu0 0.0
  %3123 = vmatpush1.msra.mxu0 0.0
  %3124 = vmatprep.subr.mxu0 0.0
  %3125 = vmatpush1.msra.mxu0 0.0
  %3126 = vmatprep.subr.mxu0 0.0
  %3127 = vmatpush1.msra.mxu0 0.0
  %3128 = vmatprep.subr.mxu0 0.0
  %3129 = vmatpush1.msra.mxu0 0.0
  %3130 = vmatprep.subr.mxu0 0.0
  %3131 = vmatpush1.msra.mxu0 0.0
  %3132 = vmatprep.subr.mxu0 0.0
  %3133 = vmatpush1.msra.mxu0 0.0
  %3134 = vmatprep.subr.mxu0 0.0
  %3135 = vmatpush1.msra.mxu0 0.0
  %3136 = vmatprep.subr.mxu0 0.0
  %3137 = vmatpush1.msra.mxu0 0.0
  %3138 = vmatprep.subr.mxu0 0.0
  %3139 = vmatpush1.msra.mxu0 0.0
  %3140 = vmatprep.subr.mxu0 0.0
  %3141 = vmatpush1.msra.mxu0 0.0
  %3142 = vmatprep.subr.mxu0 0.0
  %3143 = vmatpush1.msra.mxu0 0.0
  %3144 = vmatprep.subr.mxu0 0.0
  %3145 = vmatpush1.msra.mxu0 0.0
  %3146 = vmatprep.subr.mxu0 0.0
  %3147 = vmatpush1.msra.mxu0 0.0
  %3148 = vmatprep.subr.mxu0 0.0
  %3149 = vmatpush1.msra.mxu0 0.0
  %3150 = vmatprep.subr.mxu0 0.0
  %3151 = vmatpush1.msra.mxu0 0.0
  %3152 = vmatprep.subr.mxu0 0.0
  %3153 = vmatpush1.msra.mxu0 0.0
  %3154 = vmatprep.subr.mxu0 0.0
  %3155 = vmatpush1.msra.mxu0 0.0
  %3156 = vmatprep.subr.mxu0 0.0
  %3157 = vmatpush1.msra.mxu0 0.0
  %3158 = vmatprep.subr.mxu0 0.0
  %3159 = vmatpush1.msra.mxu0 0.0
  %3160 = vmatprep.subr.mxu0 0.0
  %3161 = vmatpush1.msra.mxu0 0.0
  %3162 = vmatprep.subr.mxu0 0.0
  %3163 = vmatpush1.msra.mxu0 0.0
  %3164 = vmatprep.mubr.f32.mxu0 0.0
  %3165 = vmatmul.mubr.f32.gmra.mrb[0].mxu0 %v3027
  %v3166 = vpop.f32.mrb[0].mxu0
  %v3167 = vadd.f32 0.0, %v3166
  %v3168 = vpop.f32.mrb[0].mxu0
  %v3169 = vadd.f32 0.0, %v3168
  %3170 = vdwg.mxu0
  %v3171 = vadd.f32 %v2977, %v3096
  %v3172 = vadd.f32 %v2978, %v3098
  %v3173 = vadd.f32 %v2979, %v3167
  %v3174 = vadd.f32 %v2980, %v3169
  %3175 = vrot.lane.b32.xlu0 %v1860, 112
  %v3176 = vpop.permute.xlu0 %3175
  %3177 = vrot.lane.b32.xlu0 %v1861, 112
  %v3178 = vpop.permute.xlu0 %3177
  %3179 = vrot.lane.b32.xlu0 %v1862, 112
  %v3180 = vpop.permute.xlu0 %3179
  %3181 = vrot.lane.b32.xlu0 %v1863, 112
  %v3182 = vpop.permute.xlu0 %3181
  %v3183 = vsel %vm1438, %v3176, %v3178
  %v3184 = vsel %vm1438, %v3178, %v3180
  %v3185 = vsel %vm1438, %v3180, %v3182
  %v3191 = vsel %vm1438, %v3182, %v3176
  %v3192 = vld [vmem:[%s1448] ss:$8 sm:$0xf]
  %v3194 = vlaneseq
  %v3195 = vshrl.u32 %v3194, 7
  %v3196 = vsub.s32 0, %v3195
  %v3197 = vrot.slane %v3192, %v3196
  %v3198 = vlaneseq
  %v3199 = vshrl.u32 %v3198, 7
  %v3200 = vsub.s32 1, %v3199
  %v3201 = vrot.slane %v3192, %v3200
  %v3202 = vlaneseq
  %v3203 = vshrl.u32 %v3202, 7
  %v3204 = vsub.s32 2, %v3203
  %v3205 = vrot.slane %v3192, %v3204
  %v3206 = vlaneseq
  %v3207 = vshrl.u32 %v3206, 7
  %v3208 = vsub.s32 3, %v3207
  %v3209 = vrot.slane %v3192, %v3208
  %v3214 = vmul.f32 %v3183, %v3197
  %v3215 = vmul.f32 %v3184, %v3201
  %v3216 = vmul.f32 %v3185, %v3205
  %v3217 = vmul.f32 %v3191, %v3209
  %s3218 = scalar_lea.vmem %s4, 56
  %v3219 = vld [vmem:[%s3218] sm:$0xff]
  %v3221 = vsel %vm1957, %v3219, 0
  %3223 = vmatprep.subr.mxu0 %v3215
  %3224 = vmatpush1.msra.mxu0 %v3214
  %3225 = vmatprep.subr.mxu0 0.0
  %3226 = vmatpush1.msra.mxu0 0.0
  %3227 = vmatprep.subr.mxu0 0.0
  %3228 = vmatpush1.msra.mxu0 0.0
  %3229 = vmatprep.subr.mxu0 0.0
  %3230 = vmatpush1.msra.mxu0 0.0
  %3231 = vmatprep.subr.mxu0 0.0
  %3232 = vmatpush1.msra.mxu0 0.0
  %3233 = vmatprep.subr.mxu0 0.0
  %3234 = vmatpush1.msra.mxu0 0.0
  %3235 = vmatprep.subr.mxu0 0.0
  %3236 = vmatpush1.msra.mxu0 0.0
  %3237 = vmatprep.subr.mxu0 0.0
  %3238 = vmatpush1.msra.mxu0 0.0
  %3239 = vmatprep.subr.mxu0 0.0
  %3240 = vmatpush1.msra.mxu0 0.0
  %3241 = vmatprep.subr.mxu0 0.0
  %3242 = vmatpush1.msra.mxu0 0.0
  %3243 = vmatprep.subr.mxu0 0.0
  %3244 = vmatpush1.msra.mxu0 0.0
  %3245 = vmatprep.subr.mxu0 0.0
  %3246 = vmatpush1.msra.mxu0 0.0
  %3247 = vmatprep.subr.mxu0 0.0
  %3248 = vmatpush1.msra.mxu0 0.0
  %3249 = vmatprep.subr.mxu0 0.0
  %3250 = vmatpush1.msra.mxu0 0.0
  %3251 = vmatprep.subr.mxu0 0.0
  %3252 = vmatpush1.msra.mxu0 0.0
  %3253 = vmatprep.subr.mxu0 0.0
  %3254 = vmatpush1.msra.mxu0 0.0
  %3255 = vmatprep.subr.mxu0 0.0
  %3256 = vmatpush1.msra.mxu0 0.0
  %3257 = vmatprep.subr.mxu0 0.0
  %3258 = vmatpush1.msra.mxu0 0.0
  %3259 = vmatprep.subr.mxu0 0.0
  %3260 = vmatpush1.msra.mxu0 0.0
  %3261 = vmatprep.subr.mxu0 0.0
  %3262 = vmatpush1.msra.mxu0 0.0
  %3263 = vmatprep.subr.mxu0 0.0
  %3264 = vmatpush1.msra.mxu0 0.0
  %3265 = vmatprep.subr.mxu0 0.0
  %3266 = vmatpush1.msra.mxu0 0.0
  %3267 = vmatprep.subr.mxu0 0.0
  %3268 = vmatpush1.msra.mxu0 0.0
  %3269 = vmatprep.subr.mxu0 0.0
  %3270 = vmatpush1.msra.mxu0 0.0
  %3271 = vmatprep.subr.mxu0 0.0
  %3272 = vmatpush1.msra.mxu0 0.0
  %3273 = vmatprep.subr.mxu0 0.0
  %3274 = vmatpush1.msra.mxu0 0.0
  %3275 = vmatprep.subr.mxu0 0.0
  %3276 = vmatpush1.msra.mxu0 0.0
  %3277 = vmatprep.subr.mxu0 0.0
  %3278 = vmatpush1.msra.mxu0 0.0
  %3279 = vmatprep.subr.mxu0 0.0
  %3280 = vmatpush1.msra.mxu0 0.0
  %3281 = vmatprep.subr.mxu0 0.0
  %3282 = vmatpush1.msra.mxu0 0.0
  %3283 = vmatprep.subr.mxu0 0.0
  %3284 = vmatpush1.msra.mxu0 0.0
  %3285 = vmatprep.subr.mxu0 0.0
  %3286 = vmatpush1.msra.mxu0 0.0
  %3287 = vmatprep.mubr.f32.mxu0 0.0
  %3288 = vmatmul.mubr.f32.gmra.mrb[0].mxu0 %v3221
  %v3289 = vpop.f32.mrb[0].mxu0
  %v3290 = vadd.f32 0.0, %v3289
  %v3291 = vpop.f32.mrb[0].mxu0
  %v3292 = vadd.f32 0.0, %v3291
  %3293 = vdwg.mxu0
  %3294 = vmatprep.subr.mxu0 %v3217
  %3295 = vmatpush1.msra.mxu0 %v3216
  %3296 = vmatprep.subr.mxu0 0.0
  %3297 = vmatpush1.msra.mxu0 0.0
  %3298 = vmatprep.subr.mxu0 0.0
  %3299 = vmatpush1.msra.mxu0 0.0
  %3300 = vmatprep.subr.mxu0 0.0
  %3301 = vmatpush1.msra.mxu0 0.0
  %3302 = vmatprep.subr.mxu0 0.0
  %3303 = vmatpush1.msra.mxu0 0.0
  %3304 = vmatprep.subr.mxu0 0.0
  %3305 = vmatpush1.msra.mxu0 0.0
  %3306 = vmatprep.subr.mxu0 0.0
  %3307 = vmatpush1.msra.mxu0 0.0
  %3308 = vmatprep.subr.mxu0 0.0
  %3309 = vmatpush1.msra.mxu0 0.0
  %3310 = vmatprep.subr.mxu0 0.0
  %3311 = vmatpush1.msra.mxu0 0.0
  %3312 = vmatprep.subr.mxu0 0.0
  %3313 = vmatpush1.msra.mxu0 0.0
  %3314 = vmatprep.subr.mxu0 0.0
  %3315 = vmatpush1.msra.mxu0 0.0
  %3316 = vmatprep.subr.mxu0 0.0
  %3317 = vmatpush1.msra.mxu0 0.0
  %3318 = vmatprep.subr.mxu0 0.0
  %3319 = vmatpush1.msra.mxu0 0.0
  %3320 = vmatprep.subr.mxu0 0.0
  %3321 = vmatpush1.msra.mxu0 0.0
  %3322 = vmatprep.subr.mxu0 0.0
  %3323 = vmatpush1.msra.mxu0 0.0
  %3324 = vmatprep.subr.mxu0 0.0
  %3325 = vmatpush1.msra.mxu0 0.0
  %3326 = vmatprep.subr.mxu0 0.0
  %3327 = vmatpush1.msra.mxu0 0.0
  %3328 = vmatprep.subr.mxu0 0.0
  %3329 = vmatpush1.msra.mxu0 0.0
  %3330 = vmatprep.subr.mxu0 0.0
  %3331 = vmatpush1.msra.mxu0 0.0
  %3332 = vmatprep.subr.mxu0 0.0
  %3333 = vmatpush1.msra.mxu0 0.0
  %3334 = vmatprep.subr.mxu0 0.0
  %3335 = vmatpush1.msra.mxu0 0.0
  %3336 = vmatprep.subr.mxu0 0.0
  %3337 = vmatpush1.msra.mxu0 0.0
  %3338 = vmatprep.subr.mxu0 0.0
  %3339 = vmatpush1.msra.mxu0 0.0
  %3340 = vmatprep.subr.mxu0 0.0
  %3341 = vmatpush1.msra.mxu0 0.0
  %3342 = vmatprep.subr.mxu0 0.0
  %3343 = vmatpush1.msra.mxu0 0.0
  %3344 = vmatprep.subr.mxu0 0.0
  %3345 = vmatpush1.msra.mxu0 0.0
  %3346 = vmatprep.subr.mxu0 0.0
  %3347 = vmatpush1.msra.mxu0 0.0
  %3348 = vmatprep.subr.mxu0 0.0
  %3349 = vmatpush1.msra.mxu0 0.0
  %3350 = vmatprep.subr.mxu0 0.0
  %3351 = vmatpush1.msra.mxu0 0.0
  %3352 = vmatprep.subr.mxu0 0.0
  %3353 = vmatpush1.msra.mxu0 0.0
  %3354 = vmatprep.subr.mxu0 0.0
  %3355 = vmatpush1.msra.mxu0 0.0
  %3356 = vmatprep.subr.mxu0 0.0
  %3357 = vmatpush1.msra.mxu0 0.0
  %3358 = vmatprep.mubr.f32.mxu0 0.0
  %3359 = vmatmul.mubr.f32.gmra.mrb[0].mxu0 %v3221
  %v3360 = vpop.f32.mrb[0].mxu0
  %v3361 = vadd.f32 0.0, %v3360
  %v3362 = vpop.f32.mrb[0].mxu0
  %v3363 = vadd.f32 0.0, %v3362
  %3364 = vdwg.mxu0
  %v3365 = vadd.f32 %v3171, %v3290
  %v3366 = vadd.f32 %v3172, %v3292
  %v3367 = vadd.f32 %v3173, %v3361
  %v3368 = vadd.f32 %v3174, %v3363
  %3369 = vrot.lane.b32.xlu0 %v1860, 111
  %v3370 = vpop.permute.xlu0 %3369
  %3371 = vrot.lane.b32.xlu0 %v1861, 111
  %v3372 = vpop.permute.xlu0 %3371
  %3373 = vrot.lane.b32.xlu0 %v1862, 111
  %v3374 = vpop.permute.xlu0 %3373
  %3375 = vrot.lane.b32.xlu0 %v1863, 111
  %v3376 = vpop.permute.xlu0 %3375
  %v3377 = vsel %vm1646, %v3370, %v3372
  %v3378 = vsel %vm1646, %v3372, %v3374
  %v3379 = vsel %vm1646, %v3374, %v3376
  %v3385 = vsel %vm1646, %v3376, %v3370
  %v3386 = vld [vmem:[%s1656] ss:$8 sm:$0xf]
  %v3388 = vlaneseq
  %v3389 = vshrl.u32 %v3388, 7
  %v3390 = vsub.s32 0, %v3389
  %v3391 = vrot.slane %v3386, %v3390
  %v3392 = vlaneseq
  %v3393 = vshrl.u32 %v3392, 7
  %v3394 = vsub.s32 1, %v3393
  %v3395 = vrot.slane %v3386, %v3394
  %v3396 = vlaneseq
  %v3397 = vshrl.u32 %v3396, 7
  %v3398 = vsub.s32 2, %v3397
  %v3399 = vrot.slane %v3386, %v3398
  %v3400 = vlaneseq
  %v3401 = vshrl.u32 %v3400, 7
  %v3402 = vsub.s32 3, %v3401
  %v3403 = vrot.slane %v3386, %v3402
  %v3408 = vmul.f32 %v3377, %v3391
  %v3409 = vmul.f32 %v3378, %v3395
  %v3410 = vmul.f32 %v3379, %v3399
  %v3411 = vmul.f32 %v3385, %v3403
  %s3412 = scalar_lea.vmem %s4, 64
  %v3413 = vld [vmem:[%s3412] sm:$0xff]
  %v3415 = vsel %vm1957, %v3413, 0
  %3417 = vmatprep.subr.mxu0 %v3409
  %3418 = vmatpush1.msra.mxu0 %v3408
  %3419 = vmatprep.subr.mxu0 0.0
  %3420 = vmatpush1.msra.mxu0 0.0
  %3421 = vmatprep.subr.mxu0 0.0
  %3422 = vmatpush1.msra.mxu0 0.0
  %3423 = vmatprep.subr.mxu0 0.0
  %3424 = vmatpush1.msra.mxu0 0.0
  %3425 = vmatprep.subr.mxu0 0.0
  %3426 = vmatpush1.msra.mxu0 0.0
  %3427 = vmatprep.subr.mxu0 0.0
  %3428 = vmatpush1.msra.mxu0 0.0
  %3429 = vmatprep.subr.mxu0 0.0
  %3430 = vmatpush1.msra.mxu0 0.0
  %3431 = vmatprep.subr.mxu0 0.0
  %3432 = vmatpush1.msra.mxu0 0.0
  %3433 = vmatprep.subr.mxu0 0.0
  %3434 = vmatpush1.msra.mxu0 0.0
  %3435 = vmatprep.subr.mxu0 0.0
  %3436 = vmatpush1.msra.mxu0 0.0
  %3437 = vmatprep.subr.mxu0 0.0
  %3438 = vmatpush1.msra.mxu0 0.0
  %3439 = vmatprep.subr.mxu0 0.0
  %3440 = vmatpush1.msra.mxu0 0.0
  %3441 = vmatprep.subr.mxu0 0.0
  %3442 = vmatpush1.msra.mxu0 0.0
  %3443 = vmatprep.subr.mxu0 0.0
  %3444 = vmatpush1.msra.mxu0 0.0
  %3445 = vmatprep.subr.mxu0 0.0
  %3446 = vmatpush1.msra.mxu0 0.0
  %3447 = vmatprep.subr.mxu0 0.0
  %3448 = vmatpush1.msra.mxu0 0.0
  %3449 = vmatprep.subr.mxu0 0.0
  %3450 = vmatpush1.msra.mxu0 0.0
  %3451 = vmatprep.subr.mxu0 0.0
  %3452 = vmatpush1.msra.mxu0 0.0
  %3453 = vmatprep.subr.mxu0 0.0
  %3454 = vmatpush1.msra.mxu0 0.0
  %3455 = vmatprep.subr.mxu0 0.0
  %3456 = vmatpush1.msra.mxu0 0.0
  %3457 = vmatprep.subr.mxu0 0.0
  %3458 = vmatpush1.msra.mxu0 0.0
  %3459 = vmatprep.subr.mxu0 0.0
  %3460 = vmatpush1.msra.mxu0 0.0
  %3461 = vmatprep.subr.mxu0 0.0
  %3462 = vmatpush1.msra.mxu0 0.0
  %3463 = vmatprep.subr.mxu0 0.0
  %3464 = vmatpush1.msra.mxu0 0.0
  %3465 = vmatprep.subr.mxu0 0.0
  %3466 = vmatpush1.msra.mxu0 0.0
  %3467 = vmatprep.subr.mxu0 0.0
  %3468 = vmatpush1.msra.mxu0 0.0
  %3469 = vmatprep.subr.mxu0 0.0
  %3470 = vmatpush1.msra.mxu0 0.0
  %3471 = vmatprep.subr.mxu0 0.0
  %3472 = vmatpush1.msra.mxu0 0.0
  %3473 = vmatprep.subr.mxu0 0.0
  %3474 = vmatpush1.msra.mxu0 0.0
  %3475 = vmatprep.subr.mxu0 0.0
  %3476 = vmatpush1.msra.mxu0 0.0
  %3477 = vmatprep.subr.mxu0 0.0
  %3478 = vmatpush1.msra.mxu0 0.0
  %3479 = vmatprep.subr.mxu0 0.0
  %3480 = vmatpush1.msra.mxu0 0.0
  %3481 = vmatprep.mubr.f32.mxu0 0.0
  %3482 = vmatmul.mubr.f32.gmra.mrb[0].mxu0 %v3415
  %v3483 = vpop.f32.mrb[0].mxu0
  %v3484 = vadd.f32 0.0, %v3483
  %v3485 = vpop.f32.mrb[0].mxu0
  %v3486 = vadd.f32 0.0, %v3485
  %3487 = vdwg.mxu0
  %3488 = vmatprep.subr.mxu0 %v3411
  %3489 = vmatpush1.msra.mxu0 %v3410
  %3490 = vmatprep.subr.mxu0 0.0
  %3491 = vmatpush1.msra.mxu0 0.0
  %3492 = vmatprep.subr.mxu0 0.0
  %3493 = vmatpush1.msra.mxu0 0.0
  %3494 = vmatprep.subr.mxu0 0.0
  %3495 = vmatpush1.msra.mxu0 0.0
  %3496 = vmatprep.subr.mxu0 0.0
  %3497 = vmatpush1.msra.mxu0 0.0
  %3498 = vmatprep.subr.mxu0 0.0
  %3499 = vmatpush1.msra.mxu0 0.0
  %3500 = vmatprep.subr.mxu0 0.0
  %3501 = vmatpush1.msra.mxu0 0.0
  %3502 = vmatprep.subr.mxu0 0.0
  %3503 = vmatpush1.msra.mxu0 0.0
  %3504 = vmatprep.subr.mxu0 0.0
  %3505 = vmatpush1.msra.mxu0 0.0
  %3506 = vmatprep.subr.mxu0 0.0
  %3507 = vmatpush1.msra.mxu0 0.0
  %3508 = vmatprep.subr.mxu0 0.0
  %3509 = vmatpush1.msra.mxu0 0.0
  %3510 = vmatprep.subr.mxu0 0.0
  %3511 = vmatpush1.msra.mxu0 0.0
  %3512 = vmatprep.subr.mxu0 0.0
  %3513 = vmatpush1.msra.mxu0 0.0
  %3514 = vmatprep.subr.mxu0 0.0
  %3515 = vmatpush1.msra.mxu0 0.0
  %3516 = vmatprep.subr.mxu0 0.0
  %3517 = vmatpush1.msra.mxu0 0.0
  %3518 = vmatprep.subr.mxu0 0.0
  %3519 = vmatpush1.msra.mxu0 0.0
  %3520 = vmatprep.subr.mxu0 0.0
  %3521 = vmatpush1.msra.mxu0 0.0
  %3522 = vmatprep.subr.mxu0 0.0
  %3523 = vmatpush1.msra.mxu0 0.0
  %3524 = vmatprep.subr.mxu0 0.0
  %3525 = vmatpush1.msra.mxu0 0.0
  %3526 = vmatprep.subr.mxu0 0.0
  %3527 = vmatpush1.msra.mxu0 0.0
  %3528 = vmatprep.subr.mxu0 0.0
  %3529 = vmatpush1.msra.mxu0 0.0
  %3530 = vmatprep.subr.mxu0 0.0
  %3531 = vmatpush1.msra.mxu0 0.0
  %3532 = vmatprep.subr.mxu0 0.0
  %3533 = vmatpush1.msra.mxu0 0.0
  %3534 = vmatprep.subr.mxu0 0.0
  %3535 = vmatpush1.msra.mxu0 0.0
  %3536 = vmatprep.subr.mxu0 0.0
  %3537 = vmatpush1.msra.mxu0 0.0
  %3538 = vmatprep.subr.mxu0 0.0
  %3539 = vmatpush1.msra.mxu0 0.0
  %3540 = vmatprep.subr.mxu0 0.0
  %3541 = vmatpush1.msra.mxu0 0.0
  %3542 = vmatprep.subr.mxu0 0.0
  %3543 = vmatpush1.msra.mxu0 0.0
  %3544 = vmatprep.subr.mxu0 0.0
  %3545 = vmatpush1.msra.mxu0 0.0
  %3546 = vmatprep.subr.mxu0 0.0
  %3547 = vmatpush1.msra.mxu0 0.0
  %3548 = vmatprep.subr.mxu0 0.0
  %3549 = vmatpush1.msra.mxu0 0.0
  %3550 = vmatprep.subr.mxu0 0.0
  %3551 = vmatpush1.msra.mxu0 0.0
  %3552 = vmatprep.mubr.f32.mxu0 0.0
  %3553 = vmatmul.mubr.f32.gmra.mrb[0].mxu0 %v3415
  %v3554 = vpop.f32.mrb[0].mxu0
  %v3555 = vadd.f32 0.0, %v3554
  %v3556 = vpop.f32.mrb[0].mxu0
  %v3557 = vadd.f32 0.0, %v3556
  %3558 = vdwg.mxu0
  %v3559 = vadd.f32 %v3365, %v3484
  %v3560 = vadd.f32 %v3366, %v3486
  %v3561 = vadd.f32 %v3367, %v3555
  %v3562 = vadd.f32 %v3368, %v3557
  %v3563 = vld [vmem:[%s5] sm:$0xff]
  %3565 = vset.pattern.permute.xlu0 0
  %3566 = vperm.xlu0 %3565, %v3563
  %v3567 = vpop.permute.xlu0 %3566
  %v3569 = vadd.f32 %v3559, %v3567
  %v3570 = vadd.f32 %v3560, %v3567
  %v3571 = vadd.f32 %v3561, %v3567
  %v3572 = vadd.f32 %v3562, %v3567
  %v3573 = vmax.f32 %v3569, 0.0
  %v3574 = vmax.f32 %v3570, 0.0
  %v3575 = vmax.f32 %v3571, 0.0
  %v3576 = vmax.f32 %v3572, 0.0
  %3577 = vst [vmem:[%s7] sm:$0xff] %v3573
  %3578 = vst [vmem:[%s7 + $0x8] sm:$0xff] %v3574
  %3579 = vst [vmem:[%s7 + $0x10] sm:$0xff] %v3575
  %3580 = vst [vmem:[%s7 + $0x18] sm:$0xff] %v3576
  // Predicated region
  $region26: #{layers_feature_extractor_forward.1} parent=0 // pred_check
    _
  $region27: #{layers_feature_extractor_forward.1} parent=0 // pred_check_branch
    %3582 = sbr.rel (0) target = $region29
  $region28: #{layers_feature_extractor_forward.1} parent=0 // pred_region
    _
  $region29: #{layers_feature_extractor_forward.1} parent=0 // pred_fallthru
    _
  // Predicated region
  $region30: #{layers_feature_extractor_forward.1} parent=0 // pred_check
    _
  $region31: #{layers_feature_extractor_forward.1} parent=0 // pred_check_branch
    %3584 = sbr.rel (0) target = $region33
  $region32: #{layers_feature_extractor_forward.1} parent=0 // pred_region
    _
  $region33: #{layers_feature_extractor_forward.1} parent=0 // pred_fallthru
    _
  // Predicated region
  $region34: #{layers_feature_extractor_forward.1} parent=0 // pred_check
    _
  $region35: #{layers_feature_extractor_forward.1} parent=0 // pred_check_branch
    %3586 = sbr.rel (0) target = $region37
  $region36: #{layers_feature_extractor_forward.1} parent=0 // pred_region
    _
  $region37: #{layers_feature_extractor_forward.1} parent=0 // pred_fallthru
    _
  // Predicated region
  $region38: #{layers_feature_extractor_forward.1} parent=0 // pred_check
    _
  $region39: #{layers_feature_extractor_forward.1} parent=0 // pred_check_branch
    %3588 = sbr.rel (0) target = $region41
  $region40: #{layers_feature_extractor_forward.1} parent=0 // pred_region
    _
  $region41: #{layers_feature_extractor_forward.1} parent=0 // pred_fallthru
    _

</llo_original>
